<compile_context>
chip_gen: v6e
topology: v6e:2x2x1
jax: 0.10.0
libtpu: 0.0.40
codegen_flags: <defaults>
</compile_context>

<pallas_src>
import math

import jax
import jax.numpy as jnp
import numpy as np
from jax import lax
from jax.experimental import pallas as pl
from jax.experimental.pallas import tpu as pltpu  # noqa: F401  (TPU backend assumed)

# ---- model dims (small, deterministic synthetic config) ----
B, S, D = 2, 8, 32          # batch, sequence length, d_model
H = 4                       # attention heads
DK = D // H                 # per-head dim
DFF = 64                    # feed-forward hidden dim
N_LAYERS = 2                # number of encoder layers (the "N" in Encoder)
BS = B * S                  # flattened (batch*seq) rows
VW = max(3 * D, DFF)        # packed small-vector slab width (= 96)
WROW = 3 * D + D + DFF      # packed row-weight slab width (= 192)
EPS = 1e-6
NEG_INF = -1e9


def _layer_norm(x, a, b):
    # Annotated-Transformer LayerNorm: a * (x - mean) / (std + eps) + b,
    # where std is the UNBIASED std (torch.Tensor.std default, n-1 divisor).
    mean = jnp.mean(x, axis=-1, keepdims=True)
    diff = x - mean
    var = jnp.sum(diff * diff, axis=-1, keepdims=True) * (1.0 / (x.shape[-1] - 1))
    inv = pl.reciprocal(jnp.sqrt(var) + EPS, approx=True)
    return a * diff * inv + b


def encoder_kernel(x_ref, mb_ref, wrow_ref, w2_ref, vecs_ref, fln_ref, out_ref):
    x = x_ref[...]                  # (BS, D)
    mask_bias = mb_ref[...]         # (BS, BS) additive: 0 = attend, -1e9 = blocked

    for l in range(N_LAYERS):       # static unroll over encoder layers
        wrow = wrow_ref[l]          # (D, WROW) packed [W_qkv | W_o | W_1]
        wqkv = wrow[:, 0:3 * D]                     # (D, 3D), q-part pre-scaled
        wo_l = wrow[:, 3 * D:4 * D]                 # (D, D)
        w1_l = wrow[:, 4 * D:4 * D + DFF]           # (D, DFF)

        vecs = vecs_ref[l]          # (8, VW) packed small vectors for this layer
        bqkv = vecs[0:1, :]         # (1, 3D)   (q-part already scaled by 1/sqrt(dk))
        bo   = vecs[1:2, :D]
        b1   = vecs[2:3, :DFF]
        b2   = vecs[3:4, :D]
        ln1a = vecs[4:5, :D]
        ln1b = vecs[5:6, :D]
        ln2a = vecs[6:7, :D]
        ln2b = vecs[7:8, :D]

        # ---- sublayer 1: x + self_attn(norm(x))   (dropout == identity) ----
        xn = _layer_norm(x, ln1a, ln1b)
        qkv = jnp.dot(xn, wqkv, preferred_element_type=jnp.float32) + bqkv  # (BS, 3D)

        attn = jnp.zeros_like(x)
        for h in range(H):          # static unroll; static lane slices, no concat
            qh = qkv[:, 0 * D + h * DK: 0 * D + (h + 1) * DK]   # (BS, DK), pre-scaled
            kh = qkv[:, 1 * D + h * DK: 1 * D + (h + 1) * DK]   # (BS, DK)
            vh = qkv[:, 2 * D + h * DK: 2 * D + (h + 1) * DK]   # (BS, DK)
            # scores = qh @ kh.T  (contract on DK without materializing the transpose)
            scores = lax.dot_general(qh, kh, (((1,), (1,)), ((), ())),
                                     preferred_element_type=jnp.float32)
            scores = scores + mask_bias                # hoisted additive mask
            smax = jnp.max(scores, axis=-1, keepdims=True)
            e = jnp.exp(scores - smax)
            denom = jnp.sum(e, axis=-1, keepdims=True)
            p = e * pl.reciprocal(denom, approx=True)  # softmax over keys
            ctx = jnp.dot(p, vh, preferred_element_type=jnp.float32)       # (BS, DK)
            # fold the output projection per head: ctx @ W_o[h-th row block]
            attn = attn + jnp.dot(ctx, wo_l[h * DK:(h + 1) * DK, :],
                                  preferred_element_type=jnp.float32)      # (BS, D)
        x = x + attn + bo

        # ---- sublayer 2: x + ffn(norm(x)) ----
        xn = _layer_norm(x, ln2a, ln2b)
        hidden = jnp.dot(xn, w1_l, preferred_element_type=jnp.float32) + b1
        hidden = jnp.maximum(hidden, 0.0)              # ReLU
        x = x + jnp.dot(hidden, w2_ref[l], preferred_element_type=jnp.float32) + b2

    # ---- final Encoder LayerNorm ----
    out_ref[...] = _layer_norm(x, fln_ref[0:1, :], fln_ref[1:2, :])


def encoder_forward(x, mask, packed):
    """x: (B, S, D) f32, mask: (B, 1, S) with 1=keep / 0=pad, packed = pack_params(...)."""
    wrow, w2, vecs, fln = packed
    b, s, d = x.shape
    x2d = x.reshape(b * s, d)                          # (BS, D) slab; free reshape in XLA

    # Additive attention bias, built ONCE in the wrapper (pure JAX):
    # allow attention only within the same batch row and only to un-padded keys.
    batch_ids = jnp.arange(b * s) // s                 # (BS,)
    same_batch = batch_ids[:, None] == batch_ids[None, :]
    key_valid = (mask.reshape(b * s) > 0)              # (BS,)
    allowed = same_batch & key_valid[None, :]
    mask_bias = jnp.where(allowed, 0.0, NEG_INF).astype(jnp.float32)   # (BS, BS)

    out2d = pl.pallas_call(
        encoder_kernel,
        out_shape=jax.ShapeDtypeStruct((b * s, d), jnp.float32),
        # no grid: single invocation, every (tiny) operand fully resident in VMEM
    )(x2d, mask_bias, wrow, w2, vecs, fln)
    return out2d.reshape(b, s, d)


def init_params(key):
    """Unpacked parameters, mirroring the PyTorch module's Linears / LayerNorms."""
    ks = jax.random.split(key, 12)

    def lin_w(k, fan_in, shape):
        return jax.random.normal(k, shape, jnp.float32) / math.sqrt(fan_in)

    def lin_b(k, shape):
        return 0.01 * jax.random.normal(k, shape, jnp.float32)

    wq = lin_w(ks[0], D, (N_LAYERS, D, D));     bq = lin_b(ks[1], (N_LAYERS, 1, D))
    wk = lin_w(ks[2], D, (N_LAYERS, D, D));     bk = lin_b(ks[3], (N_LAYERS, 1, D))
    wv = lin_w(ks[4], D, (N_LAYERS, D, D));     bv = lin_b(ks[5], (N_LAYERS, 1, D))
    wo = lin_w(ks[6], D, (N_LAYERS, D, D));     bo = lin_b(ks[7], (N_LAYERS, 1, D))
    w1 = lin_w(ks[8], D, (N_LAYERS, D, DFF));   b1 = lin_b(ks[9], (N_LAYERS, 1, DFF))
    w2 = lin_w(ks[10], DFF, (N_LAYERS, DFF, D)); b2 = lin_b(ks[11], (N_LAYERS, 1, D))
    ln1a = jnp.ones((N_LAYERS, 1, D), jnp.float32); ln1b = jnp.zeros((N_LAYERS, 1, D), jnp.float32)
    ln2a = jnp.ones((N_LAYERS, 1, D), jnp.float32); ln2b = jnp.zeros((N_LAYERS, 1, D), jnp.float32)
    fna = jnp.ones((1, D), jnp.float32);            fnb = jnp.zeros((1, D), jnp.float32)

    return (wq, bq, wk, bk, wv, bv, wo, bo,
            ln1a, ln1b, w1, b1, w2, b2, ln2a, ln2b, fna, fnb)


def pack_params(params):
    """Host-side packing: fused (scaled) QKV weights + packed weight/vector slabs."""
    (wq, bq, wk, bk, wv, bv, wo, bo,
     ln1a, ln1b, w1, b1, w2, b2, ln2a, ln2b, fna, fnb) = params

    scale = 1.0 / math.sqrt(DK)
    wqkv = jnp.concatenate([wq * scale, wk, wv], axis=-1)      # (L, D, 3D)
    bqkv = jnp.concatenate([bq * scale, bk, bv], axis=-1)      # (L, 1, 3D)

    # one (L, D, 192) slab for every weight whose leading dim is D
    wrow = jnp.concatenate([wqkv, wo, w1], axis=-1)            # (L, D, WROW)

    def pad(v):                                                # (L,1,w) -> (L,1,VW)
        return jnp.pad(v, ((0, 0), (0, 0), (0, VW - v.shape[-1])))

    vecs = jnp.concatenate([pad(bqkv), pad(bo), pad(b1), pad(b2),
                            pad(ln1a), pad(ln1b), pad(ln2a), pad(ln2b)],
                           axis=1)                             # (L, 8, VW)
    fln = jnp.concatenate([fna, fnb], axis=0)                  # (2, D): [a; b]
    return (wrow, w2, vecs, fln)


def encoder_ref(x, mask, params):
    """Pure-JAX reference mirroring the PyTorch Encoder forward exactly (eval mode)."""
    (wq, bq, wk, bk, wv, bv, wo, bo,
     ln1a, ln1b, w1, b1, w2, b2, ln2a, ln2b, fna, fnb) = params

    def ln(t, a, b):
        mean = t.mean(-1, keepdims=True)
        std = jnp.std(t, axis=-1, keepdims=True, ddof=1)   # unbiased, like torch .std()
        return a * (t - mean) / (std + EPS) + b

    m = mask[:, None, :, :]                                # (B,1,1,S)
    for l in range(N_LAYERS):
        xn = ln(x, ln1a[l], ln1b[l])
        q = xn @ wq[l] + bq[l]
        k = xn @ wk[l] + bk[l]
        v = xn @ wv[l] + bv[l]
        split = lambda t: t.reshape(B, S, H, DK).transpose(0, 2, 1, 3)
        qh, kh, vh = split(q), split(k), split(v)
        scores = jnp.einsum('bhqd,bhkd->bhqk', qh, kh) / math.sqrt(DK)
        scores = jnp.where(m > 0, scores, NEG_INF)
        p = jax.nn.softmax(scores, axis=-1)
        attn = jnp.einsum('bhqk,bhkd->bhqd', p, vh).transpose(0, 2, 1, 3).reshape(B, S, D)
        x = x + (attn @ wo[l] + bo[l])
        xn = ln(x, ln2a[l], ln2b[l])
        x = x + (jnp.maximum(xn @ w1[l] + b1[l], 0.0) @ w2[l] + b2[l])
    return ln(x, fna, fnb)


if __name__ == "__main__":
    key = jax.random.PRNGKey(0)
    k_x, k_p = jax.random.split(key)

    x = jax.random.normal(k_x, (B, S, D), jnp.float32)
    # mask: (B, 1, S), 1 = valid token, 0 = padding (second example padded to length 5)
    lens = jnp.array([S, 5])
    mask = (jnp.arange(S)[None, :] < lens[:, None]).astype(jnp.float32)[:, None, :]

    params = init_params(k_p)
    packed = pack_params(params)

    out = encoder_forward(x, mask, packed)
    out = jax.block_until_ready(out)

    ref = encoder_ref(x, mask, params)
    np.testing.assert_allclose(np.asarray(out), np.asarray(ref), rtol=1e-2, atol=1e-2)

    print("KERNEL_OK")
</pallas_src>

<mosaic_0001>
module attributes {stable_mosaic.version = 11 : i64} {
  func.func @encoder_kernel(%arg0: memref<16x32xf32, #tpu.memory_space<vmem>>, %arg1: memref<16x16xf32, #tpu.memory_space<vmem>>, %arg2: memref<2x32x192xf32, #tpu.memory_space<vmem>>, %arg3: memref<2x64x32xf32, #tpu.memory_space<vmem>>, %arg4: memref<2x8x96xf32, #tpu.memory_space<vmem>>, %arg5: memref<2x32xf32, #tpu.memory_space<vmem>>, %arg6: memref<16x32xf32, #tpu.memory_space<vmem>>) attributes {dimension_semantics = [], scalar_prefetch = 0 : i64, scratch_operands = 0 : i64, tpu.core_type = #tpu.core_type<tc>} {
    %c0 = arith.constant 0 : index
    %c0_0 = arith.constant 0 : index
    %0 = vector.load %arg0[%c0, %c0_0] : memref<16x32xf32, #tpu.memory_space<vmem>>, vector<16x32xf32>
    %c0_1 = arith.constant 0 : index
    %c0_2 = arith.constant 0 : index
    %1 = vector.load %arg1[%c0_1, %c0_2] : memref<16x16xf32, #tpu.memory_space<vmem>>, vector<16x16xf32>
    %c0_3 = arith.constant 0 : index
    %c0_4 = arith.constant 0 : index
    %c0_5 = arith.constant 0 : index
    %2 = vector.load %arg2[%c0_3, %c0_4, %c0_5] : memref<2x32x192xf32, #tpu.memory_space<vmem>>, vector<1x32x192xf32>
    %3 = vector.shape_cast %2 : vector<1x32x192xf32> to vector<32x192xf32>
    %4 = vector.extract_strided_slice %3 {offsets = [0, 0], sizes = [32, 96], strides = [1, 1]} : vector<32x192xf32> to vector<32x96xf32>
    %5 = vector.extract_strided_slice %3 {offsets = [0, 96], sizes = [32, 32], strides = [1, 1]} : vector<32x192xf32> to vector<32x32xf32>
    %6 = vector.extract_strided_slice %3 {offsets = [0, 128], sizes = [32, 64], strides = [1, 1]} : vector<32x192xf32> to vector<32x64xf32>
    %c0_6 = arith.constant 0 : index
    %c0_7 = arith.constant 0 : index
    %c0_8 = arith.constant 0 : index
    %7 = vector.load %arg4[%c0_6, %c0_7, %c0_8] : memref<2x8x96xf32, #tpu.memory_space<vmem>>, vector<1x8x96xf32>
    %8 = vector.shape_cast %7 : vector<1x8x96xf32> to vector<8x96xf32>
    %9 = vector.extract_strided_slice %8 {offsets = [0, 0], sizes = [1, 96], strides = [1, 1]} : vector<8x96xf32> to vector<1x96xf32>
    %10 = vector.extract_strided_slice %8 {offsets = [1, 0], sizes = [1, 32], strides = [1, 1]} : vector<8x96xf32> to vector<1x32xf32>
    %11 = vector.extract_strided_slice %8 {offsets = [2, 0], sizes = [1, 64], strides = [1, 1]} : vector<8x96xf32> to vector<1x64xf32>
    %12 = vector.extract_strided_slice %8 {offsets = [3, 0], sizes = [1, 32], strides = [1, 1]} : vector<8x96xf32> to vector<1x32xf32>
    %13 = vector.extract_strided_slice %8 {offsets = [4, 0], sizes = [1, 32], strides = [1, 1]} : vector<8x96xf32> to vector<1x32xf32>
    %14 = vector.extract_strided_slice %8 {offsets = [5, 0], sizes = [1, 32], strides = [1, 1]} : vector<8x96xf32> to vector<1x32xf32>
    %15 = vector.extract_strided_slice %8 {offsets = [6, 0], sizes = [1, 32], strides = [1, 1]} : vector<8x96xf32> to vector<1x32xf32>
    %16 = vector.extract_strided_slice %8 {offsets = [7, 0], sizes = [1, 32], strides = [1, 1]} : vector<8x96xf32> to vector<1x32xf32>
    %cst = arith.constant dense<0.000000e+00> : vector<16xf32>
    %17 = vector.multi_reduction <add>, %0, %cst [1] : vector<16x32xf32> to vector<16xf32>
    %18 = vector.shape_cast %17 : vector<16xf32> to vector<16x1xf32>
    %cst_9 = arith.constant 3.200000e+01 : f32
    %19 = vector.broadcast %cst_9 : f32 to vector<16x1xf32>
    %20 = arith.divf %18, %19 : vector<16x1xf32>
    %21 = vector.broadcast %20 : vector<16x1xf32> to vector<16x32xf32>
    %22 = arith.subf %0, %21 : vector<16x32xf32>
    %23 = arith.mulf %22, %22 : vector<16x32xf32>
    %cst_10 = arith.constant dense<0.000000e+00> : vector<16xf32>
    %24 = vector.multi_reduction <add>, %23, %cst_10 [1] : vector<16x32xf32> to vector<16xf32>
    %25 = vector.shape_cast %24 : vector<16xf32> to vector<16x1xf32>
    %cst_11 = arith.constant 0.0322580636 : f32
    %26 = vector.broadcast %cst_11 : f32 to vector<16x1xf32>
    %27 = arith.mulf %25, %26 : vector<16x1xf32>
    %28 = math.sqrt %27 : vector<16x1xf32>
    %cst_12 = arith.constant 9.99999997E-7 : f32
    %29 = vector.broadcast %cst_12 : f32 to vector<16x1xf32>
    %30 = arith.addf %28, %29 : vector<16x1xf32>
    %31 = tpu.reciprocal %30 {approx = true} : vector<16x1xf32> -> vector<16x1xf32>
    %32 = vector.broadcast %13 : vector<1x32xf32> to vector<16x32xf32>
    %33 = arith.mulf %32, %22 : vector<16x32xf32>
    %34 = vector.broadcast %31 : vector<16x1xf32> to vector<16x32xf32>
    %35 = arith.mulf %33, %34 : vector<16x32xf32>
    %36 = vector.broadcast %14 : vector<1x32xf32> to vector<16x32xf32>
    %37 = arith.addf %35, %36 : vector<16x32xf32>
    %cst_13 = arith.constant dense<0.000000e+00> : vector<16x96xf32>
    %38 = tpu.matmul %37, %4, %cst_13 {dimension_numbers = #tpu.dot_dimension_numbers<[1], [0], [0], [1], [0, 0, 1, 1], [], []>} : vector<16x32xf32>, vector<32x96xf32>, vector<16x96xf32> -> vector<16x96xf32>
    %39 = vector.broadcast %9 : vector<1x96xf32> to vector<16x96xf32>
    %40 = arith.addf %38, %39 : vector<16x96xf32>
    %cst_14 = arith.constant 0.000000e+00 : f32
    %41 = vector.broadcast %cst_14 : f32 to vector<16x32xf32>
    %42 = vector.extract_strided_slice %40 {offsets = [0, 0], sizes = [16, 8], strides = [1, 1]} : vector<16x96xf32> to vector<16x8xf32>
    %43 = vector.extract_strided_slice %40 {offsets = [0, 32], sizes = [16, 8], strides = [1, 1]} : vector<16x96xf32> to vector<16x8xf32>
    %44 = vector.extract_strided_slice %40 {offsets = [0, 64], sizes = [16, 8], strides = [1, 1]} : vector<16x96xf32> to vector<16x8xf32>
    %cst_15 = arith.constant dense<0.000000e+00> : vector<16x16xf32>
    %45 = tpu.matmul %42, %43, %cst_15 {dimension_numbers = #tpu.dot_dimension_numbers<[1], [1], [0], [0], [0, 0, 1, 0], [], []>} : vector<16x8xf32>, vector<16x8xf32>, vector<16x16xf32> -> vector<16x16xf32>
    %46 = arith.addf %45, %1 : vector<16x16xf32>
    %cst_16 = arith.constant dense<0xFF800000> : vector<16xf32>
    %47 = vector.multi_reduction <maximumf>, %46, %cst_16 [1] : vector<16x16xf32> to vector<16xf32>
    %48 = vector.shape_cast %47 : vector<16xf32> to vector<16x1xf32>
    %49 = vector.broadcast %48 : vector<16x1xf32> to vector<16x16xf32>
    %50 = arith.subf %46, %49 : vector<16x16xf32>
    %51 = math.exp %50 : vector<16x16xf32>
    %cst_17 = arith.constant dense<0.000000e+00> : vector<16xf32>
    %52 = vector.multi_reduction <add>, %51, %cst_17 [1] : vector<16x16xf32> to vector<16xf32>
    %53 = vector.shape_cast %52 : vector<16xf32> to vector<16x1xf32>
    %54 = tpu.reciprocal %53 {approx = true} : vector<16x1xf32> -> vector<16x1xf32>
    %55 = vector.broadcast %54 : vector<16x1xf32> to vector<16x16xf32>
    %56 = arith.mulf %51, %55 : vector<16x16xf32>
    %cst_18 = arith.constant dense<0.000000e+00> : vector<16x8xf32>
    %57 = tpu.matmul %56, %44, %cst_18 {dimension_numbers = #tpu.dot_dimension_numbers<[1], [0], [0], [1], [0, 0, 1, 1], [], []>} : vector<16x16xf32>, vector<16x8xf32>, vector<16x8xf32> -> vector<16x8xf32>
    %58 = vector.extract_strided_slice %5 {offsets = [0, 0], sizes = [8, 32], strides = [1, 1]} : vector<32x32xf32> to vector<8x32xf32>
    %cst_19 = arith.constant dense<0.000000e+00> : vector<16x32xf32>
    %59 = tpu.matmul %57, %58, %cst_19 {dimension_numbers = #tpu.dot_dimension_numbers<[1], [0], [0], [1], [0, 0, 1, 1], [], []>} : vector<16x8xf32>, vector<8x32xf32>, vector<16x32xf32> -> vector<16x32xf32>
    %60 = arith.addf %41, %59 : vector<16x32xf32>
    %61 = vector.extract_strided_slice %40 {offsets = [0, 8], sizes = [16, 8], strides = [1, 1]} : vector<16x96xf32> to vector<16x8xf32>
    %62 = vector.extract_strided_slice %40 {offsets = [0, 40], sizes = [16, 8], strides = [1, 1]} : vector<16x96xf32> to vector<16x8xf32>
    %63 = vector.extract_strided_slice %40 {offsets = [0, 72], sizes = [16, 8], strides = [1, 1]} : vector<16x96xf32> to vector<16x8xf32>
    %cst_20 = arith.constant dense<0.000000e+00> : vector<16x16xf32>
    %64 = tpu.matmul %61, %62, %cst_20 {dimension_numbers = #tpu.dot_dimension_numbers<[1], [1], [0], [0], [0, 0, 1, 0], [], []>} : vector<16x8xf32>, vector<16x8xf32>, vector<16x16xf32> -> vector<16x16xf32>
    %65 = arith.addf %64, %1 : vector<16x16xf32>
    %cst_21 = arith.constant dense<0xFF800000> : vector<16xf32>
    %66 = vector.multi_reduction <maximumf>, %65, %cst_21 [1] : vector<16x16xf32> to vector<16xf32>
    %67 = vector.shape_cast %66 : vector<16xf32> to vector<16x1xf32>
    %68 = vector.broadcast %67 : vector<16x1xf32> to vector<16x16xf32>
    %69 = arith.subf %65, %68 : vector<16x16xf32>
    %70 = math.exp %69 : vector<16x16xf32>
    %cst_22 = arith.constant dense<0.000000e+00> : vector<16xf32>
    %71 = vector.multi_reduction <add>, %70, %cst_22 [1] : vector<16x16xf32> to vector<16xf32>
    %72 = vector.shape_cast %71 : vector<16xf32> to vector<16x1xf32>
    %73 = tpu.reciprocal %72 {approx = true} : vector<16x1xf32> -> vector<16x1xf32>
    %74 = vector.broadcast %73 : vector<16x1xf32> to vector<16x16xf32>
    %75 = arith.mulf %70, %74 : vector<16x16xf32>
    %cst_23 = arith.constant dense<0.000000e+00> : vector<16x8xf32>
    %76 = tpu.matmul %75, %63, %cst_23 {dimension_numbers = #tpu.dot_dimension_numbers<[1], [0], [0], [1], [0, 0, 1, 1], [], []>} : vector<16x16xf32>, vector<16x8xf32>, vector<16x8xf32> -> vector<16x8xf32>
    %77 = vector.extract_strided_slice %5 {offsets = [8, 0], sizes = [8, 32], strides = [1, 1]} : vector<32x32xf32> to vector<8x32xf32>
    %cst_24 = arith.constant dense<0.000000e+00> : vector<16x32xf32>
    %78 = tpu.matmul %76, %77, %cst_24 {dimension_numbers = #tpu.dot_dimension_numbers<[1], [0], [0], [1], [0, 0, 1, 1], [], []>} : vector<16x8xf32>, vector<8x32xf32>, vector<16x32xf32> -> vector<16x32xf32>
    %79 = arith.addf %60, %78 : vector<16x32xf32>
    %80 = vector.extract_strided_slice %40 {offsets = [0, 16], sizes = [16, 8], strides = [1, 1]} : vector<16x96xf32> to vector<16x8xf32>
    %81 = vector.extract_strided_slice %40 {offsets = [0, 48], sizes = [16, 8], strides = [1, 1]} : vector<16x96xf32> to vector<16x8xf32>
    %82 = vector.extract_strided_slice %40 {offsets = [0, 80], sizes = [16, 8], strides = [1, 1]} : vector<16x96xf32> to vector<16x8xf32>
    %cst_25 = arith.constant dense<0.000000e+00> : vector<16x16xf32>
    %83 = tpu.matmul %80, %81, %cst_25 {dimension_numbers = #tpu.dot_dimension_numbers<[1], [1], [0], [0], [0, 0, 1, 0], [], []>} : vector<16x8xf32>, vector<16x8xf32>, vector<16x16xf32> -> vector<16x16xf32>
    %84 = arith.addf %83, %1 : vector<16x16xf32>
    %cst_26 = arith.constant dense<0xFF800000> : vector<16xf32>
    %85 = vector.multi_reduction <maximumf>, %84, %cst_26 [1] : vector<16x16xf32> to vector<16xf32>
    %86 = vector.shape_cast %85 : vector<16xf32> to vector<16x1xf32>
    %87 = vector.broadcast %86 : vector<16x1xf32> to vector<16x16xf32>
    %88 = arith.subf %84, %87 : vector<16x16xf32>
    %89 = math.exp %88 : vector<16x16xf32>
    %cst_27 = arith.constant dense<0.000000e+00> : vector<16xf32>
    %90 = vector.multi_reduction <add>, %89, %cst_27 [1] : vector<16x16xf32> to vector<16xf32>
    %91 = vector.shape_cast %90 : vector<16xf32> to vector<16x1xf32>
    %92 = tpu.reciprocal %91 {approx = true} : vector<16x1xf32> -> vector<16x1xf32>
    %93 = vector.broadcast %92 : vector<16x1xf32> to vector<16x16xf32>
    %94 = arith.mulf %89, %93 : vector<16x16xf32>
    %cst_28 = arith.constant dense<0.000000e+00> : vector<16x8xf32>
    %95 = tpu.matmul %94, %82, %cst_28 {dimension_numbers = #tpu.dot_dimension_numbers<[1], [0], [0], [1], [0, 0, 1, 1], [], []>} : vector<16x16xf32>, vector<16x8xf32>, vector<16x8xf32> -> vector<16x8xf32>
    %96 = vector.extract_strided_slice %5 {offsets = [16, 0], sizes = [8, 32], strides = [1, 1]} : vector<32x32xf32> to vector<8x32xf32>
    %cst_29 = arith.constant dense<0.000000e+00> : vector<16x32xf32>
    %97 = tpu.matmul %95, %96, %cst_29 {dimension_numbers = #tpu.dot_dimension_numbers<[1], [0], [0], [1], [0, 0, 1, 1], [], []>} : vector<16x8xf32>, vector<8x32xf32>, vector<16x32xf32> -> vector<16x32xf32>
    %98 = arith.addf %79, %97 : vector<16x32xf32>
    %99 = vector.extract_strided_slice %40 {offsets = [0, 24], sizes = [16, 8], strides = [1, 1]} : vector<16x96xf32> to vector<16x8xf32>
    %100 = vector.extract_strided_slice %40 {offsets = [0, 56], sizes = [16, 8], strides = [1, 1]} : vector<16x96xf32> to vector<16x8xf32>
    %101 = vector.extract_strided_slice %40 {offsets = [0, 88], sizes = [16, 8], strides = [1, 1]} : vector<16x96xf32> to vector<16x8xf32>
    %cst_30 = arith.constant dense<0.000000e+00> : vector<16x16xf32>
    %102 = tpu.matmul %99, %100, %cst_30 {dimension_numbers = #tpu.dot_dimension_numbers<[1], [1], [0], [0], [0, 0, 1, 0], [], []>} : vector<16x8xf32>, vector<16x8xf32>, vector<16x16xf32> -> vector<16x16xf32>
    %103 = arith.addf %102, %1 : vector<16x16xf32>
    %cst_31 = arith.constant dense<0xFF800000> : vector<16xf32>
    %104 = vector.multi_reduction <maximumf>, %103, %cst_31 [1] : vector<16x16xf32> to vector<16xf32>
    %105 = vector.shape_cast %104 : vector<16xf32> to vector<16x1xf32>
    %106 = vector.broadcast %105 : vector<16x1xf32> to vector<16x16xf32>
    %107 = arith.subf %103, %106 : vector<16x16xf32>
    %108 = math.exp %107 : vector<16x16xf32>
    %cst_32 = arith.constant dense<0.000000e+00> : vector<16xf32>
    %109 = vector.multi_reduction <add>, %108, %cst_32 [1] : vector<16x16xf32> to vector<16xf32>
    %110 = vector.shape_cast %109 : vector<16xf32> to vector<16x1xf32>
    %111 = tpu.reciprocal %110 {approx = true} : vector<16x1xf32> -> vector<16x1xf32>
    %112 = vector.broadcast %111 : vector<16x1xf32> to vector<16x16xf32>
    %113 = arith.mulf %108, %112 : vector<16x16xf32>
    %cst_33 = arith.constant dense<0.000000e+00> : vector<16x8xf32>
    %114 = tpu.matmul %113, %101, %cst_33 {dimension_numbers = #tpu.dot_dimension_numbers<[1], [0], [0], [1], [0, 0, 1, 1], [], []>} : vector<16x16xf32>, vector<16x8xf32>, vector<16x8xf32> -> vector<16x8xf32>
    %115 = vector.extract_strided_slice %5 {offsets = [24, 0], sizes = [8, 32], strides = [1, 1]} : vector<32x32xf32> to vector<8x32xf32>
    %cst_34 = arith.constant dense<0.000000e+00> : vector<16x32xf32>
    %116 = tpu.matmul %114, %115, %cst_34 {dimension_numbers = #tpu.dot_dimension_numbers<[1], [0], [0], [1], [0, 0, 1, 1], [], []>} : vector<16x8xf32>, vector<8x32xf32>, vector<16x32xf32> -> vector<16x32xf32>
    %117 = arith.addf %98, %116 : vector<16x32xf32>
    %118 = arith.addf %0, %117 : vector<16x32xf32>
    %119 = vector.broadcast %10 : vector<1x32xf32> to vector<16x32xf32>
    %120 = arith.addf %118, %119 : vector<16x32xf32>
    %cst_35 = arith.constant dense<0.000000e+00> : vector<16xf32>
    %121 = vector.multi_reduction <add>, %120, %cst_35 [1] : vector<16x32xf32> to vector<16xf32>
    %122 = vector.shape_cast %121 : vector<16xf32> to vector<16x1xf32>
    %cst_36 = arith.constant 3.200000e+01 : f32
    %123 = vector.broadcast %cst_36 : f32 to vector<16x1xf32>
    %124 = arith.divf %122, %123 : vector<16x1xf32>
    %125 = vector.broadcast %124 : vector<16x1xf32> to vector<16x32xf32>
    %126 = arith.subf %120, %125 : vector<16x32xf32>
    %127 = arith.mulf %126, %126 : vector<16x32xf32>
    %cst_37 = arith.constant dense<0.000000e+00> : vector<16xf32>
    %128 = vector.multi_reduction <add>, %127, %cst_37 [1] : vector<16x32xf32> to vector<16xf32>
    %129 = vector.shape_cast %128 : vector<16xf32> to vector<16x1xf32>
    %cst_38 = arith.constant 0.0322580636 : f32
    %130 = vector.broadcast %cst_38 : f32 to vector<16x1xf32>
    %131 = arith.mulf %129, %130 : vector<16x1xf32>
    %132 = math.sqrt %131 : vector<16x1xf32>
    %cst_39 = arith.constant 9.99999997E-7 : f32
    %133 = vector.broadcast %cst_39 : f32 to vector<16x1xf32>
    %134 = arith.addf %132, %133 : vector<16x1xf32>
    %135 = tpu.reciprocal %134 {approx = true} : vector<16x1xf32> -> vector<16x1xf32>
    %136 = vector.broadcast %15 : vector<1x32xf32> to vector<16x32xf32>
    %137 = arith.mulf %136, %126 : vector<16x32xf32>
    %138 = vector.broadcast %135 : vector<16x1xf32> to vector<16x32xf32>
    %139 = arith.mulf %137, %138 : vector<16x32xf32>
    %140 = vector.broadcast %16 : vector<1x32xf32> to vector<16x32xf32>
    %141 = arith.addf %139, %140 : vector<16x32xf32>
    %cst_40 = arith.constant dense<0.000000e+00> : vector<16x64xf32>
    %142 = tpu.matmul %141, %6, %cst_40 {dimension_numbers = #tpu.dot_dimension_numbers<[1], [0], [0], [1], [0, 0, 1, 1], [], []>} : vector<16x32xf32>, vector<32x64xf32>, vector<16x64xf32> -> vector<16x64xf32>
    %143 = vector.broadcast %11 : vector<1x64xf32> to vector<16x64xf32>
    %144 = arith.addf %142, %143 : vector<16x64xf32>
    %cst_41 = arith.constant 0.000000e+00 : f32
    %145 = vector.broadcast %cst_41 : f32 to vector<16x64xf32>
    %146 = arith.maximumf %144, %145 : vector<16x64xf32>
    %c0_42 = arith.constant 0 : index
    %c0_43 = arith.constant 0 : index
    %c0_44 = arith.constant 0 : index
    %147 = vector.load %arg3[%c0_42, %c0_43, %c0_44] : memref<2x64x32xf32, #tpu.memory_space<vmem>>, vector<1x64x32xf32>
    %148 = vector.shape_cast %147 : vector<1x64x32xf32> to vector<64x32xf32>
    %cst_45 = arith.constant dense<0.000000e+00> : vector<16x32xf32>
    %149 = tpu.matmul %146, %148, %cst_45 {dimension_numbers = #tpu.dot_dimension_numbers<[1], [0], [0], [1], [0, 0, 1, 1], [], []>} : vector<16x64xf32>, vector<64x32xf32>, vector<16x32xf32> -> vector<16x32xf32>
    %150 = arith.addf %120, %149 : vector<16x32xf32>
    %151 = vector.broadcast %12 : vector<1x32xf32> to vector<16x32xf32>
    %152 = arith.addf %150, %151 : vector<16x32xf32>
    %c1 = arith.constant 1 : index
    %c0_46 = arith.constant 0 : index
    %c0_47 = arith.constant 0 : index
    %153 = vector.load %arg2[%c1, %c0_46, %c0_47] : memref<2x32x192xf32, #tpu.memory_space<vmem>>, vector<1x32x192xf32>
    %154 = vector.shape_cast %153 : vector<1x32x192xf32> to vector<32x192xf32>
    %155 = vector.extract_strided_slice %154 {offsets = [0, 0], sizes = [32, 96], strides = [1, 1]} : vector<32x192xf32> to vector<32x96xf32>
    %156 = vector.extract_strided_slice %154 {offsets = [0, 96], sizes = [32, 32], strides = [1, 1]} : vector<32x192xf32> to vector<32x32xf32>
    %157 = vector.extract_strided_slice %154 {offsets = [0, 128], sizes = [32, 64], strides = [1, 1]} : vector<32x192xf32> to vector<32x64xf32>
    %c1_48 = arith.constant 1 : index
    %c0_49 = arith.constant 0 : index
    %c0_50 = arith.constant 0 : index
    %158 = vector.load %arg4[%c1_48, %c0_49, %c0_50] : memref<2x8x96xf32, #tpu.memory_space<vmem>>, vector<1x8x96xf32>
    %159 = vector.shape_cast %158 : vector<1x8x96xf32> to vector<8x96xf32>
    %160 = vector.extract_strided_slice %159 {offsets = [0, 0], sizes = [1, 96], strides = [1, 1]} : vector<8x96xf32> to vector<1x96xf32>
    %161 = vector.extract_strided_slice %159 {offsets = [1, 0], sizes = [1, 32], strides = [1, 1]} : vector<8x96xf32> to vector<1x32xf32>
    %162 = vector.extract_strided_slice %159 {offsets = [2, 0], sizes = [1, 64], strides = [1, 1]} : vector<8x96xf32> to vector<1x64xf32>
    %163 = vector.extract_strided_slice %159 {offsets = [3, 0], sizes = [1, 32], strides = [1, 1]} : vector<8x96xf32> to vector<1x32xf32>
    %164 = vector.extract_strided_slice %159 {offsets = [4, 0], sizes = [1, 32], strides = [1, 1]} : vector<8x96xf32> to vector<1x32xf32>
    %165 = vector.extract_strided_slice %159 {offsets = [5, 0], sizes = [1, 32], strides = [1, 1]} : vector<8x96xf32> to vector<1x32xf32>
    %166 = vector.extract_strided_slice %159 {offsets = [6, 0], sizes = [1, 32], strides = [1, 1]} : vector<8x96xf32> to vector<1x32xf32>
    %167 = vector.extract_strided_slice %159 {offsets = [7, 0], sizes = [1, 32], strides = [1, 1]} : vector<8x96xf32> to vector<1x32xf32>
    %cst_51 = arith.constant dense<0.000000e+00> : vector<16xf32>
    %168 = vector.multi_reduction <add>, %152, %cst_51 [1] : vector<16x32xf32> to vector<16xf32>
    %169 = vector.shape_cast %168 : vector<16xf32> to vector<16x1xf32>
    %cst_52 = arith.constant 3.200000e+01 : f32
    %170 = vector.broadcast %cst_52 : f32 to vector<16x1xf32>
    %171 = arith.divf %169, %170 : vector<16x1xf32>
    %172 = vector.broadcast %171 : vector<16x1xf32> to vector<16x32xf32>
    %173 = arith.subf %152, %172 : vector<16x32xf32>
    %174 = arith.mulf %173, %173 : vector<16x32xf32>
    %cst_53 = arith.constant dense<0.000000e+00> : vector<16xf32>
    %175 = vector.multi_reduction <add>, %174, %cst_53 [1] : vector<16x32xf32> to vector<16xf32>
    %176 = vector.shape_cast %175 : vector<16xf32> to vector<16x1xf32>
    %cst_54 = arith.constant 0.0322580636 : f32
    %177 = vector.broadcast %cst_54 : f32 to vector<16x1xf32>
    %178 = arith.mulf %176, %177 : vector<16x1xf32>
    %179 = math.sqrt %178 : vector<16x1xf32>
    %cst_55 = arith.constant 9.99999997E-7 : f32
    %180 = vector.broadcast %cst_55 : f32 to vector<16x1xf32>
    %181 = arith.addf %179, %180 : vector<16x1xf32>
    %182 = tpu.reciprocal %181 {approx = true} : vector<16x1xf32> -> vector<16x1xf32>
    %183 = vector.broadcast %164 : vector<1x32xf32> to vector<16x32xf32>
    %184 = arith.mulf %183, %173 : vector<16x32xf32>
    %185 = vector.broadcast %182 : vector<16x1xf32> to vector<16x32xf32>
    %186 = arith.mulf %184, %185 : vector<16x32xf32>
    %187 = vector.broadcast %165 : vector<1x32xf32> to vector<16x32xf32>
    %188 = arith.addf %186, %187 : vector<16x32xf32>
    %cst_56 = arith.constant dense<0.000000e+00> : vector<16x96xf32>
    %189 = tpu.matmul %188, %155, %cst_56 {dimension_numbers = #tpu.dot_dimension_numbers<[1], [0], [0], [1], [0, 0, 1, 1], [], []>} : vector<16x32xf32>, vector<32x96xf32>, vector<16x96xf32> -> vector<16x96xf32>
    %190 = vector.broadcast %160 : vector<1x96xf32> to vector<16x96xf32>
    %191 = arith.addf %189, %190 : vector<16x96xf32>
    %cst_57 = arith.constant 0.000000e+00 : f32
    %192 = vector.broadcast %cst_57 : f32 to vector<16x32xf32>
    %193 = vector.extract_strided_slice %191 {offsets = [0, 0], sizes = [16, 8], strides = [1, 1]} : vector<16x96xf32> to vector<16x8xf32>
    %194 = vector.extract_strided_slice %191 {offsets = [0, 32], sizes = [16, 8], strides = [1, 1]} : vector<16x96xf32> to vector<16x8xf32>
    %195 = vector.extract_strided_slice %191 {offsets = [0, 64], sizes = [16, 8], strides = [1, 1]} : vector<16x96xf32> to vector<16x8xf32>
    %cst_58 = arith.constant dense<0.000000e+00> : vector<16x16xf32>
    %196 = tpu.matmul %193, %194, %cst_58 {dimension_numbers = #tpu.dot_dimension_numbers<[1], [1], [0], [0], [0, 0, 1, 0], [], []>} : vector<16x8xf32>, vector<16x8xf32>, vector<16x16xf32> -> vector<16x16xf32>
    %197 = arith.addf %196, %1 : vector<16x16xf32>
    %cst_59 = arith.constant dense<0xFF800000> : vector<16xf32>
    %198 = vector.multi_reduction <maximumf>, %197, %cst_59 [1] : vector<16x16xf32> to vector<16xf32>
    %199 = vector.shape_cast %198 : vector<16xf32> to vector<16x1xf32>
    %200 = vector.broadcast %199 : vector<16x1xf32> to vector<16x16xf32>
    %201 = arith.subf %197, %200 : vector<16x16xf32>
    %202 = math.exp %201 : vector<16x16xf32>
    %cst_60 = arith.constant dense<0.000000e+00> : vector<16xf32>
    %203 = vector.multi_reduction <add>, %202, %cst_60 [1] : vector<16x16xf32> to vector<16xf32>
    %204 = vector.shape_cast %203 : vector<16xf32> to vector<16x1xf32>
    %205 = tpu.reciprocal %204 {approx = true} : vector<16x1xf32> -> vector<16x1xf32>
    %206 = vector.broadcast %205 : vector<16x1xf32> to vector<16x16xf32>
    %207 = arith.mulf %202, %206 : vector<16x16xf32>
    %cst_61 = arith.constant dense<0.000000e+00> : vector<16x8xf32>
    %208 = tpu.matmul %207, %195, %cst_61 {dimension_numbers = #tpu.dot_dimension_numbers<[1], [0], [0], [1], [0, 0, 1, 1], [], []>} : vector<16x16xf32>, vector<16x8xf32>, vector<16x8xf32> -> vector<16x8xf32>
    %209 = vector.extract_strided_slice %156 {offsets = [0, 0], sizes = [8, 32], strides = [1, 1]} : vector<32x32xf32> to vector<8x32xf32>
    %cst_62 = arith.constant dense<0.000000e+00> : vector<16x32xf32>
    %210 = tpu.matmul %208, %209, %cst_62 {dimension_numbers = #tpu.dot_dimension_numbers<[1], [0], [0], [1], [0, 0, 1, 1], [], []>} : vector<16x8xf32>, vector<8x32xf32>, vector<16x32xf32> -> vector<16x32xf32>
    %211 = arith.addf %192, %210 : vector<16x32xf32>
    %212 = vector.extract_strided_slice %191 {offsets = [0, 8], sizes = [16, 8], strides = [1, 1]} : vector<16x96xf32> to vector<16x8xf32>
    %213 = vector.extract_strided_slice %191 {offsets = [0, 40], sizes = [16, 8], strides = [1, 1]} : vector<16x96xf32> to vector<16x8xf32>
    %214 = vector.extract_strided_slice %191 {offsets = [0, 72], sizes = [16, 8], strides = [1, 1]} : vector<16x96xf32> to vector<16x8xf32>
    %cst_63 = arith.constant dense<0.000000e+00> : vector<16x16xf32>
    %215 = tpu.matmul %212, %213, %cst_63 {dimension_numbers = #tpu.dot_dimension_numbers<[1], [1], [0], [0], [0, 0, 1, 0], [], []>} : vector<16x8xf32>, vector<16x8xf32>, vector<16x16xf32> -> vector<16x16xf32>
    %216 = arith.addf %215, %1 : vector<16x16xf32>
    %cst_64 = arith.constant dense<0xFF800000> : vector<16xf32>
    %217 = vector.multi_reduction <maximumf>, %216, %cst_64 [1] : vector<16x16xf32> to vector<16xf32>
    %218 = vector.shape_cast %217 : vector<16xf32> to vector<16x1xf32>
    %219 = vector.broadcast %218 : vector<16x1xf32> to vector<16x16xf32>
    %220 = arith.subf %216, %219 : vector<16x16xf32>
    %221 = math.exp %220 : vector<16x16xf32>
    %cst_65 = arith.constant dense<0.000000e+00> : vector<16xf32>
    %222 = vector.multi_reduction <add>, %221, %cst_65 [1] : vector<16x16xf32> to vector<16xf32>
    %223 = vector.shape_cast %222 : vector<16xf32> to vector<16x1xf32>
    %224 = tpu.reciprocal %223 {approx = true} : vector<16x1xf32> -> vector<16x1xf32>
    %225 = vector.broadcast %224 : vector<16x1xf32> to vector<16x16xf32>
    %226 = arith.mulf %221, %225 : vector<16x16xf32>
    %cst_66 = arith.constant dense<0.000000e+00> : vector<16x8xf32>
    %227 = tpu.matmul %226, %214, %cst_66 {dimension_numbers = #tpu.dot_dimension_numbers<[1], [0], [0], [1], [0, 0, 1, 1], [], []>} : vector<16x16xf32>, vector<16x8xf32>, vector<16x8xf32> -> vector<16x8xf32>
    %228 = vector.extract_strided_slice %156 {offsets = [8, 0], sizes = [8, 32], strides = [1, 1]} : vector<32x32xf32> to vector<8x32xf32>
    %cst_67 = arith.constant dense<0.000000e+00> : vector<16x32xf32>
    %229 = tpu.matmul %227, %228, %cst_67 {dimension_numbers = #tpu.dot_dimension_numbers<[1], [0], [0], [1], [0, 0, 1, 1], [], []>} : vector<16x8xf32>, vector<8x32xf32>, vector<16x32xf32> -> vector<16x32xf32>
    %230 = arith.addf %211, %229 : vector<16x32xf32>
    %231 = vector.extract_strided_slice %191 {offsets = [0, 16], sizes = [16, 8], strides = [1, 1]} : vector<16x96xf32> to vector<16x8xf32>
    %232 = vector.extract_strided_slice %191 {offsets = [0, 48], sizes = [16, 8], strides = [1, 1]} : vector<16x96xf32> to vector<16x8xf32>
    %233 = vector.extract_strided_slice %191 {offsets = [0, 80], sizes = [16, 8], strides = [1, 1]} : vector<16x96xf32> to vector<16x8xf32>
    %cst_68 = arith.constant dense<0.000000e+00> : vector<16x16xf32>
    %234 = tpu.matmul %231, %232, %cst_68 {dimension_numbers = #tpu.dot_dimension_numbers<[1], [1], [0], [0], [0, 0, 1, 0], [], []>} : vector<16x8xf32>, vector<16x8xf32>, vector<16x16xf32> -> vector<16x16xf32>
    %235 = arith.addf %234, %1 : vector<16x16xf32>
    %cst_69 = arith.constant dense<0xFF800000> : vector<16xf32>
    %236 = vector.multi_reduction <maximumf>, %235, %cst_69 [1] : vector<16x16xf32> to vector<16xf32>
    %237 = vector.shape_cast %236 : vector<16xf32> to vector<16x1xf32>
    %238 = vector.broadcast %237 : vector<16x1xf32> to vector<16x16xf32>
    %239 = arith.subf %235, %238 : vector<16x16xf32>
    %240 = math.exp %239 : vector<16x16xf32>
    %cst_70 = arith.constant dense<0.000000e+00> : vector<16xf32>
    %241 = vector.multi_reduction <add>, %240, %cst_70 [1] : vector<16x16xf32> to vector<16xf32>
    %242 = vector.shape_cast %241 : vector<16xf32> to vector<16x1xf32>
    %243 = tpu.reciprocal %242 {approx = true} : vector<16x1xf32> -> vector<16x1xf32>
    %244 = vector.broadcast %243 : vector<16x1xf32> to vector<16x16xf32>
    %245 = arith.mulf %240, %244 : vector<16x16xf32>
    %cst_71 = arith.constant dense<0.000000e+00> : vector<16x8xf32>
    %246 = tpu.matmul %245, %233, %cst_71 {dimension_numbers = #tpu.dot_dimension_numbers<[1], [0], [0], [1], [0, 0, 1, 1], [], []>} : vector<16x16xf32>, vector<16x8xf32>, vector<16x8xf32> -> vector<16x8xf32>
    %247 = vector.extract_strided_slice %156 {offsets = [16, 0], sizes = [8, 32], strides = [1, 1]} : vector<32x32xf32> to vector<8x32xf32>
    %cst_72 = arith.constant dense<0.000000e+00> : vector<16x32xf32>
    %248 = tpu.matmul %246, %247, %cst_72 {dimension_numbers = #tpu.dot_dimension_numbers<[1], [0], [0], [1], [0, 0, 1, 1], [], []>} : vector<16x8xf32>, vector<8x32xf32>, vector<16x32xf32> -> vector<16x32xf32>
    %249 = arith.addf %230, %248 : vector<16x32xf32>
    %250 = vector.extract_strided_slice %191 {offsets = [0, 24], sizes = [16, 8], strides = [1, 1]} : vector<16x96xf32> to vector<16x8xf32>
    %251 = vector.extract_strided_slice %191 {offsets = [0, 56], sizes = [16, 8], strides = [1, 1]} : vector<16x96xf32> to vector<16x8xf32>
    %252 = vector.extract_strided_slice %191 {offsets = [0, 88], sizes = [16, 8], strides = [1, 1]} : vector<16x96xf32> to vector<16x8xf32>
    %cst_73 = arith.constant dense<0.000000e+00> : vector<16x16xf32>
    %253 = tpu.matmul %250, %251, %cst_73 {dimension_numbers = #tpu.dot_dimension_numbers<[1], [1], [0], [0], [0, 0, 1, 0], [], []>} : vector<16x8xf32>, vector<16x8xf32>, vector<16x16xf32> -> vector<16x16xf32>
    %254 = arith.addf %253, %1 : vector<16x16xf32>
    %cst_74 = arith.constant dense<0xFF800000> : vector<16xf32>
    %255 = vector.multi_reduction <maximumf>, %254, %cst_74 [1] : vector<16x16xf32> to vector<16xf32>
    %256 = vector.shape_cast %255 : vector<16xf32> to vector<16x1xf32>
    %257 = vector.broadcast %256 : vector<16x1xf32> to vector<16x16xf32>
    %258 = arith.subf %254, %257 : vector<16x16xf32>
    %259 = math.exp %258 : vector<16x16xf32>
    %cst_75 = arith.constant dense<0.000000e+00> : vector<16xf32>
    %260 = vector.multi_reduction <add>, %259, %cst_75 [1] : vector<16x16xf32> to vector<16xf32>
    %261 = vector.shape_cast %260 : vector<16xf32> to vector<16x1xf32>
    %262 = tpu.reciprocal %261 {approx = true} : vector<16x1xf32> -> vector<16x1xf32>
    %263 = vector.broadcast %262 : vector<16x1xf32> to vector<16x16xf32>
    %264 = arith.mulf %259, %263 : vector<16x16xf32>
    %cst_76 = arith.constant dense<0.000000e+00> : vector<16x8xf32>
    %265 = tpu.matmul %264, %252, %cst_76 {dimension_numbers = #tpu.dot_dimension_numbers<[1], [0], [0], [1], [0, 0, 1, 1], [], []>} : vector<16x16xf32>, vector<16x8xf32>, vector<16x8xf32> -> vector<16x8xf32>
    %266 = vector.extract_strided_slice %156 {offsets = [24, 0], sizes = [8, 32], strides = [1, 1]} : vector<32x32xf32> to vector<8x32xf32>
    %cst_77 = arith.constant dense<0.000000e+00> : vector<16x32xf32>
    %267 = tpu.matmul %265, %266, %cst_77 {dimension_numbers = #tpu.dot_dimension_numbers<[1], [0], [0], [1], [0, 0, 1, 1], [], []>} : vector<16x8xf32>, vector<8x32xf32>, vector<16x32xf32> -> vector<16x32xf32>
    %268 = arith.addf %249, %267 : vector<16x32xf32>
    %269 = arith.addf %152, %268 : vector<16x32xf32>
    %270 = vector.broadcast %161 : vector<1x32xf32> to vector<16x32xf32>
    %271 = arith.addf %269, %270 : vector<16x32xf32>
    %cst_78 = arith.constant dense<0.000000e+00> : vector<16xf32>
    %272 = vector.multi_reduction <add>, %271, %cst_78 [1] : vector<16x32xf32> to vector<16xf32>
    %273 = vector.shape_cast %272 : vector<16xf32> to vector<16x1xf32>
    %cst_79 = arith.constant 3.200000e+01 : f32
    %274 = vector.broadcast %cst_79 : f32 to vector<16x1xf32>
    %275 = arith.divf %273, %274 : vector<16x1xf32>
    %276 = vector.broadcast %275 : vector<16x1xf32> to vector<16x32xf32>
    %277 = arith.subf %271, %276 : vector<16x32xf32>
    %278 = arith.mulf %277, %277 : vector<16x32xf32>
    %cst_80 = arith.constant dense<0.000000e+00> : vector<16xf32>
    %279 = vector.multi_reduction <add>, %278, %cst_80 [1] : vector<16x32xf32> to vector<16xf32>
    %280 = vector.shape_cast %279 : vector<16xf32> to vector<16x1xf32>
    %cst_81 = arith.constant 0.0322580636 : f32
    %281 = vector.broadcast %cst_81 : f32 to vector<16x1xf32>
    %282 = arith.mulf %280, %281 : vector<16x1xf32>
    %283 = math.sqrt %282 : vector<16x1xf32>
    %cst_82 = arith.constant 9.99999997E-7 : f32
    %284 = vector.broadcast %cst_82 : f32 to vector<16x1xf32>
    %285 = arith.addf %283, %284 : vector<16x1xf32>
    %286 = tpu.reciprocal %285 {approx = true} : vector<16x1xf32> -> vector<16x1xf32>
    %287 = vector.broadcast %166 : vector<1x32xf32> to vector<16x32xf32>
    %288 = arith.mulf %287, %277 : vector<16x32xf32>
    %289 = vector.broadcast %286 : vector<16x1xf32> to vector<16x32xf32>
    %290 = arith.mulf %288, %289 : vector<16x32xf32>
    %291 = vector.broadcast %167 : vector<1x32xf32> to vector<16x32xf32>
    %292 = arith.addf %290, %291 : vector<16x32xf32>
    %cst_83 = arith.constant dense<0.000000e+00> : vector<16x64xf32>
    %293 = tpu.matmul %292, %157, %cst_83 {dimension_numbers = #tpu.dot_dimension_numbers<[1], [0], [0], [1], [0, 0, 1, 1], [], []>} : vector<16x32xf32>, vector<32x64xf32>, vector<16x64xf32> -> vector<16x64xf32>
    %294 = vector.broadcast %162 : vector<1x64xf32> to vector<16x64xf32>
    %295 = arith.addf %293, %294 : vector<16x64xf32>
    %cst_84 = arith.constant 0.000000e+00 : f32
    %296 = vector.broadcast %cst_84 : f32 to vector<16x64xf32>
    %297 = arith.maximumf %295, %296 : vector<16x64xf32>
    %c1_85 = arith.constant 1 : index
    %c0_86 = arith.constant 0 : index
    %c0_87 = arith.constant 0 : index
    %298 = vector.load %arg3[%c1_85, %c0_86, %c0_87] : memref<2x64x32xf32, #tpu.memory_space<vmem>>, vector<1x64x32xf32>
    %299 = vector.shape_cast %298 : vector<1x64x32xf32> to vector<64x32xf32>
    %cst_88 = arith.constant dense<0.000000e+00> : vector<16x32xf32>
    %300 = tpu.matmul %297, %299, %cst_88 {dimension_numbers = #tpu.dot_dimension_numbers<[1], [0], [0], [1], [0, 0, 1, 1], [], []>} : vector<16x64xf32>, vector<64x32xf32>, vector<16x32xf32> -> vector<16x32xf32>
    %301 = arith.addf %271, %300 : vector<16x32xf32>
    %302 = vector.broadcast %163 : vector<1x32xf32> to vector<16x32xf32>
    %303 = arith.addf %301, %302 : vector<16x32xf32>
    %c0_89 = arith.constant 0 : index
    %c0_90 = arith.constant 0 : index
    %304 = vector.load %arg5[%c0_89, %c0_90] : memref<2x32xf32, #tpu.memory_space<vmem>>, vector<1x32xf32>
    %c1_91 = arith.constant 1 : index
    %c0_92 = arith.constant 0 : index
    %305 = vector.load %arg5[%c1_91, %c0_92] : memref<2x32xf32, #tpu.memory_space<vmem>>, vector<1x32xf32>
    %cst_93 = arith.constant dense<0.000000e+00> : vector<16xf32>
    %306 = vector.multi_reduction <add>, %303, %cst_93 [1] : vector<16x32xf32> to vector<16xf32>
    %307 = vector.shape_cast %306 : vector<16xf32> to vector<16x1xf32>
    %cst_94 = arith.constant 3.200000e+01 : f32
    %308 = vector.broadcast %cst_94 : f32 to vector<16x1xf32>
    %309 = arith.divf %307, %308 : vector<16x1xf32>
    %310 = vector.broadcast %309 : vector<16x1xf32> to vector<16x32xf32>
    %311 = arith.subf %303, %310 : vector<16x32xf32>
    %312 = arith.mulf %311, %311 : vector<16x32xf32>
    %cst_95 = arith.constant dense<0.000000e+00> : vector<16xf32>
    %313 = vector.multi_reduction <add>, %312, %cst_95 [1] : vector<16x32xf32> to vector<16xf32>
    %314 = vector.shape_cast %313 : vector<16xf32> to vector<16x1xf32>
    %cst_96 = arith.constant 0.0322580636 : f32
    %315 = vector.broadcast %cst_96 : f32 to vector<16x1xf32>
    %316 = arith.mulf %314, %315 : vector<16x1xf32>
    %317 = math.sqrt %316 : vector<16x1xf32>
    %cst_97 = arith.constant 9.99999997E-7 : f32
    %318 = vector.broadcast %cst_97 : f32 to vector<16x1xf32>
    %319 = arith.addf %317, %318 : vector<16x1xf32>
    %320 = tpu.reciprocal %319 {approx = true} : vector<16x1xf32> -> vector<16x1xf32>
    %321 = vector.broadcast %304 : vector<1x32xf32> to vector<16x32xf32>
    %322 = arith.mulf %321, %311 : vector<16x32xf32>
    %323 = vector.broadcast %320 : vector<16x1xf32> to vector<16x32xf32>
    %324 = arith.mulf %322, %323 : vector<16x32xf32>
    %325 = vector.broadcast %305 : vector<1x32xf32> to vector<16x32xf32>
    %326 = arith.addf %324, %325 : vector<16x32xf32>
    %c0_98 = arith.constant 0 : index
    %c0_99 = arith.constant 0 : index
    %327 = vector.load %arg6[%c0_98, %c0_99] : memref<16x32xf32, #tpu.memory_space<vmem>>, vector<16x32xf32>
    tpu.vector_store %arg6[%c0_98, %c0_99], %326 {strides = array<i32>} : memref<16x32xf32, #tpu.memory_space<vmem>>, vector<16x32xf32>,
    return
  }
}

</mosaic_0001>

<llo_original>
// kernel: tpu_custom_call.1
$region0: #{tpu_custom_call.1}
  #allocation0 [shape = 'u32[]', space=smem, size = 0x4, offset = 0x4, fixed_abs, tag = 'smem constant byte address 0x4 - core index']
  #allocation1 [shape = 'u32[144,128]{1,0:T(1,128)}', space=vmem, size = 0x12000, scoped, tag = 'internal scratch']
  %s0 = inlined_call_operand.vmem [shape: f32[16,32], index: 0, kind: input, shape index: {}]
  %s1 = inlined_call_operand.vmem [shape: f32[16,16], index: 1, kind: input, shape index: {}]
  %s2 = inlined_call_operand.vmem [shape: f32[2,32,192], index: 2, kind: input, shape index: {}]
  %s3 = inlined_call_operand.vmem [shape: f32[2,64,32], index: 3, kind: input, shape index: {}]
  %s4 = inlined_call_operand.vmem [shape: f32[2,8,96], index: 4, kind: input, shape index: {}]
  %s5 = inlined_call_operand.vmem [shape: f32[2,32], index: 5, kind: input, shape index: {}]
  %s6 = inlined_call_operand.hbm [shape: f32[16,32], index: 6, kind: output, shape index: {}]
  %s7 = sld [smem:[#allocation0]]
  $region34: #{tpu_custom_call.1} parent=0
    _
  %s9 = ssub.s32 1, %s7
  %s10 = scalar_select 0, %s9, %s7
  $region1: #{tpu_custom_call.1} parent=0
    #allocation2 [shape = 'u8[8192]{0}', space=vmem, size = 0x2000, scoped, tag = 'output window, operand 0, single buffered']
    #allocation3 [shape = 's32[1]{0}', space=sflag, size = 0x4, scoped, tag = 'scoped memory for tpu_custom_call.1']
    %11 = vsyncpa [#allocation3], 0
    // Predicated region
    $region2: #{tpu_custom_call.1} parent=1 // pred_check
      _
    $region3: #{tpu_custom_call.1} parent=1 // pred_check_branch
      %13 = sbr.rel (0) target = $region5
    $region4: #{tpu_custom_call.1} parent=1 // pred_region
      _
    $region5: #{tpu_custom_call.1} parent=1 // pred_fallthru
      _
    // Predicated region
    $region6: #{tpu_custom_call.1} parent=1 // pred_check
      _
    $region7: #{tpu_custom_call.1} parent=1 // pred_check_branch
      %15 = sbr.rel (0) target = $region9
    $region8: #{tpu_custom_call.1} parent=1 // pred_region
      _
    $region9: #{tpu_custom_call.1} parent=1 // pred_fallthru
      _
    // Predicated region
    $region10: #{tpu_custom_call.1} parent=1 // pred_check
      _
    $region11: #{tpu_custom_call.1} parent=1 // pred_check_branch
      %17 = sbr.rel (0) target = $region13
    $region12: #{tpu_custom_call.1} parent=1 // pred_region
      _
    $region13: #{tpu_custom_call.1} parent=1 // pred_fallthru
      _
    // Predicated region
    $region14: #{tpu_custom_call.1} parent=1 // pred_check
      _
    $region15: #{tpu_custom_call.1} parent=1 // pred_check_branch
      %19 = sbr.rel (0) target = $region17
    $region16: #{tpu_custom_call.1} parent=1 // pred_region
      _
    $region17: #{tpu_custom_call.1} parent=1 // pred_fallthru
      _
    // Predicated region
    $region18: #{tpu_custom_call.1} parent=1 // pred_check
      _
    $region19: #{tpu_custom_call.1} parent=1 // pred_check_branch
      %21 = sbr.rel (0) target = $region21
    $region20: #{tpu_custom_call.1} parent=1 // pred_region
      _
    $region21: #{tpu_custom_call.1} parent=1 // pred_fallthru
      _
    // Predicated region
    $region22: #{tpu_custom_call.1} parent=1 // pred_check
      _
    $region23: #{tpu_custom_call.1} parent=1 // pred_check_branch
      %23 = sbr.rel (0) target = $region25
    $region24: #{tpu_custom_call.1} parent=1 // pred_region
      _
    $region25: #{tpu_custom_call.1} parent=1 // pred_fallthru
      _
    %v24 = vld [vmem:[%s0] sm:$0xff]
    %v25 = vld [vmem:[%s0 + $0x8] sm:$0xff]
    %v26 = vld [vmem:[%s1] sm:$0xff]
    %v27 = vld [vmem:[%s1 + $0x8] sm:$0xff]
    %v28 = vld [vmem:[%s2] sm:$0xff]
    %v29 = vld [vmem:[%s2 + $0x8] sm:$0xff]
    %v30 = vld [vmem:[%s2 + $0x10] sm:$0xff]
    %v31 = vld [vmem:[%s2 + $0x18] sm:$0xff]
    %v32 = vld [vmem:[%s2 + $0x20] sm:$0xff]
    %v33 = vld [vmem:[%s2 + $0x28] sm:$0xff]
    %v34 = vld [vmem:[%s2 + $0x30] sm:$0xff]
    %v35 = vld [vmem:[%s2 + $0x38] sm:$0xff]
    %v36 = vld [vmem:[%s4] sm:$0xff]
    %vm37 = vcmask 261120
    %v38 = vsel %vm37, %v24, 0.0
    %39 = vadd.xlane.f32.xlu0 %v38
    %v40 = vpop.xlane.xlu0 %39
    %v41 = vsel %vm37, %v25, 0.0
    %42 = vadd.xlane.f32.xlu0 %v41
    %v43 = vpop.xlane.xlu0 %42
    %v44 = vrcp.pop 32.0
    %v45 = vmul.f32 %v40, %v44
    %v46 = vmul.f32 %v43, %v44
    %v47 = vsub.f32 %v24, %v45
    %v48 = vsub.f32 %v25, %v46
    %v49 = vmul.f32 %v47, %v47
    %v50 = vmul.f32 %v48, %v48
    %v51 = vsel %vm37, %v49, 0.0
    %52 = vadd.xlane.f32.xlu0 %v51
    %v53 = vpop.xlane.xlu0 %52
    %v54 = vsel %vm37, %v50, 0.0
    %55 = vadd.xlane.f32.xlu0 %v54
    %v56 = vpop.xlane.xlu0 %55
    %v57 = vmul.f32 %v53, 0.032258064
    %v58 = vmul.f32 %v56, 0.032258064
    %v59 = vrsqrt.pop %v57
    %v60 = vmul.f32 %v57, %v59
    %vm61 = vcmp.eq.f32.partialorder %v57, inf
    %v62 = vsel %vm61, %v57, %v60
    %vm63 = vcmp.eq.f32.partialorder %v57, 0.0
    %v64 = vand.u32 %v57, 2147483648
    %v65 = vsel %vm63, %v64, %v62
    %v66 = vrsqrt.pop %v58
    %v67 = vmul.f32 %v58, %v66
    %vm68 = vcmp.eq.f32.partialorder %v58, inf
    %v69 = vsel %vm68, %v58, %v67
    %vm70 = vcmp.eq.f32.partialorder %v58, 0.0
    %v71 = vand.u32 %v58, 2147483648
    %v72 = vsel %vm70, %v71, %v69
    %v73 = vadd.f32 %v65, 1e-06
    %v74 = vadd.f32 %v72, 1e-06
    %v75 = vrcp.pop %v73
    %v76 = vrcp.pop %v74
    %v77 = vlaneseq
    %v78 = vshrl.u32 %v77, 7
    %v79 = vsub.s32 4, %v78
    %v80 = vrot.slane %v36, %v79
    %v81 = vmul.f32 %v80, %v47
    %v82 = vmul.f32 %v80, %v48
    %v83 = vmul.f32 %v81, %v75
    %v84 = vmul.f32 %v82, %v76
    %v85 = vlaneseq
    %v86 = vshrl.u32 %v85, 7
    %v87 = vsub.s32 5, %v86
    %v88 = vrot.slane %v36, %v87
    %v89 = vadd.f32 %v83, %v88
    %v90 = vadd.f32 %v84, %v88
    %v91 = vlaneseq
    %v92 = vshrl.u32 %v91, 7
    %v93 = vsub.s32 0, %v92
    %v94 = vrot.slane %v36, %v93
    %v96 = vsel %vm37, %v89, 0
    %v99 = vsel %vm37, %v90, 0
    %101 = vmatprep.subr.mxu0 0.0
    %102 = vmatpush1.msra.mxu0 0.0
    %103 = vmatprep.subr.mxu0 0.0
    %104 = vmatpush1.msra.mxu0 0.0
    %105 = vmatprep.subr.mxu0 0.0
    %106 = vmatpush1.msra.mxu0 0.0
    %107 = vmatprep.subr.mxu0 0.0
    %108 = vmatpush1.msra.mxu0 0.0
    %109 = vmatprep.subr.mxu0 0.0
    %110 = vmatpush1.msra.mxu0 0.0
    %111 = vmatprep.subr.mxu0 0.0
    %112 = vmatpush1.msra.mxu0 0.0
    %113 = vmatprep.subr.mxu0 0.0
    %114 = vmatpush1.msra.mxu0 0.0
    %115 = vmatprep.subr.mxu0 0.0
    %116 = vmatpush1.msra.mxu0 0.0
    %117 = vmatprep.subr.mxu0 0.0
    %118 = vmatpush1.msra.mxu0 0.0
    %119 = vmatprep.subr.mxu0 0.0
    %120 = vmatpush1.msra.mxu0 0.0
    %121 = vmatprep.subr.mxu0 0.0
    %122 = vmatpush1.msra.mxu0 0.0
    %123 = vmatprep.subr.mxu0 0.0
    %124 = vmatpush1.msra.mxu0 0.0
    %125 = vmatprep.subr.mxu0 0.0
    %126 = vmatpush1.msra.mxu0 %v34
    %127 = vmatprep.subr.mxu0 0.0
    %128 = vmatpush1.msra.mxu0 %v32
    %129 = vmatprep.subr.mxu0 0.0
    %130 = vmatpush1.msra.mxu0 %v30
    %131 = vmatprep.subr.mxu0 0.0
    %132 = vmatpush1.msra.mxu0 %v28
    %133 = vmatprep.subr.mxu0 0.0
    %134 = vmatpush2.msra.mxu0 0.0
    %135 = vmatprep.subr.mxu0 0.0
    %136 = vmatpush2.msra.mxu0 0.0
    %137 = vmatprep.subr.mxu0 0.0
    %138 = vmatpush2.msra.mxu0 0.0
    %139 = vmatprep.subr.mxu0 0.0
    %140 = vmatpush2.msra.mxu0 0.0
    %141 = vmatprep.subr.mxu0 0.0
    %142 = vmatpush2.msra.mxu0 0.0
    %143 = vmatprep.subr.mxu0 0.0
    %144 = vmatpush2.msra.mxu0 0.0
    %145 = vmatprep.subr.mxu0 0.0
    %146 = vmatpush2.msra.mxu0 0.0
    %147 = vmatprep.subr.mxu0 0.0
    %148 = vmatpush2.msra.mxu0 0.0
    %149 = vmatprep.subr.mxu0 0.0
    %150 = vmatpush2.msra.mxu0 0.0
    %151 = vmatprep.subr.mxu0 0.0
    %152 = vmatpush2.msra.mxu0 0.0
    %153 = vmatprep.subr.mxu0 0.0
    %154 = vmatpush2.msra.mxu0 0.0
    %155 = vmatprep.subr.mxu0 0.0
    %156 = vmatpush2.msra.mxu0 0.0
    %157 = vmatprep.subr.mxu0 0.0
    %158 = vmatpush2.msra.mxu0 0.0
    %159 = vmatprep.subr.mxu0 0.0
    %160 = vmatpush2.msra.mxu0 0.0
    %161 = vmatprep.subr.mxu0 0.0
    %162 = vmatpush2.msra.mxu0 0.0
    %163 = vmatprep.subr.mxu0 0.0
    %164 = vmatpush2.msra.mxu0 0.0
    %165 = vmatprep.mubr.f32.mxu0 0.0
    %166 = vmatmul.mubr.f32.gmra.mxu0 %v96
    %v167 = vpop.f32.mrf.mxu0
    %v168 = vadd.f32 %v94, %v167
    %v169 = vpop.f32.mrf.mxu0
    %170 = vmatprep.mubr.f32.mxu0 0.0
    %171 = vmatmul.mubr.f32.gmra.mxu0 %v99
    %v172 = vpop.f32.mrf.mxu0
    %v173 = vadd.f32 %v94, %v172
    %v174 = vpop.f32.mrf.mxu0
    %175 = vdwg.mxu0
    %178 = vrot.lane.b32.xlu0 %v168, 96
    %v179 = vpop.permute.xlu0 %178
    %180 = vrot.lane.b32.xlu0 %v173, 96
    %v181 = vpop.permute.xlu0 %180
    %vm182 = vcmask 64512
    %v183 = vsel %vm182, %v168, 0
    %v185 = vsel %vm182, %v173, 0
    %v187 = vsel %vm182, %v179, 0
    %v189 = vsel %vm182, %v181, 0
    %191 = vmatprep.subr.mxu0 0.0
    %192 = vmatpush1.xpose.msra.mxu0 0.0
    %193 = vmatprep.subr.mxu0 0.0
    %194 = vmatpush1.xpose.msra.mxu0 0.0
    %195 = vmatprep.subr.mxu0 0.0
    %196 = vmatpush1.xpose.msra.mxu0 0.0
    %197 = vmatprep.subr.mxu0 0.0
    %198 = vmatpush1.xpose.msra.mxu0 0.0
    %199 = vmatprep.subr.mxu0 0.0
    %200 = vmatpush1.xpose.msra.mxu0 0.0
    %201 = vmatprep.subr.mxu0 0.0
    %202 = vmatpush1.xpose.msra.mxu0 0.0
    %203 = vmatprep.subr.mxu0 0.0
    %204 = vmatpush1.xpose.msra.mxu0 0.0
    %205 = vmatprep.subr.mxu0 0.0
    %206 = vmatpush1.xpose.msra.mxu0 0.0
    %207 = vmatprep.subr.mxu0 0.0
    %208 = vmatpush1.xpose.msra.mxu0 0.0
    %209 = vmatprep.subr.mxu0 0.0
    %210 = vmatpush1.xpose.msra.mxu0 0.0
    %211 = vmatprep.subr.mxu0 0.0
    %212 = vmatpush1.xpose.msra.mxu0 0.0
    %213 = vmatprep.subr.mxu0 0.0
    %214 = vmatpush1.xpose.msra.mxu0 0.0
    %215 = vmatprep.subr.mxu0 0.0
    %216 = vmatpush1.xpose.msra.mxu0 0.0
    %217 = vmatprep.subr.mxu0 0.0
    %218 = vmatpush1.xpose.msra.mxu0 0.0
    %219 = vmatprep.subr.mxu0 0.0
    %220 = vmatpush1.xpose.msra.mxu0 %v189
    %221 = vmatprep.subr.mxu0 0.0
    %222 = vmatpush1.xpose.msra.mxu0 %v187
    %223 = vmatprep.subr.mxu0 0.0
    %224 = vmatpush2.xpose.msra.mxu0 0.0
    %225 = vmatprep.subr.mxu0 0.0
    %226 = vmatpush2.xpose.msra.mxu0 0.0
    %227 = vmatprep.subr.mxu0 0.0
    %228 = vmatpush2.xpose.msra.mxu0 0.0
    %229 = vmatprep.subr.mxu0 0.0
    %230 = vmatpush2.xpose.msra.mxu0 0.0
    %231 = vmatprep.subr.mxu0 0.0
    %232 = vmatpush2.xpose.msra.mxu0 0.0
    %233 = vmatprep.subr.mxu0 0.0
    %234 = vmatpush2.xpose.msra.mxu0 0.0
    %235 = vmatprep.subr.mxu0 0.0
    %236 = vmatpush2.xpose.msra.mxu0 0.0
    %237 = vmatprep.subr.mxu0 0.0
    %238 = vmatpush2.xpose.msra.mxu0 0.0
    %239 = vmatprep.subr.mxu0 0.0
    %240 = vmatpush2.xpose.msra.mxu0 0.0
    %241 = vmatprep.subr.mxu0 0.0
    %242 = vmatpush2.xpose.msra.mxu0 0.0
    %243 = vmatprep.subr.mxu0 0.0
    %244 = vmatpush2.xpose.msra.mxu0 0.0
    %245 = vmatprep.subr.mxu0 0.0
    %246 = vmatpush2.xpose.msra.mxu0 0.0
    %247 = vmatprep.subr.mxu0 0.0
    %248 = vmatpush2.xpose.msra.mxu0 0.0
    %249 = vmatprep.subr.mxu0 0.0
    %250 = vmatpush2.xpose.msra.mxu0 0.0
    %251 = vmatprep.subr.mxu0 0.0
    %252 = vmatpush2.xpose.msra.mxu0 0.0
    %253 = vmatprep.subr.mxu0 0.0
    %254 = vmatpush2.xpose.msra.mxu0 0.0
    %255 = vmatprep.mubr.f32.mxu0 0.0
    %256 = vmatmul.mubr.f32.gmra.mxu0 %v183
    %v257 = vpop.f32.mrf.mxu0
    %v258 = vadd.f32 %v26, %v257
    %v259 = vpop.f32.mrf.mxu0
    %260 = vmatprep.mubr.f32.mxu0 0.0
    %261 = vmatmul.mubr.f32.gmra.mxu0 %v185
    %v262 = vpop.f32.mrf.mxu0
    %v263 = vadd.f32 %v27, %v262
    %v264 = vpop.f32.mrf.mxu0
    %265 = vdwg.mxu0
    %vm266 = vcmask 130048
    %v267 = vsel %vm266, %v258, -inf
    %268 = vmax.xlane.f32.xlu0 %v267
    %v269 = vpop.xlane.xlu0 %268
    %v270 = vsel %vm266, %v263, -inf
    %271 = vmax.xlane.f32.xlu0 %v270
    %v272 = vpop.xlane.xlu0 %271
    %v273 = vsub.f32 %v258, %v269
    %v274 = vsub.f32 %v263, %v272
    %v275 = vmul.f32 %v273, 1.442695
    %v276 = vpow.pop %v275
    %v277 = vmul.f32 %v274, 1.442695
    %v278 = vpow.pop %v277
    %v279 = vsel %vm266, %v276, 0.0
    %280 = vadd.xlane.f32.xlu0 %v279
    %v281 = vpop.xlane.xlu0 %280
    %v282 = vsel %vm266, %v278, 0.0
    %283 = vadd.xlane.f32.xlu0 %v282
    %v284 = vpop.xlane.xlu0 %283
    %v285 = vrcp.pop %v281
    %v286 = vrcp.pop %v284
    %v287 = vmul.f32 %v276, %v285
    %v288 = vmul.f32 %v278, %v286
    %289 = vrot.lane.b32.xlu0 %v168, 64
    %v290 = vpop.permute.xlu0 %289
    %291 = vrot.lane.b32.xlu0 %v173, 64
    %v292 = vpop.permute.xlu0 %291
    %v296 = vsel %vm266, %v287, 0
    %v299 = vsel %vm266, %v288, 0
    %301 = vmatprep.subr.mxu0 0.0
    %302 = vmatpush1.msra.mxu0 0.0
    %303 = vmatprep.subr.mxu0 0.0
    %304 = vmatpush1.msra.mxu0 0.0
    %305 = vmatprep.subr.mxu0 0.0
    %306 = vmatpush1.msra.mxu0 0.0
    %307 = vmatprep.subr.mxu0 0.0
    %308 = vmatpush1.msra.mxu0 0.0
    %309 = vmatprep.subr.mxu0 0.0
    %310 = vmatpush1.msra.mxu0 0.0
    %311 = vmatprep.subr.mxu0 0.0
    %312 = vmatpush1.msra.mxu0 0.0
    %313 = vmatprep.subr.mxu0 0.0
    %314 = vmatpush1.msra.mxu0 0.0
    %315 = vmatprep.subr.mxu0 0.0
    %316 = vmatpush1.msra.mxu0 0.0
    %317 = vmatprep.subr.mxu0 0.0
    %318 = vmatpush1.msra.mxu0 0.0
    %319 = vmatprep.subr.mxu0 0.0
    %320 = vmatpush1.msra.mxu0 0.0
    %321 = vmatprep.subr.mxu0 0.0
    %322 = vmatpush1.msra.mxu0 0.0
    %323 = vmatprep.subr.mxu0 0.0
    %324 = vmatpush1.msra.mxu0 0.0
    %325 = vmatprep.subr.mxu0 0.0
    %326 = vmatpush1.msra.mxu0 0.0
    %327 = vmatprep.subr.mxu0 0.0
    %328 = vmatpush1.msra.mxu0 0.0
    %329 = vmatprep.subr.mxu0 0.0
    %330 = vmatpush1.msra.mxu0 %v292
    %331 = vmatprep.subr.mxu0 0.0
    %332 = vmatpush1.msra.mxu0 %v290
    %333 = vmatprep.subr.mxu0 0.0
    %334 = vmatpush2.msra.mxu0 0.0
    %335 = vmatprep.subr.mxu0 0.0
    %336 = vmatpush2.msra.mxu0 0.0
    %337 = vmatprep.subr.mxu0 0.0
    %338 = vmatpush2.msra.mxu0 0.0
    %339 = vmatprep.subr.mxu0 0.0
    %340 = vmatpush2.msra.mxu0 0.0
    %341 = vmatprep.subr.mxu0 0.0
    %342 = vmatpush2.msra.mxu0 0.0
    %343 = vmatprep.subr.mxu0 0.0
    %344 = vmatpush2.msra.mxu0 0.0
    %345 = vmatprep.subr.mxu0 0.0
    %346 = vmatpush2.msra.mxu0 0.0
    %347 = vmatprep.subr.mxu0 0.0
    %348 = vmatpush2.msra.mxu0 0.0
    %349 = vmatprep.subr.mxu0 0.0
    %350 = vmatpush2.msra.mxu0 0.0
    %351 = vmatprep.subr.mxu0 0.0
    %352 = vmatpush2.msra.mxu0 0.0
    %353 = vmatprep.subr.mxu0 0.0
    %354 = vmatpush2.msra.mxu0 0.0
    %355 = vmatprep.subr.mxu0 0.0
    %356 = vmatpush2.msra.mxu0 0.0
    %357 = vmatprep.subr.mxu0 0.0
    %358 = vmatpush2.msra.mxu0 0.0
    %359 = vmatprep.subr.mxu0 0.0
    %360 = vmatpush2.msra.mxu0 0.0
    %361 = vmatprep.subr.mxu0 0.0
    %362 = vmatpush2.msra.mxu0 0.0
    %363 = vmatprep.subr.mxu0 0.0
    %364 = vmatpush2.msra.mxu0 0.0
    %365 = vmatprep.mubr.f32.mxu0 0.0
    %366 = vmatmul.mubr.f32.gmra.mxu0 %v296
    %v367 = vpop.f32.mrf.mxu0
    %v368 = vadd.f32 0.0, %v367
    %v369 = vpop.f32.mrf.mxu0
    %370 = vmatprep.mubr.f32.mxu0 0.0
    %371 = vmatmul.mubr.f32.gmra.mxu0 %v299
    %v372 = vpop.f32.mrf.mxu0
    %v373 = vadd.f32 0.0, %v372
    %v374 = vpop.f32.mrf.mxu0
    %375 = vdwg.mxu0
    %376 = vrot.lane.b32.xlu0 %v168, 120
    %v377 = vpop.permute.xlu0 %376
    %378 = vrot.lane.b32.xlu0 %v173, 120
    %v379 = vpop.permute.xlu0 %378
    %380 = vrot.lane.b32.xlu0 %v168, 88
    %v381 = vpop.permute.xlu0 %380
    %382 = vrot.lane.b32.xlu0 %v173, 88
    %v383 = vpop.permute.xlu0 %382
    %v384 = vsel %vm182, %v377, 0
    %v386 = vsel %vm182, %v379, 0
    %v388 = vsel %vm182, %v381, 0
    %v390 = vsel %vm182, %v383, 0
    %392 = vmatprep.subr.mxu0 0.0
    %393 = vmatpush1.xpose.msra.mxu0 0.0
    %394 = vmatprep.subr.mxu0 0.0
    %395 = vmatpush1.xpose.msra.mxu0 0.0
    %396 = vmatprep.subr.mxu0 0.0
    %397 = vmatpush1.xpose.msra.mxu0 0.0
    %398 = vmatprep.subr.mxu0 0.0
    %399 = vmatpush1.xpose.msra.mxu0 0.0
    %400 = vmatprep.subr.mxu0 0.0
    %401 = vmatpush1.xpose.msra.mxu0 0.0
    %402 = vmatprep.subr.mxu0 0.0
    %403 = vmatpush1.xpose.msra.mxu0 0.0
    %404 = vmatprep.subr.mxu0 0.0
    %405 = vmatpush1.xpose.msra.mxu0 0.0
    %406 = vmatprep.subr.mxu0 0.0
    %407 = vmatpush1.xpose.msra.mxu0 0.0
    %408 = vmatprep.subr.mxu0 0.0
    %409 = vmatpush1.xpose.msra.mxu0 0.0
    %410 = vmatprep.subr.mxu0 0.0
    %411 = vmatpush1.xpose.msra.mxu0 0.0
    %412 = vmatprep.subr.mxu0 0.0
    %413 = vmatpush1.xpose.msra.mxu0 0.0
    %414 = vmatprep.subr.mxu0 0.0
    %415 = vmatpush1.xpose.msra.mxu0 0.0
    %416 = vmatprep.subr.mxu0 0.0
    %417 = vmatpush1.xpose.msra.mxu0 0.0
    %418 = vmatprep.subr.mxu0 0.0
    %419 = vmatpush1.xpose.msra.mxu0 0.0
    %420 = vmatprep.subr.mxu0 0.0
    %421 = vmatpush1.xpose.msra.mxu0 %v390
    %422 = vmatprep.subr.mxu0 0.0
    %423 = vmatpush1.xpose.msra.mxu0 %v388
    %424 = vmatprep.subr.mxu0 0.0
    %425 = vmatpush2.xpose.msra.mxu0 0.0
    %426 = vmatprep.subr.mxu0 0.0
    %427 = vmatpush2.xpose.msra.mxu0 0.0
    %428 = vmatprep.subr.mxu0 0.0
    %429 = vmatpush2.xpose.msra.mxu0 0.0
    %430 = vmatprep.subr.mxu0 0.0
    %431 = vmatpush2.xpose.msra.mxu0 0.0
    %432 = vmatprep.subr.mxu0 0.0
    %433 = vmatpush2.xpose.msra.mxu0 0.0
    %434 = vmatprep.subr.mxu0 0.0
    %435 = vmatpush2.xpose.msra.mxu0 0.0
    %436 = vmatprep.subr.mxu0 0.0
    %437 = vmatpush2.xpose.msra.mxu0 0.0
    %438 = vmatprep.subr.mxu0 0.0
    %439 = vmatpush2.xpose.msra.mxu0 0.0
    %440 = vmatprep.subr.mxu0 0.0
    %441 = vmatpush2.xpose.msra.mxu0 0.0
    %442 = vmatprep.subr.mxu0 0.0
    %443 = vmatpush2.xpose.msra.mxu0 0.0
    %444 = vmatprep.subr.mxu0 0.0
    %445 = vmatpush2.xpose.msra.mxu0 0.0
    %446 = vmatprep.subr.mxu0 0.0
    %447 = vmatpush2.xpose.msra.mxu0 0.0
    %448 = vmatprep.subr.mxu0 0.0
    %449 = vmatpush2.xpose.msra.mxu0 0.0
    %450 = vmatprep.subr.mxu0 0.0
    %451 = vmatpush2.xpose.msra.mxu0 0.0
    %452 = vmatprep.subr.mxu0 0.0
    %453 = vmatpush2.xpose.msra.mxu0 0.0
    %454 = vmatprep.subr.mxu0 0.0
    %455 = vmatpush2.xpose.msra.mxu0 0.0
    %456 = vmatprep.mubr.f32.mxu0 0.0
    %457 = vmatmul.mubr.f32.gmra.mxu0 %v384
    %v458 = vpop.f32.mrf.mxu0
    %v459 = vadd.f32 %v26, %v458
    %v460 = vpop.f32.mrf.mxu0
    %461 = vmatprep.mubr.f32.mxu0 0.0
    %462 = vmatmul.mubr.f32.gmra.mxu0 %v386
    %v463 = vpop.f32.mrf.mxu0
    %v464 = vadd.f32 %v27, %v463
    %v465 = vpop.f32.mrf.mxu0
    %466 = vdwg.mxu0
    %v467 = vsel %vm266, %v459, -inf
    %468 = vmax.xlane.f32.xlu0 %v467
    %v469 = vpop.xlane.xlu0 %468
    %v470 = vsel %vm266, %v464, -inf
    %471 = vmax.xlane.f32.xlu0 %v470
    %v472 = vpop.xlane.xlu0 %471
    %v473 = vsub.f32 %v459, %v469
    %v474 = vsub.f32 %v464, %v472
    %v475 = vmul.f32 %v473, 1.442695
    %v476 = vpow.pop %v475
    %v477 = vmul.f32 %v474, 1.442695
    %v478 = vpow.pop %v477
    %v479 = vsel %vm266, %v476, 0.0
    %480 = vadd.xlane.f32.xlu0 %v479
    %v481 = vpop.xlane.xlu0 %480
    %v482 = vsel %vm266, %v478, 0.0
    %483 = vadd.xlane.f32.xlu0 %v482
    %v484 = vpop.xlane.xlu0 %483
    %v485 = vrcp.pop %v481
    %v486 = vrcp.pop %v484
    %v487 = vmul.f32 %v476, %v485
    %v488 = vmul.f32 %v478, %v486
    %489 = vrot.lane.b32.xlu0 %v168, 56
    %v490 = vpop.permute.xlu0 %489
    %491 = vrot.lane.b32.xlu0 %v173, 56
    %v492 = vpop.permute.xlu0 %491
    %v496 = vsel %vm266, %v487, 0
    %v499 = vsel %vm266, %v488, 0
    %501 = vmatprep.subr.mxu0 0.0
    %502 = vmatpush1.msra.mxu0 0.0
    %503 = vmatprep.subr.mxu0 0.0
    %504 = vmatpush1.msra.mxu0 0.0
    %505 = vmatprep.subr.mxu0 0.0
    %506 = vmatpush1.msra.mxu0 0.0
    %507 = vmatprep.subr.mxu0 0.0
    %508 = vmatpush1.msra.mxu0 0.0
    %509 = vmatprep.subr.mxu0 0.0
    %510 = vmatpush1.msra.mxu0 0.0
    %511 = vmatprep.subr.mxu0 0.0
    %512 = vmatpush1.msra.mxu0 0.0
    %513 = vmatprep.subr.mxu0 0.0
    %514 = vmatpush1.msra.mxu0 0.0
    %515 = vmatprep.subr.mxu0 0.0
    %516 = vmatpush1.msra.mxu0 0.0
    %517 = vmatprep.subr.mxu0 0.0
    %518 = vmatpush1.msra.mxu0 0.0
    %519 = vmatprep.subr.mxu0 0.0
    %520 = vmatpush1.msra.mxu0 0.0
    %521 = vmatprep.subr.mxu0 0.0
    %522 = vmatpush1.msra.mxu0 0.0
    %523 = vmatprep.subr.mxu0 0.0
    %524 = vmatpush1.msra.mxu0 0.0
    %525 = vmatprep.subr.mxu0 0.0
    %526 = vmatpush1.msra.mxu0 0.0
    %527 = vmatprep.subr.mxu0 0.0
    %528 = vmatpush1.msra.mxu0 0.0
    %529 = vmatprep.subr.mxu0 0.0
    %530 = vmatpush1.msra.mxu0 %v492
    %531 = vmatprep.subr.mxu0 0.0
    %532 = vmatpush1.msra.mxu0 %v490
    %533 = vmatprep.subr.mxu0 0.0
    %534 = vmatpush2.msra.mxu0 0.0
    %535 = vmatprep.subr.mxu0 0.0
    %536 = vmatpush2.msra.mxu0 0.0
    %537 = vmatprep.subr.mxu0 0.0
    %538 = vmatpush2.msra.mxu0 0.0
    %539 = vmatprep.subr.mxu0 0.0
    %540 = vmatpush2.msra.mxu0 0.0
    %541 = vmatprep.subr.mxu0 0.0
    %542 = vmatpush2.msra.mxu0 0.0
    %543 = vmatprep.subr.mxu0 0.0
    %544 = vmatpush2.msra.mxu0 0.0
    %545 = vmatprep.subr.mxu0 0.0
    %546 = vmatpush2.msra.mxu0 0.0
    %547 = vmatprep.subr.mxu0 0.0
    %548 = vmatpush2.msra.mxu0 0.0
    %549 = vmatprep.subr.mxu0 0.0
    %550 = vmatpush2.msra.mxu0 0.0
    %551 = vmatprep.subr.mxu0 0.0
    %552 = vmatpush2.msra.mxu0 0.0
    %553 = vmatprep.subr.mxu0 0.0
    %554 = vmatpush2.msra.mxu0 0.0
    %555 = vmatprep.subr.mxu0 0.0
    %556 = vmatpush2.msra.mxu0 0.0
    %557 = vmatprep.subr.mxu0 0.0
    %558 = vmatpush2.msra.mxu0 0.0
    %559 = vmatprep.subr.mxu0 0.0
    %560 = vmatpush2.msra.mxu0 0.0
    %561 = vmatprep.subr.mxu0 0.0
    %562 = vmatpush2.msra.mxu0 0.0
    %563 = vmatprep.subr.mxu0 0.0
    %564 = vmatpush2.msra.mxu0 0.0
    %565 = vmatprep.mubr.f32.mxu0 0.0
    %566 = vmatmul.mubr.f32.gmra.mxu0 %v496
    %v567 = vpop.f32.mrf.mxu0
    %v568 = vadd.f32 0.0, %v567
    %v569 = vpop.f32.mrf.mxu0
    %570 = vmatprep.mubr.f32.mxu0 0.0
    %571 = vmatmul.mubr.f32.gmra.mxu0 %v499
    %v572 = vpop.f32.mrf.mxu0
    %v573 = vadd.f32 0.0, %v572
    %v574 = vpop.f32.mrf.mxu0
    %575 = vdwg.mxu0
    %577 = vrot.lane.b32.xlu0 %v30, 32
    %v578 = vpop.permute.xlu0 %577
    %v581 = vsel %vm182, %v568, 0
    %v584 = vsel %vm182, %v573, 0
    %586 = vmatprep.subr.mxu0 0.0
    %587 = vmatpush1.msra.mxu0 0.0
    %588 = vmatprep.subr.mxu0 0.0
    %589 = vmatpush1.msra.mxu0 0.0
    %590 = vmatprep.subr.mxu0 0.0
    %591 = vmatpush1.msra.mxu0 0.0
    %592 = vmatprep.subr.mxu0 0.0
    %593 = vmatpush1.msra.mxu0 0.0
    %594 = vmatprep.subr.mxu0 0.0
    %595 = vmatpush1.msra.mxu0 0.0
    %596 = vmatprep.subr.mxu0 0.0
    %597 = vmatpush1.msra.mxu0 0.0
    %598 = vmatprep.subr.mxu0 0.0
    %599 = vmatpush1.msra.mxu0 0.0
    %600 = vmatprep.subr.mxu0 0.0
    %601 = vmatpush1.msra.mxu0 0.0
    %602 = vmatprep.subr.mxu0 0.0
    %603 = vmatpush1.msra.mxu0 0.0
    %604 = vmatprep.subr.mxu0 0.0
    %605 = vmatpush1.msra.mxu0 0.0
    %606 = vmatprep.subr.mxu0 0.0
    %607 = vmatpush1.msra.mxu0 0.0
    %608 = vmatprep.subr.mxu0 0.0
    %609 = vmatpush1.msra.mxu0 0.0
    %610 = vmatprep.subr.mxu0 0.0
    %611 = vmatpush1.msra.mxu0 0.0
    %612 = vmatprep.subr.mxu0 0.0
    %613 = vmatpush1.msra.mxu0 0.0
    %614 = vmatprep.subr.mxu0 0.0
    %615 = vmatpush1.msra.mxu0 0.0
    %616 = vmatprep.subr.mxu0 0.0
    %617 = vmatpush1.msra.mxu0 %v578
    %618 = vmatprep.subr.mxu0 0.0
    %619 = vmatpush2.msra.mxu0 0.0
    %620 = vmatprep.subr.mxu0 0.0
    %621 = vmatpush2.msra.mxu0 0.0
    %622 = vmatprep.subr.mxu0 0.0
    %623 = vmatpush2.msra.mxu0 0.0
    %624 = vmatprep.subr.mxu0 0.0
    %625 = vmatpush2.msra.mxu0 0.0
    %626 = vmatprep.subr.mxu0 0.0
    %627 = vmatpush2.msra.mxu0 0.0
    %628 = vmatprep.subr.mxu0 0.0
    %629 = vmatpush2.msra.mxu0 0.0
    %630 = vmatprep.subr.mxu0 0.0
    %631 = vmatpush2.msra.mxu0 0.0
    %632 = vmatprep.subr.mxu0 0.0
    %633 = vmatpush2.msra.mxu0 0.0
    %634 = vmatprep.subr.mxu0 0.0
    %635 = vmatpush2.msra.mxu0 0.0
    %636 = vmatprep.subr.mxu0 0.0
    %637 = vmatpush2.msra.mxu0 0.0
    %638 = vmatprep.subr.mxu0 0.0
    %639 = vmatpush2.msra.mxu0 0.0
    %640 = vmatprep.subr.mxu0 0.0
    %641 = vmatpush2.msra.mxu0 0.0
    %642 = vmatprep.subr.mxu0 0.0
    %643 = vmatpush2.msra.mxu0 0.0
    %644 = vmatprep.subr.mxu0 0.0
    %645 = vmatpush2.msra.mxu0 0.0
    %646 = vmatprep.subr.mxu0 0.0
    %647 = vmatpush2.msra.mxu0 0.0
    %648 = vmatprep.subr.mxu0 0.0
    %649 = vmatpush2.msra.mxu0 0.0
    %650 = vmatprep.mubr.f32.mxu0 0.0
    %651 = vmatmul.mubr.f32.gmra.mxu0 %v581
    %v652 = vpop.f32.mrf.mxu0
    %v653 = vadd.f32 0.0, %v652
    %v654 = vpop.f32.mrf.mxu0
    %655 = vmatprep.mubr.f32.mxu0 0.0
    %656 = vmatmul.mubr.f32.gmra.mxu0 %v584
    %v657 = vpop.f32.mrf.mxu0
    %v658 = vadd.f32 0.0, %v657
    %v659 = vpop.f32.mrf.mxu0
    %660 = vdwg.mxu0
    %662 = vrot.lane.b32.xlu0 %v28, 32
    %v663 = vpop.permute.xlu0 %662
    %v666 = vsel %vm182, %v368, 0
    %v669 = vsel %vm182, %v373, 0
    %671 = vmatprep.subr.mxu0 0.0
    %672 = vmatpush1.msra.mxu0 0.0
    %673 = vmatprep.subr.mxu0 0.0
    %674 = vmatpush1.msra.mxu0 0.0
    %675 = vmatprep.subr.mxu0 0.0
    %676 = vmatpush1.msra.mxu0 0.0
    %677 = vmatprep.subr.mxu0 0.0
    %678 = vmatpush1.msra.mxu0 0.0
    %679 = vmatprep.subr.mxu0 0.0
    %680 = vmatpush1.msra.mxu0 0.0
    %681 = vmatprep.subr.mxu0 0.0
    %682 = vmatpush1.msra.mxu0 0.0
    %683 = vmatprep.subr.mxu0 0.0
    %684 = vmatpush1.msra.mxu0 0.0
    %685 = vmatprep.subr.mxu0 0.0
    %686 = vmatpush1.msra.mxu0 0.0
    %687 = vmatprep.subr.mxu0 0.0
    %688 = vmatpush1.msra.mxu0 0.0
    %689 = vmatprep.subr.mxu0 0.0
    %690 = vmatpush1.msra.mxu0 0.0
    %691 = vmatprep.subr.mxu0 0.0
    %692 = vmatpush1.msra.mxu0 0.0
    %693 = vmatprep.subr.mxu0 0.0
    %694 = vmatpush1.msra.mxu0 0.0
    %695 = vmatprep.subr.mxu0 0.0
    %696 = vmatpush1.msra.mxu0 0.0
    %697 = vmatprep.subr.mxu0 0.0
    %698 = vmatpush1.msra.mxu0 0.0
    %699 = vmatprep.subr.mxu0 0.0
    %700 = vmatpush1.msra.mxu0 0.0
    %701 = vmatprep.subr.mxu0 0.0
    %702 = vmatpush1.msra.mxu0 %v663
    %703 = vmatprep.subr.mxu0 0.0
    %704 = vmatpush2.msra.mxu0 0.0
    %705 = vmatprep.subr.mxu0 0.0
    %706 = vmatpush2.msra.mxu0 0.0
    %707 = vmatprep.subr.mxu0 0.0
    %708 = vmatpush2.msra.mxu0 0.0
    %709 = vmatprep.subr.mxu0 0.0
    %710 = vmatpush2.msra.mxu0 0.0
    %711 = vmatprep.subr.mxu0 0.0
    %712 = vmatpush2.msra.mxu0 0.0
    %713 = vmatprep.subr.mxu0 0.0
    %714 = vmatpush2.msra.mxu0 0.0
    %715 = vmatprep.subr.mxu0 0.0
    %716 = vmatpush2.msra.mxu0 0.0
    %717 = vmatprep.subr.mxu0 0.0
    %718 = vmatpush2.msra.mxu0 0.0
    %719 = vmatprep.subr.mxu0 0.0
    %720 = vmatpush2.msra.mxu0 0.0
    %721 = vmatprep.subr.mxu0 0.0
    %722 = vmatpush2.msra.mxu0 0.0
    %723 = vmatprep.subr.mxu0 0.0
    %724 = vmatpush2.msra.mxu0 0.0
    %725 = vmatprep.subr.mxu0 0.0
    %726 = vmatpush2.msra.mxu0 0.0
    %727 = vmatprep.subr.mxu0 0.0
    %728 = vmatpush2.msra.mxu0 0.0
    %729 = vmatprep.subr.mxu0 0.0
    %730 = vmatpush2.msra.mxu0 0.0
    %731 = vmatprep.subr.mxu0 0.0
    %732 = vmatpush2.msra.mxu0 0.0
    %733 = vmatprep.subr.mxu0 0.0
    %734 = vmatpush2.msra.mxu0 0.0
    %735 = vmatprep.mubr.f32.mxu0 0.0
    %736 = vmatmul.mubr.f32.gmra.mxu0 %v666
    %v737 = vpop.f32.mrf.mxu0
    %v738 = vadd.f32 %v653, %v737
    %v739 = vpop.f32.mrf.mxu0
    %740 = vmatprep.mubr.f32.mxu0 0.0
    %741 = vmatmul.mubr.f32.gmra.mxu0 %v669
    %v742 = vpop.f32.mrf.mxu0
    %v743 = vadd.f32 %v658, %v742
    %v744 = vpop.f32.mrf.mxu0
    %745 = vdwg.mxu0
    %746 = vrot.lane.b32.xlu0 %v168, 112
    %v747 = vpop.permute.xlu0 %746
    %748 = vrot.lane.b32.xlu0 %v173, 112
    %v749 = vpop.permute.xlu0 %748
    %750 = vrot.lane.b32.xlu0 %v168, 80
    %v751 = vpop.permute.xlu0 %750
    %752 = vrot.lane.b32.xlu0 %v173, 80
    %v753 = vpop.permute.xlu0 %752
    %v754 = vsel %vm182, %v747, 0
    %v756 = vsel %vm182, %v749, 0
    %v758 = vsel %vm182, %v751, 0
    %v760 = vsel %vm182, %v753, 0
    %762 = vmatprep.subr.mxu0 0.0
    %763 = vmatpush1.xpose.msra.mxu0 0.0
    %764 = vmatprep.subr.mxu0 0.0
    %765 = vmatpush1.xpose.msra.mxu0 0.0
    %766 = vmatprep.subr.mxu0 0.0
    %767 = vmatpush1.xpose.msra.mxu0 0.0
    %768 = vmatprep.subr.mxu0 0.0
    %769 = vmatpush1.xpose.msra.mxu0 0.0
    %770 = vmatprep.subr.mxu0 0.0
    %771 = vmatpush1.xpose.msra.mxu0 0.0
    %772 = vmatprep.subr.mxu0 0.0
    %773 = vmatpush1.xpose.msra.mxu0 0.0
    %774 = vmatprep.subr.mxu0 0.0
    %775 = vmatpush1.xpose.msra.mxu0 0.0
    %776 = vmatprep.subr.mxu0 0.0
    %777 = vmatpush1.xpose.msra.mxu0 0.0
    %778 = vmatprep.subr.mxu0 0.0
    %779 = vmatpush1.xpose.msra.mxu0 0.0
    %780 = vmatprep.subr.mxu0 0.0
    %781 = vmatpush1.xpose.msra.mxu0 0.0
    %782 = vmatprep.subr.mxu0 0.0
    %783 = vmatpush1.xpose.msra.mxu0 0.0
    %784 = vmatprep.subr.mxu0 0.0
    %785 = vmatpush1.xpose.msra.mxu0 0.0
    %786 = vmatprep.subr.mxu0 0.0
    %787 = vmatpush1.xpose.msra.mxu0 0.0
    %788 = vmatprep.subr.mxu0 0.0
    %789 = vmatpush1.xpose.msra.mxu0 0.0
    %790 = vmatprep.subr.mxu0 0.0
    %791 = vmatpush1.xpose.msra.mxu0 %v760
    %792 = vmatprep.subr.mxu0 0.0
    %793 = vmatpush1.xpose.msra.mxu0 %v758
    %794 = vmatprep.subr.mxu0 0.0
    %795 = vmatpush2.xpose.msra.mxu0 0.0
    %796 = vmatprep.subr.mxu0 0.0
    %797 = vmatpush2.xpose.msra.mxu0 0.0
    %798 = vmatprep.subr.mxu0 0.0
    %799 = vmatpush2.xpose.msra.mxu0 0.0
    %800 = vmatprep.subr.mxu0 0.0
    %801 = vmatpush2.xpose.msra.mxu0 0.0
    %802 = vmatprep.subr.mxu0 0.0
    %803 = vmatpush2.xpose.msra.mxu0 0.0
    %804 = vmatprep.subr.mxu0 0.0
    %805 = vmatpush2.xpose.msra.mxu0 0.0
    %806 = vmatprep.subr.mxu0 0.0
    %807 = vmatpush2.xpose.msra.mxu0 0.0
    %808 = vmatprep.subr.mxu0 0.0
    %809 = vmatpush2.xpose.msra.mxu0 0.0
    %810 = vmatprep.subr.mxu0 0.0
    %811 = vmatpush2.xpose.msra.mxu0 0.0
    %812 = vmatprep.subr.mxu0 0.0
    %813 = vmatpush2.xpose.msra.mxu0 0.0
    %814 = vmatprep.subr.mxu0 0.0
    %815 = vmatpush2.xpose.msra.mxu0 0.0
    %816 = vmatprep.subr.mxu0 0.0
    %817 = vmatpush2.xpose.msra.mxu0 0.0
    %818 = vmatprep.subr.mxu0 0.0
    %819 = vmatpush2.xpose.msra.mxu0 0.0
    %820 = vmatprep.subr.mxu0 0.0
    %821 = vmatpush2.xpose.msra.mxu0 0.0
    %822 = vmatprep.subr.mxu0 0.0
    %823 = vmatpush2.xpose.msra.mxu0 0.0
    %824 = vmatprep.subr.mxu0 0.0
    %825 = vmatpush2.xpose.msra.mxu0 0.0
    %826 = vmatprep.mubr.f32.mxu0 0.0
    %827 = vmatmul.mubr.f32.gmra.mxu0 %v754
    %v828 = vpop.f32.mrf.mxu0
    %v829 = vadd.f32 %v26, %v828
    %v830 = vpop.f32.mrf.mxu0
    %831 = vmatprep.mubr.f32.mxu0 0.0
    %832 = vmatmul.mubr.f32.gmra.mxu0 %v756
    %v833 = vpop.f32.mrf.mxu0
    %v834 = vadd.f32 %v27, %v833
    %v835 = vpop.f32.mrf.mxu0
    %836 = vdwg.mxu0
    %v837 = vsel %vm266, %v829, -inf
    %838 = vmax.xlane.f32.xlu0 %v837
    %v839 = vpop.xlane.xlu0 %838
    %v840 = vsel %vm266, %v834, -inf
    %841 = vmax.xlane.f32.xlu0 %v840
    %v842 = vpop.xlane.xlu0 %841
    %v843 = vsub.f32 %v829, %v839
    %v844 = vsub.f32 %v834, %v842
    %v845 = vmul.f32 %v843, 1.442695
    %v846 = vpow.pop %v845
    %v847 = vmul.f32 %v844, 1.442695
    %v848 = vpow.pop %v847
    %v849 = vsel %vm266, %v846, 0.0
    %850 = vadd.xlane.f32.xlu0 %v849
    %v851 = vpop.xlane.xlu0 %850
    %v852 = vsel %vm266, %v848, 0.0
    %853 = vadd.xlane.f32.xlu0 %v852
    %v854 = vpop.xlane.xlu0 %853
    %v855 = vrcp.pop %v851
    %v856 = vrcp.pop %v854
    %v857 = vmul.f32 %v846, %v855
    %v858 = vmul.f32 %v848, %v856
    %859 = vrot.lane.b32.xlu0 %v168, 48
    %v860 = vpop.permute.xlu0 %859
    %861 = vrot.lane.b32.xlu0 %v173, 48
    %v862 = vpop.permute.xlu0 %861
    %v866 = vsel %vm266, %v857, 0
    %v869 = vsel %vm266, %v858, 0
    %871 = vmatprep.subr.mxu0 0.0
    %872 = vmatpush1.msra.mxu0 0.0
    %873 = vmatprep.subr.mxu0 0.0
    %874 = vmatpush1.msra.mxu0 0.0
    %875 = vmatprep.subr.mxu0 0.0
    %876 = vmatpush1.msra.mxu0 0.0
    %877 = vmatprep.subr.mxu0 0.0
    %878 = vmatpush1.msra.mxu0 0.0
    %879 = vmatprep.subr.mxu0 0.0
    %880 = vmatpush1.msra.mxu0 0.0
    %881 = vmatprep.subr.mxu0 0.0
    %882 = vmatpush1.msra.mxu0 0.0
    %883 = vmatprep.subr.mxu0 0.0
    %884 = vmatpush1.msra.mxu0 0.0
    %885 = vmatprep.subr.mxu0 0.0
    %886 = vmatpush1.msra.mxu0 0.0
    %887 = vmatprep.subr.mxu0 0.0
    %888 = vmatpush1.msra.mxu0 0.0
    %889 = vmatprep.subr.mxu0 0.0
    %890 = vmatpush1.msra.mxu0 0.0
    %891 = vmatprep.subr.mxu0 0.0
    %892 = vmatpush1.msra.mxu0 0.0
    %893 = vmatprep.subr.mxu0 0.0
    %894 = vmatpush1.msra.mxu0 0.0
    %895 = vmatprep.subr.mxu0 0.0
    %896 = vmatpush1.msra.mxu0 0.0
    %897 = vmatprep.subr.mxu0 0.0
    %898 = vmatpush1.msra.mxu0 0.0
    %899 = vmatprep.subr.mxu0 0.0
    %900 = vmatpush1.msra.mxu0 %v862
    %901 = vmatprep.subr.mxu0 0.0
    %902 = vmatpush1.msra.mxu0 %v860
    %903 = vmatprep.subr.mxu0 0.0
    %904 = vmatpush2.msra.mxu0 0.0
    %905 = vmatprep.subr.mxu0 0.0
    %906 = vmatpush2.msra.mxu0 0.0
    %907 = vmatprep.subr.mxu0 0.0
    %908 = vmatpush2.msra.mxu0 0.0
    %909 = vmatprep.subr.mxu0 0.0
    %910 = vmatpush2.msra.mxu0 0.0
    %911 = vmatprep.subr.mxu0 0.0
    %912 = vmatpush2.msra.mxu0 0.0
    %913 = vmatprep.subr.mxu0 0.0
    %914 = vmatpush2.msra.mxu0 0.0
    %915 = vmatprep.subr.mxu0 0.0
    %916 = vmatpush2.msra.mxu0 0.0
    %917 = vmatprep.subr.mxu0 0.0
    %918 = vmatpush2.msra.mxu0 0.0
    %919 = vmatprep.subr.mxu0 0.0
    %920 = vmatpush2.msra.mxu0 0.0
    %921 = vmatprep.subr.mxu0 0.0
    %922 = vmatpush2.msra.mxu0 0.0
    %923 = vmatprep.subr.mxu0 0.0
    %924 = vmatpush2.msra.mxu0 0.0
    %925 = vmatprep.subr.mxu0 0.0
    %926 = vmatpush2.msra.mxu0 0.0
    %927 = vmatprep.subr.mxu0 0.0
    %928 = vmatpush2.msra.mxu0 0.0
    %929 = vmatprep.subr.mxu0 0.0
    %930 = vmatpush2.msra.mxu0 0.0
    %931 = vmatprep.subr.mxu0 0.0
    %932 = vmatpush2.msra.mxu0 0.0
    %933 = vmatprep.subr.mxu0 0.0
    %934 = vmatpush2.msra.mxu0 0.0
    %935 = vmatprep.mubr.f32.mxu0 0.0
    %936 = vmatmul.mubr.f32.gmra.mxu0 %v866
    %v937 = vpop.f32.mrf.mxu0
    %v938 = vadd.f32 0.0, %v937
    %v939 = vpop.f32.mrf.mxu0
    %940 = vmatprep.mubr.f32.mxu0 0.0
    %941 = vmatmul.mubr.f32.gmra.mxu0 %v869
    %v942 = vpop.f32.mrf.mxu0
    %v943 = vadd.f32 0.0, %v942
    %v944 = vpop.f32.mrf.mxu0
    %945 = vdwg.mxu0
    %947 = vrot.lane.b32.xlu0 %v32, 32
    %v948 = vpop.permute.xlu0 %947
    %v951 = vsel %vm182, %v938, 0
    %v954 = vsel %vm182, %v943, 0
    %956 = vmatprep.subr.mxu0 0.0
    %957 = vmatpush1.msra.mxu0 0.0
    %958 = vmatprep.subr.mxu0 0.0
    %959 = vmatpush1.msra.mxu0 0.0
    %960 = vmatprep.subr.mxu0 0.0
    %961 = vmatpush1.msra.mxu0 0.0
    %962 = vmatprep.subr.mxu0 0.0
    %963 = vmatpush1.msra.mxu0 0.0
    %964 = vmatprep.subr.mxu0 0.0
    %965 = vmatpush1.msra.mxu0 0.0
    %966 = vmatprep.subr.mxu0 0.0
    %967 = vmatpush1.msra.mxu0 0.0
    %968 = vmatprep.subr.mxu0 0.0
    %969 = vmatpush1.msra.mxu0 0.0
    %970 = vmatprep.subr.mxu0 0.0
    %971 = vmatpush1.msra.mxu0 0.0
    %972 = vmatprep.subr.mxu0 0.0
    %973 = vmatpush1.msra.mxu0 0.0
    %974 = vmatprep.subr.mxu0 0.0
    %975 = vmatpush1.msra.mxu0 0.0
    %976 = vmatprep.subr.mxu0 0.0
    %977 = vmatpush1.msra.mxu0 0.0
    %978 = vmatprep.subr.mxu0 0.0
    %979 = vmatpush1.msra.mxu0 0.0
    %980 = vmatprep.subr.mxu0 0.0
    %981 = vmatpush1.msra.mxu0 0.0
    %982 = vmatprep.subr.mxu0 0.0
    %983 = vmatpush1.msra.mxu0 0.0
    %984 = vmatprep.subr.mxu0 0.0
    %985 = vmatpush1.msra.mxu0 0.0
    %986 = vmatprep.subr.mxu0 0.0
    %987 = vmatpush1.msra.mxu0 %v948
    %988 = vmatprep.subr.mxu0 0.0
    %989 = vmatpush2.msra.mxu0 0.0
    %990 = vmatprep.subr.mxu0 0.0
    %991 = vmatpush2.msra.mxu0 0.0
    %992 = vmatprep.subr.mxu0 0.0
    %993 = vmatpush2.msra.mxu0 0.0
    %994 = vmatprep.subr.mxu0 0.0
    %995 = vmatpush2.msra.mxu0 0.0
    %996 = vmatprep.subr.mxu0 0.0
    %997 = vmatpush2.msra.mxu0 0.0
    %998 = vmatprep.subr.mxu0 0.0
    %999 = vmatpush2.msra.mxu0 0.0
    %1000 = vmatprep.subr.mxu0 0.0
    %1001 = vmatpush2.msra.mxu0 0.0
    %1002 = vmatprep.subr.mxu0 0.0
    %1003 = vmatpush2.msra.mxu0 0.0
    %1004 = vmatprep.subr.mxu0 0.0
    %1005 = vmatpush2.msra.mxu0 0.0
    %1006 = vmatprep.subr.mxu0 0.0
    %1007 = vmatpush2.msra.mxu0 0.0
    %1008 = vmatprep.subr.mxu0 0.0
    %1009 = vmatpush2.msra.mxu0 0.0
    %1010 = vmatprep.subr.mxu0 0.0
    %1011 = vmatpush2.msra.mxu0 0.0
    %1012 = vmatprep.subr.mxu0 0.0
    %1013 = vmatpush2.msra.mxu0 0.0
    %1014 = vmatprep.subr.mxu0 0.0
    %1015 = vmatpush2.msra.mxu0 0.0
    %1016 = vmatprep.subr.mxu0 0.0
    %1017 = vmatpush2.msra.mxu0 0.0
    %1018 = vmatprep.subr.mxu0 0.0
    %1019 = vmatpush2.msra.mxu0 0.0
    %1020 = vmatprep.mubr.f32.mxu0 0.0
    %1021 = vmatmul.mubr.f32.gmra.mxu0 %v951
    %v1022 = vpop.f32.mrf.mxu0
    %v1023 = vadd.f32 0.0, %v1022
    %v1024 = vpop.f32.mrf.mxu0
    %1025 = vmatprep.mubr.f32.mxu0 0.0
    %1026 = vmatmul.mubr.f32.gmra.mxu0 %v954
    %v1027 = vpop.f32.mrf.mxu0
    %v1028 = vadd.f32 0.0, %v1027
    %v1029 = vpop.f32.mrf.mxu0
    %1030 = vdwg.mxu0
    %v1031 = vadd.f32 %v738, %v1023
    %v1032 = vadd.f32 %v743, %v1028
    %1033 = vrot.lane.b32.xlu0 %v168, 104
    %v1034 = vpop.permute.xlu0 %1033
    %1035 = vrot.lane.b32.xlu0 %v173, 104
    %v1036 = vpop.permute.xlu0 %1035
    %1037 = vrot.lane.b32.xlu0 %v168, 72
    %v1038 = vpop.permute.xlu0 %1037
    %1039 = vrot.lane.b32.xlu0 %v173, 72
    %v1040 = vpop.permute.xlu0 %1039
    %v1041 = vsel %vm182, %v1034, 0
    %v1043 = vsel %vm182, %v1036, 0
    %v1045 = vsel %vm182, %v1038, 0
    %v1047 = vsel %vm182, %v1040, 0
    %1049 = vmatprep.subr.mxu0 0.0
    %1050 = vmatpush1.xpose.msra.mxu0 0.0
    %1051 = vmatprep.subr.mxu0 0.0
    %1052 = vmatpush1.xpose.msra.mxu0 0.0
    %1053 = vmatprep.subr.mxu0 0.0
    %1054 = vmatpush1.xpose.msra.mxu0 0.0
    %1055 = vmatprep.subr.mxu0 0.0
    %1056 = vmatpush1.xpose.msra.mxu0 0.0
    %1057 = vmatprep.subr.mxu0 0.0
    %1058 = vmatpush1.xpose.msra.mxu0 0.0
    %1059 = vmatprep.subr.mxu0 0.0
    %1060 = vmatpush1.xpose.msra.mxu0 0.0
    %1061 = vmatprep.subr.mxu0 0.0
    %1062 = vmatpush1.xpose.msra.mxu0 0.0
    %1063 = vmatprep.subr.mxu0 0.0
    %1064 = vmatpush1.xpose.msra.mxu0 0.0
    %1065 = vmatprep.subr.mxu0 0.0
    %1066 = vmatpush1.xpose.msra.mxu0 0.0
    %1067 = vmatprep.subr.mxu0 0.0
    %1068 = vmatpush1.xpose.msra.mxu0 0.0
    %1069 = vmatprep.subr.mxu0 0.0
    %1070 = vmatpush1.xpose.msra.mxu0 0.0
    %1071 = vmatprep.subr.mxu0 0.0
    %1072 = vmatpush1.xpose.msra.mxu0 0.0
    %1073 = vmatprep.subr.mxu0 0.0
    %1074 = vmatpush1.xpose.msra.mxu0 0.0
    %1075 = vmatprep.subr.mxu0 0.0
    %1076 = vmatpush1.xpose.msra.mxu0 0.0
    %1077 = vmatprep.subr.mxu0 0.0
    %1078 = vmatpush1.xpose.msra.mxu0 %v1047
    %1079 = vmatprep.subr.mxu0 0.0
    %1080 = vmatpush1.xpose.msra.mxu0 %v1045
    %1081 = vmatprep.subr.mxu0 0.0
    %1082 = vmatpush2.xpose.msra.mxu0 0.0
    %1083 = vmatprep.subr.mxu0 0.0
    %1084 = vmatpush2.xpose.msra.mxu0 0.0
    %1085 = vmatprep.subr.mxu0 0.0
    %1086 = vmatpush2.xpose.msra.mxu0 0.0
    %1087 = vmatprep.subr.mxu0 0.0
    %1088 = vmatpush2.xpose.msra.mxu0 0.0
    %1089 = vmatprep.subr.mxu0 0.0
    %1090 = vmatpush2.xpose.msra.mxu0 0.0
    %1091 = vmatprep.subr.mxu0 0.0
    %1092 = vmatpush2.xpose.msra.mxu0 0.0
    %1093 = vmatprep.subr.mxu0 0.0
    %1094 = vmatpush2.xpose.msra.mxu0 0.0
    %1095 = vmatprep.subr.mxu0 0.0
    %1096 = vmatpush2.xpose.msra.mxu0 0.0
    %1097 = vmatprep.subr.mxu0 0.0
    %1098 = vmatpush2.xpose.msra.mxu0 0.0
    %1099 = vmatprep.subr.mxu0 0.0
    %1100 = vmatpush2.xpose.msra.mxu0 0.0
    %1101 = vmatprep.subr.mxu0 0.0
    %1102 = vmatpush2.xpose.msra.mxu0 0.0
    %1103 = vmatprep.subr.mxu0 0.0
    %1104 = vmatpush2.xpose.msra.mxu0 0.0
    %1105 = vmatprep.subr.mxu0 0.0
    %1106 = vmatpush2.xpose.msra.mxu0 0.0
    %1107 = vmatprep.subr.mxu0 0.0
    %1108 = vmatpush2.xpose.msra.mxu0 0.0
    %1109 = vmatprep.subr.mxu0 0.0
    %1110 = vmatpush2.xpose.msra.mxu0 0.0
    %1111 = vmatprep.subr.mxu0 0.0
    %1112 = vmatpush2.xpose.msra.mxu0 0.0
    %1113 = vmatprep.mubr.f32.mxu0 0.0
    %1114 = vmatmul.mubr.f32.gmra.mxu0 %v1041
    %v1115 = vpop.f32.mrf.mxu0
    %v1116 = vadd.f32 %v26, %v1115
    %v1117 = vpop.f32.mrf.mxu0
    %1118 = vmatprep.mubr.f32.mxu0 0.0
    %1119 = vmatmul.mubr.f32.gmra.mxu0 %v1043
    %v1120 = vpop.f32.mrf.mxu0
    %v1121 = vadd.f32 %v27, %v1120
    %v1122 = vpop.f32.mrf.mxu0
    %1123 = vdwg.mxu0
    %v1124 = vsel %vm266, %v1116, -inf
    %1125 = vmax.xlane.f32.xlu0 %v1124
    %v1126 = vpop.xlane.xlu0 %1125
    %v1127 = vsel %vm266, %v1121, -inf
    %1128 = vmax.xlane.f32.xlu0 %v1127
    %v1129 = vpop.xlane.xlu0 %1128
    %v1130 = vsub.f32 %v1116, %v1126
    %v1131 = vsub.f32 %v1121, %v1129
    %v1132 = vmul.f32 %v1130, 1.442695
    %v1133 = vpow.pop %v1132
    %v1134 = vmul.f32 %v1131, 1.442695
    %v1135 = vpow.pop %v1134
    %v1136 = vsel %vm266, %v1133, 0.0
    %1137 = vadd.xlane.f32.xlu0 %v1136
    %v1138 = vpop.xlane.xlu0 %1137
    %v1139 = vsel %vm266, %v1135, 0.0
    %1140 = vadd.xlane.f32.xlu0 %v1139
    %v1141 = vpop.xlane.xlu0 %1140
    %v1142 = vrcp.pop %v1138
    %v1143 = vrcp.pop %v1141
    %v1144 = vmul.f32 %v1133, %v1142
    %v1145 = vmul.f32 %v1135, %v1143
    %1146 = vrot.lane.b32.xlu0 %v168, 40
    %v1147 = vpop.permute.xlu0 %1146
    %1148 = vrot.lane.b32.xlu0 %v173, 40
    %v1149 = vpop.permute.xlu0 %1148
    %v1153 = vsel %vm266, %v1144, 0
    %v1156 = vsel %vm266, %v1145, 0
    %1158 = vmatprep.subr.mxu0 0.0
    %1159 = vmatpush1.msra.mxu0 0.0
    %1160 = vmatprep.subr.mxu0 0.0
    %1161 = vmatpush1.msra.mxu0 0.0
    %1162 = vmatprep.subr.mxu0 0.0
    %1163 = vmatpush1.msra.mxu0 0.0
    %1164 = vmatprep.subr.mxu0 0.0
    %1165 = vmatpush1.msra.mxu0 0.0
    %1166 = vmatprep.subr.mxu0 0.0
    %1167 = vmatpush1.msra.mxu0 0.0
    %1168 = vmatprep.subr.mxu0 0.0
    %1169 = vmatpush1.msra.mxu0 0.0
    %1170 = vmatprep.subr.mxu0 0.0
    %1171 = vmatpush1.msra.mxu0 0.0
    %1172 = vmatprep.subr.mxu0 0.0
    %1173 = vmatpush1.msra.mxu0 0.0
    %1174 = vmatprep.subr.mxu0 0.0
    %1175 = vmatpush1.msra.mxu0 0.0
    %1176 = vmatprep.subr.mxu0 0.0
    %1177 = vmatpush1.msra.mxu0 0.0
    %1178 = vmatprep.subr.mxu0 0.0
    %1179 = vmatpush1.msra.mxu0 0.0
    %1180 = vmatprep.subr.mxu0 0.0
    %1181 = vmatpush1.msra.mxu0 0.0
    %1182 = vmatprep.subr.mxu0 0.0
    %1183 = vmatpush1.msra.mxu0 0.0
    %1184 = vmatprep.subr.mxu0 0.0
    %1185 = vmatpush1.msra.mxu0 0.0
    %1186 = vmatprep.subr.mxu0 0.0
    %1187 = vmatpush1.msra.mxu0 %v1149
    %1188 = vmatprep.subr.mxu0 0.0
    %1189 = vmatpush1.msra.mxu0 %v1147
    %1190 = vmatprep.subr.mxu0 0.0
    %1191 = vmatpush2.msra.mxu0 0.0
    %1192 = vmatprep.subr.mxu0 0.0
    %1193 = vmatpush2.msra.mxu0 0.0
    %1194 = vmatprep.subr.mxu0 0.0
    %1195 = vmatpush2.msra.mxu0 0.0
    %1196 = vmatprep.subr.mxu0 0.0
    %1197 = vmatpush2.msra.mxu0 0.0
    %1198 = vmatprep.subr.mxu0 0.0
    %1199 = vmatpush2.msra.mxu0 0.0
    %1200 = vmatprep.subr.mxu0 0.0
    %1201 = vmatpush2.msra.mxu0 0.0
    %1202 = vmatprep.subr.mxu0 0.0
    %1203 = vmatpush2.msra.mxu0 0.0
    %1204 = vmatprep.subr.mxu0 0.0
    %1205 = vmatpush2.msra.mxu0 0.0
    %1206 = vmatprep.subr.mxu0 0.0
    %1207 = vmatpush2.msra.mxu0 0.0
    %1208 = vmatprep.subr.mxu0 0.0
    %1209 = vmatpush2.msra.mxu0 0.0
    %1210 = vmatprep.subr.mxu0 0.0
    %1211 = vmatpush2.msra.mxu0 0.0
    %1212 = vmatprep.subr.mxu0 0.0
    %1213 = vmatpush2.msra.mxu0 0.0
    %1214 = vmatprep.subr.mxu0 0.0
    %1215 = vmatpush2.msra.mxu0 0.0
    %1216 = vmatprep.subr.mxu0 0.0
    %1217 = vmatpush2.msra.mxu0 0.0
    %1218 = vmatprep.subr.mxu0 0.0
    %1219 = vmatpush2.msra.mxu0 0.0
    %1220 = vmatprep.subr.mxu0 0.0
    %1221 = vmatpush2.msra.mxu0 0.0
    %1222 = vmatprep.mubr.f32.mxu0 0.0
    %1223 = vmatmul.mubr.f32.gmra.mxu0 %v1153
    %v1224 = vpop.f32.mrf.mxu0
    %v1225 = vadd.f32 0.0, %v1224
    %v1226 = vpop.f32.mrf.mxu0
    %1227 = vmatprep.mubr.f32.mxu0 0.0
    %1228 = vmatmul.mubr.f32.gmra.mxu0 %v1156
    %v1229 = vpop.f32.mrf.mxu0
    %v1230 = vadd.f32 0.0, %v1229
    %v1231 = vpop.f32.mrf.mxu0
    %1232 = vdwg.mxu0
    %1234 = vrot.lane.b32.xlu0 %v34, 32
    %v1235 = vpop.permute.xlu0 %1234
    %v1238 = vsel %vm182, %v1225, 0
    %v1241 = vsel %vm182, %v1230, 0
    %1243 = vmatprep.subr.mxu0 0.0
    %1244 = vmatpush1.msra.mxu0 0.0
    %1245 = vmatprep.subr.mxu0 0.0
    %1246 = vmatpush1.msra.mxu0 0.0
    %1247 = vmatprep.subr.mxu0 0.0
    %1248 = vmatpush1.msra.mxu0 0.0
    %1249 = vmatprep.subr.mxu0 0.0
    %1250 = vmatpush1.msra.mxu0 0.0
    %1251 = vmatprep.subr.mxu0 0.0
    %1252 = vmatpush1.msra.mxu0 0.0
    %1253 = vmatprep.subr.mxu0 0.0
    %1254 = vmatpush1.msra.mxu0 0.0
    %1255 = vmatprep.subr.mxu0 0.0
    %1256 = vmatpush1.msra.mxu0 0.0
    %1257 = vmatprep.subr.mxu0 0.0
    %1258 = vmatpush1.msra.mxu0 0.0
    %1259 = vmatprep.subr.mxu0 0.0
    %1260 = vmatpush1.msra.mxu0 0.0
    %1261 = vmatprep.subr.mxu0 0.0
    %1262 = vmatpush1.msra.mxu0 0.0
    %1263 = vmatprep.subr.mxu0 0.0
    %1264 = vmatpush1.msra.mxu0 0.0
    %1265 = vmatprep.subr.mxu0 0.0
    %1266 = vmatpush1.msra.mxu0 0.0
    %1267 = vmatprep.subr.mxu0 0.0
    %1268 = vmatpush1.msra.mxu0 0.0
    %1269 = vmatprep.subr.mxu0 0.0
    %1270 = vmatpush1.msra.mxu0 0.0
    %1271 = vmatprep.subr.mxu0 0.0
    %1272 = vmatpush1.msra.mxu0 0.0
    %1273 = vmatprep.subr.mxu0 0.0
    %1274 = vmatpush1.msra.mxu0 %v1235
    %1275 = vmatprep.subr.mxu0 0.0
    %1276 = vmatpush2.msra.mxu0 0.0
    %1277 = vmatprep.subr.mxu0 0.0
    %1278 = vmatpush2.msra.mxu0 0.0
    %1279 = vmatprep.subr.mxu0 0.0
    %1280 = vmatpush2.msra.mxu0 0.0
    %1281 = vmatprep.subr.mxu0 0.0
    %1282 = vmatpush2.msra.mxu0 0.0
    %1283 = vmatprep.subr.mxu0 0.0
    %1284 = vmatpush2.msra.mxu0 0.0
    %1285 = vmatprep.subr.mxu0 0.0
    %1286 = vmatpush2.msra.mxu0 0.0
    %1287 = vmatprep.subr.mxu0 0.0
    %1288 = vmatpush2.msra.mxu0 0.0
    %1289 = vmatprep.subr.mxu0 0.0
    %1290 = vmatpush2.msra.mxu0 0.0
    %1291 = vmatprep.subr.mxu0 0.0
    %1292 = vmatpush2.msra.mxu0 0.0
    %1293 = vmatprep.subr.mxu0 0.0
    %1294 = vmatpush2.msra.mxu0 0.0
    %1295 = vmatprep.subr.mxu0 0.0
    %1296 = vmatpush2.msra.mxu0 0.0
    %1297 = vmatprep.subr.mxu0 0.0
    %1298 = vmatpush2.msra.mxu0 0.0
    %1299 = vmatprep.subr.mxu0 0.0
    %1300 = vmatpush2.msra.mxu0 0.0
    %1301 = vmatprep.subr.mxu0 0.0
    %1302 = vmatpush2.msra.mxu0 0.0
    %1303 = vmatprep.subr.mxu0 0.0
    %1304 = vmatpush2.msra.mxu0 0.0
    %1305 = vmatprep.subr.mxu0 0.0
    %1306 = vmatpush2.msra.mxu0 0.0
    %1307 = vmatprep.mubr.f32.mxu0 0.0
    %1308 = vmatmul.mubr.f32.gmra.mxu0 %v1238
    %v1309 = vpop.f32.mrf.mxu0
    %v1310 = vadd.f32 0.0, %v1309
    %v1311 = vpop.f32.mrf.mxu0
    %1312 = vmatprep.mubr.f32.mxu0 0.0
    %1313 = vmatmul.mubr.f32.gmra.mxu0 %v1241
    %v1314 = vpop.f32.mrf.mxu0
    %v1315 = vadd.f32 0.0, %v1314
    %v1316 = vpop.f32.mrf.mxu0
    %1317 = vdwg.mxu0
    %v1318 = vadd.f32 %v1031, %v1310
    %v1319 = vadd.f32 %v1032, %v1315
    %v1320 = vadd.f32 %v24, %v1318
    %v1321 = vadd.f32 %v25, %v1319
    %v1322 = vlaneseq
    %v1323 = vshrl.u32 %v1322, 7
    %v1324 = vsub.s32 1, %v1323
    %v1325 = vrot.slane %v36, %v1324
    %v1326 = vadd.f32 %v1320, %v1325
    %v1327 = vadd.f32 %v1321, %v1325
    %v1328 = vsel %vm37, %v1326, 0.0
    %1329 = vadd.xlane.f32.xlu0 %v1328
    %v1330 = vpop.xlane.xlu0 %1329
    %v1331 = vsel %vm37, %v1327, 0.0
    %1332 = vadd.xlane.f32.xlu0 %v1331
    %v1333 = vpop.xlane.xlu0 %1332
    %v1334 = vmul.f32 %v1330, %v44
    %v1335 = vmul.f32 %v1333, %v44
    %v1336 = vsub.f32 %v1326, %v1334
    %v1337 = vsub.f32 %v1327, %v1335
    %v1338 = vmul.f32 %v1336, %v1336
    %v1339 = vmul.f32 %v1337, %v1337
    %v1340 = vsel %vm37, %v1338, 0.0
    %1341 = vadd.xlane.f32.xlu0 %v1340
    %v1342 = vpop.xlane.xlu0 %1341
    %v1343 = vsel %vm37, %v1339, 0.0
    %1344 = vadd.xlane.f32.xlu0 %v1343
    %v1345 = vpop.xlane.xlu0 %1344
    %v1346 = vmul.f32 %v1342, 0.032258064
    %v1347 = vmul.f32 %v1345, 0.032258064
    %v1348 = vrsqrt.pop %v1346
    %v1349 = vmul.f32 %v1346, %v1348
    %vm1350 = vcmp.eq.f32.partialorder %v1346, inf
    %v1351 = vsel %vm1350, %v1346, %v1349
    %vm1352 = vcmp.eq.f32.partialorder %v1346, 0.0
    %v1353 = vand.u32 %v1346, 2147483648
    %v1354 = vsel %vm1352, %v1353, %v1351
    %v1355 = vrsqrt.pop %v1347
    %v1356 = vmul.f32 %v1347, %v1355
    %vm1357 = vcmp.eq.f32.partialorder %v1347, inf
    %v1358 = vsel %vm1357, %v1347, %v1356
    %vm1359 = vcmp.eq.f32.partialorder %v1347, 0.0
    %v1360 = vand.u32 %v1347, 2147483648
    %v1361 = vsel %vm1359, %v1360, %v1358
    %v1362 = vadd.f32 %v1354, 1e-06
    %v1363 = vadd.f32 %v1361, 1e-06
    %v1364 = vrcp.pop %v1362
    %v1365 = vrcp.pop %v1363
    %v1366 = vlaneseq
    %v1367 = vshrl.u32 %v1366, 7
    %v1368 = vsub.s32 6, %v1367
    %v1369 = vrot.slane %v36, %v1368
    %v1370 = vmul.f32 %v1369, %v1336
    %v1371 = vmul.f32 %v1369, %v1337
    %v1372 = vmul.f32 %v1370, %v1364
    %v1373 = vmul.f32 %v1371, %v1365
    %v1374 = vlaneseq
    %v1375 = vshrl.u32 %v1374, 7
    %v1376 = vsub.s32 7, %v1375
    %v1377 = vrot.slane %v36, %v1376
    %v1378 = vadd.f32 %v1372, %v1377
    %v1379 = vadd.f32 %v1373, %v1377
    %v1380 = vlaneseq
    %v1381 = vshrl.u32 %v1380, 7
    %v1382 = vsub.s32 2, %v1381
    %v1383 = vrot.slane %v36, %v1382
    %v1385 = vsel %vm37, %v1378, 0
    %v1388 = vsel %vm37, %v1379, 0
    %1390 = vmatprep.subr.mxu0 0.0
    %1391 = vmatpush1.msra.mxu0 0.0
    %1392 = vmatprep.subr.mxu0 0.0
    %1393 = vmatpush1.msra.mxu0 0.0
    %1394 = vmatprep.subr.mxu0 0.0
    %1395 = vmatpush1.msra.mxu0 0.0
    %1396 = vmatprep.subr.mxu0 0.0
    %1397 = vmatpush1.msra.mxu0 0.0
    %1398 = vmatprep.subr.mxu0 0.0
    %1399 = vmatpush1.msra.mxu0 0.0
    %1400 = vmatprep.subr.mxu0 0.0
    %1401 = vmatpush1.msra.mxu0 0.0
    %1402 = vmatprep.subr.mxu0 0.0
    %1403 = vmatpush1.msra.mxu0 0.0
    %1404 = vmatprep.subr.mxu0 0.0
    %1405 = vmatpush1.msra.mxu0 0.0
    %1406 = vmatprep.subr.mxu0 0.0
    %1407 = vmatpush1.msra.mxu0 0.0
    %1408 = vmatprep.subr.mxu0 0.0
    %1409 = vmatpush1.msra.mxu0 0.0
    %1410 = vmatprep.subr.mxu0 0.0
    %1411 = vmatpush1.msra.mxu0 0.0
    %1412 = vmatprep.subr.mxu0 0.0
    %1413 = vmatpush1.msra.mxu0 0.0
    %1414 = vmatprep.subr.mxu0 0.0
    %1415 = vmatpush1.msra.mxu0 %v35
    %1416 = vmatprep.subr.mxu0 0.0
    %1417 = vmatpush1.msra.mxu0 %v33
    %1418 = vmatprep.subr.mxu0 0.0
    %1419 = vmatpush1.msra.mxu0 %v31
    %1420 = vmatprep.subr.mxu0 0.0
    %1421 = vmatpush1.msra.mxu0 %v29
    %1422 = vmatprep.subr.mxu0 0.0
    %1423 = vmatpush2.msra.mxu0 0.0
    %1424 = vmatprep.subr.mxu0 0.0
    %1425 = vmatpush2.msra.mxu0 0.0
    %1426 = vmatprep.subr.mxu0 0.0
    %1427 = vmatpush2.msra.mxu0 0.0
    %1428 = vmatprep.subr.mxu0 0.0
    %1429 = vmatpush2.msra.mxu0 0.0
    %1430 = vmatprep.subr.mxu0 0.0
    %1431 = vmatpush2.msra.mxu0 0.0
    %1432 = vmatprep.subr.mxu0 0.0
    %1433 = vmatpush2.msra.mxu0 0.0
    %1434 = vmatprep.subr.mxu0 0.0
    %1435 = vmatpush2.msra.mxu0 0.0
    %1436 = vmatprep.subr.mxu0 0.0
    %1437 = vmatpush2.msra.mxu0 0.0
    %1438 = vmatprep.subr.mxu0 0.0
    %1439 = vmatpush2.msra.mxu0 0.0
    %1440 = vmatprep.subr.mxu0 0.0
    %1441 = vmatpush2.msra.mxu0 0.0
    %1442 = vmatprep.subr.mxu0 0.0
    %1443 = vmatpush2.msra.mxu0 0.0
    %1444 = vmatprep.subr.mxu0 0.0
    %1445 = vmatpush2.msra.mxu0 0.0
    %1446 = vmatprep.subr.mxu0 0.0
    %1447 = vmatpush2.msra.mxu0 0.0
    %1448 = vmatprep.subr.mxu0 0.0
    %1449 = vmatpush2.msra.mxu0 0.0
    %1450 = vmatprep.subr.mxu0 0.0
    %1451 = vmatpush2.msra.mxu0 0.0
    %1452 = vmatprep.subr.mxu0 0.0
    %1453 = vmatpush2.msra.mxu0 0.0
    %1454 = vmatprep.mubr.f32.mxu0 0.0
    %1455 = vmatmul.mubr.f32.gmra.mxu0 %v1385
    %v1456 = vpop.f32.mrf.mxu0
    %v1457 = vadd.f32 %v1383, %v1456
    %v1458 = vpop.f32.mrf.mxu0
    %1459 = vmatprep.mubr.f32.mxu0 0.0
    %1460 = vmatmul.mubr.f32.gmra.mxu0 %v1388
    %v1461 = vpop.f32.mrf.mxu0
    %v1462 = vadd.f32 %v1383, %v1461
    %v1463 = vpop.f32.mrf.mxu0
    %1464 = vdwg.mxu0
    %v1465 = vmax.f32 %v1457, 0.0
    %v1466 = vmax.f32 %v1462, 0.0
    %v1467 = vld [vmem:[%s3] sm:$0xff]
    %v1468 = vld [vmem:[%s3 + $0x8] sm:$0xff]
    %v1469 = vld [vmem:[%s3 + $0x10] sm:$0xff]
    %v1470 = vld [vmem:[%s3 + $0x18] sm:$0xff]
    %v1471 = vld [vmem:[%s3 + $0x20] sm:$0xff]
    %v1472 = vld [vmem:[%s3 + $0x28] sm:$0xff]
    %v1473 = vld [vmem:[%s3 + $0x30] sm:$0xff]
    %v1474 = vld [vmem:[%s3 + $0x38] sm:$0xff]
    %vm1475 = vcmask 523264
    %v1477 = vsel %vm1475, %v1465, 0
    %v1480 = vsel %vm1475, %v1466, 0
    %1482 = vmatprep.subr.mxu0 0.0
    %1483 = vmatpush1.msra.mxu0 0.0
    %1484 = vmatprep.subr.mxu0 0.0
    %1485 = vmatpush1.msra.mxu0 0.0
    %1486 = vmatprep.subr.mxu0 0.0
    %1487 = vmatpush1.msra.mxu0 0.0
    %1488 = vmatprep.subr.mxu0 0.0
    %1489 = vmatpush1.msra.mxu0 0.0
    %1490 = vmatprep.subr.mxu0 0.0
    %1491 = vmatpush1.msra.mxu0 0.0
    %1492 = vmatprep.subr.mxu0 0.0
    %1493 = vmatpush1.msra.mxu0 0.0
    %1494 = vmatprep.subr.mxu0 0.0
    %1495 = vmatpush1.msra.mxu0 0.0
    %1496 = vmatprep.subr.mxu0 0.0
    %1497 = vmatpush1.msra.mxu0 0.0
    %1498 = vmatprep.subr.mxu0 0.0
    %1499 = vmatpush1.msra.mxu0 %v1474
    %1500 = vmatprep.subr.mxu0 0.0
    %1501 = vmatpush1.msra.mxu0 %v1473
    %1502 = vmatprep.subr.mxu0 0.0
    %1503 = vmatpush1.msra.mxu0 %v1472
    %1504 = vmatprep.subr.mxu0 0.0
    %1505 = vmatpush1.msra.mxu0 %v1471
    %1506 = vmatprep.subr.mxu0 0.0
    %1507 = vmatpush1.msra.mxu0 %v1470
    %1508 = vmatprep.subr.mxu0 0.0
    %1509 = vmatpush1.msra.mxu0 %v1469
    %1510 = vmatprep.subr.mxu0 0.0
    %1511 = vmatpush1.msra.mxu0 %v1468
    %1512 = vmatprep.subr.mxu0 0.0
    %1513 = vmatpush1.msra.mxu0 %v1467
    %1514 = vmatprep.subr.mxu0 0.0
    %1515 = vmatpush2.msra.mxu0 0.0
    %1516 = vmatprep.subr.mxu0 0.0
    %1517 = vmatpush2.msra.mxu0 0.0
    %1518 = vmatprep.subr.mxu0 0.0
    %1519 = vmatpush2.msra.mxu0 0.0
    %1520 = vmatprep.subr.mxu0 0.0
    %1521 = vmatpush2.msra.mxu0 0.0
    %1522 = vmatprep.subr.mxu0 0.0
    %1523 = vmatpush2.msra.mxu0 0.0
    %1524 = vmatprep.subr.mxu0 0.0
    %1525 = vmatpush2.msra.mxu0 0.0
    %1526 = vmatprep.subr.mxu0 0.0
    %1527 = vmatpush2.msra.mxu0 0.0
    %1528 = vmatprep.subr.mxu0 0.0
    %1529 = vmatpush2.msra.mxu0 0.0
    %1530 = vmatprep.subr.mxu0 0.0
    %1531 = vmatpush2.msra.mxu0 0.0
    %1532 = vmatprep.subr.mxu0 0.0
    %1533 = vmatpush2.msra.mxu0 0.0
    %1534 = vmatprep.subr.mxu0 0.0
    %1535 = vmatpush2.msra.mxu0 0.0
    %1536 = vmatprep.subr.mxu0 0.0
    %1537 = vmatpush2.msra.mxu0 0.0
    %1538 = vmatprep.subr.mxu0 0.0
    %1539 = vmatpush2.msra.mxu0 0.0
    %1540 = vmatprep.subr.mxu0 0.0
    %1541 = vmatpush2.msra.mxu0 0.0
    %1542 = vmatprep.subr.mxu0 0.0
    %1543 = vmatpush2.msra.mxu0 0.0
    %1544 = vmatprep.subr.mxu0 0.0
    %1545 = vmatpush2.msra.mxu0 0.0
    %1546 = vmatprep.mubr.f32.mxu0 0.0
    %1547 = vmatmul.mubr.f32.gmra.mxu0 %v1477
    %v1548 = vpop.f32.mrf.mxu0
    %v1549 = vadd.f32 0.0, %v1548
    %v1550 = vpop.f32.mrf.mxu0
    %1551 = vmatprep.mubr.f32.mxu0 0.0
    %1552 = vmatmul.mubr.f32.gmra.mxu0 %v1480
    %v1553 = vpop.f32.mrf.mxu0
    %v1554 = vadd.f32 0.0, %v1553
    %v1555 = vpop.f32.mrf.mxu0
    %1556 = vdwg.mxu0
    %v1557 = vadd.f32 %v1326, %v1549
    %v1558 = vadd.f32 %v1327, %v1554
    %v1559 = vlaneseq
    %v1560 = vshrl.u32 %v1559, 7
    %v1561 = vsub.s32 3, %v1560
    %v1562 = vrot.slane %v36, %v1561
    %v1563 = vadd.f32 %v1557, %v1562
    %v1564 = vadd.f32 %v1558, %v1562
    %s1565 = scalar_lea.vmem %s2, 64
    %v1566 = vld [vmem:[%s1565] sm:$0xff]
    %v1567 = vld [vmem:[%s1565 + $0x8] sm:$0xff]
    %v1568 = vld [vmem:[%s1565 + $0x10] sm:$0xff]
    %v1569 = vld [vmem:[%s1565 + $0x18] sm:$0xff]
    %v1570 = vld [vmem:[%s1565 + $0x20] sm:$0xff]
    %v1571 = vld [vmem:[%s1565 + $0x28] sm:$0xff]
    %v1572 = vld [vmem:[%s1565 + $0x30] sm:$0xff]
    %v1573 = vld [vmem:[%s1565 + $0x38] sm:$0xff]
    %s1574 = scalar_lea.vmem %s4, 8
    %v1575 = vld [vmem:[%s1574] sm:$0xff]
    %v1576 = vsel %vm37, %v1563, 0.0
    %1577 = vadd.xlane.f32.xlu0 %v1576
    %v1578 = vpop.xlane.xlu0 %1577
    %v1579 = vsel %vm37, %v1564, 0.0
    %1580 = vadd.xlane.f32.xlu0 %v1579
    %v1581 = vpop.xlane.xlu0 %1580
    %v1582 = vmul.f32 %v1578, %v44
    %v1583 = vmul.f32 %v1581, %v44
    %v1584 = vsub.f32 %v1563, %v1582
    %v1585 = vsub.f32 %v1564, %v1583
    %v1586 = vmul.f32 %v1584, %v1584
    %v1587 = vmul.f32 %v1585, %v1585
    %v1588 = vsel %vm37, %v1586, 0.0
    %1589 = vadd.xlane.f32.xlu0 %v1588
    %v1590 = vpop.xlane.xlu0 %1589
    %v1591 = vsel %vm37, %v1587, 0.0
    %1592 = vadd.xlane.f32.xlu0 %v1591
    %v1593 = vpop.xlane.xlu0 %1592
    %v1594 = vmul.f32 %v1590, 0.032258064
    %v1595 = vmul.f32 %v1593, 0.032258064
    %v1596 = vrsqrt.pop %v1594
    %v1597 = vmul.f32 %v1594, %v1596
    %vm1598 = vcmp.eq.f32.partialorder %v1594, inf
    %v1599 = vsel %vm1598, %v1594, %v1597
    %vm1600 = vcmp.eq.f32.partialorder %v1594, 0.0
    %v1601 = vand.u32 %v1594, 2147483648
    %v1602 = vsel %vm1600, %v1601, %v1599
    %v1603 = vrsqrt.pop %v1595
    %v1604 = vmul.f32 %v1595, %v1603
    %vm1605 = vcmp.eq.f32.partialorder %v1595, inf
    %v1606 = vsel %vm1605, %v1595, %v1604
    %vm1607 = vcmp.eq.f32.partialorder %v1595, 0.0
    %v1608 = vand.u32 %v1595, 2147483648
    %v1609 = vsel %vm1607, %v1608, %v1606
    %v1610 = vadd.f32 %v1602, 1e-06
    %v1611 = vadd.f32 %v1609, 1e-06
    %v1612 = vrcp.pop %v1610
    %v1613 = vrcp.pop %v1611
    %v1614 = vlaneseq
    %v1615 = vshrl.u32 %v1614, 7
    %v1616 = vsub.s32 4, %v1615
    %v1617 = vrot.slane %v1575, %v1616
    %v1618 = vmul.f32 %v1617, %v1584
    %v1619 = vmul.f32 %v1617, %v1585
    %v1620 = vmul.f32 %v1618, %v1612
    %v1621 = vmul.f32 %v1619, %v1613
    %v1622 = vlaneseq
    %v1623 = vshrl.u32 %v1622, 7
    %v1624 = vsub.s32 5, %v1623
    %v1625 = vrot.slane %v1575, %v1624
    %v1626 = vadd.f32 %v1620, %v1625
    %v1627 = vadd.f32 %v1621, %v1625
    %v1628 = vlaneseq
    %v1629 = vshrl.u32 %v1628, 7
    %v1630 = vsub.s32 0, %v1629
    %v1631 = vrot.slane %v1575, %v1630
    %v1633 = vsel %vm37, %v1626, 0
    %v1636 = vsel %vm37, %v1627, 0
    %1638 = vmatprep.subr.mxu0 0.0
    %1639 = vmatpush1.msra.mxu0 0.0
    %1640 = vmatprep.subr.mxu0 0.0
    %1641 = vmatpush1.msra.mxu0 0.0
    %1642 = vmatprep.subr.mxu0 0.0
    %1643 = vmatpush1.msra.mxu0 0.0
    %1644 = vmatprep.subr.mxu0 0.0
    %1645 = vmatpush1.msra.mxu0 0.0
    %1646 = vmatprep.subr.mxu0 0.0
    %1647 = vmatpush1.msra.mxu0 0.0
    %1648 = vmatprep.subr.mxu0 0.0
    %1649 = vmatpush1.msra.mxu0 0.0
    %1650 = vmatprep.subr.mxu0 0.0
    %1651 = vmatpush1.msra.mxu0 0.0
    %1652 = vmatprep.subr.mxu0 0.0
    %1653 = vmatpush1.msra.mxu0 0.0
    %1654 = vmatprep.subr.mxu0 0.0
    %1655 = vmatpush1.msra.mxu0 0.0
    %1656 = vmatprep.subr.mxu0 0.0
    %1657 = vmatpush1.msra.mxu0 0.0
    %1658 = vmatprep.subr.mxu0 0.0
    %1659 = vmatpush1.msra.mxu0 0.0
    %1660 = vmatprep.subr.mxu0 0.0
    %1661 = vmatpush1.msra.mxu0 0.0
    %1662 = vmatprep.subr.mxu0 0.0
    %1663 = vmatpush1.msra.mxu0 %v1572
    %1664 = vmatprep.subr.mxu0 0.0
    %1665 = vmatpush1.msra.mxu0 %v1570
    %1666 = vmatprep.subr.mxu0 0.0
    %1667 = vmatpush1.msra.mxu0 %v1568
    %1668 = vmatprep.subr.mxu0 0.0
    %1669 = vmatpush1.msra.mxu0 %v1566
    %1670 = vmatprep.subr.mxu0 0.0
    %1671 = vmatpush2.msra.mxu0 0.0
    %1672 = vmatprep.subr.mxu0 0.0
    %1673 = vmatpush2.msra.mxu0 0.0
    %1674 = vmatprep.subr.mxu0 0.0
    %1675 = vmatpush2.msra.mxu0 0.0
    %1676 = vmatprep.subr.mxu0 0.0
    %1677 = vmatpush2.msra.mxu0 0.0
    %1678 = vmatprep.subr.mxu0 0.0
    %1679 = vmatpush2.msra.mxu0 0.0
    %1680 = vmatprep.subr.mxu0 0.0
    %1681 = vmatpush2.msra.mxu0 0.0
    %1682 = vmatprep.subr.mxu0 0.0
    %1683 = vmatpush2.msra.mxu0 0.0
    %1684 = vmatprep.subr.mxu0 0.0
    %1685 = vmatpush2.msra.mxu0 0.0
    %1686 = vmatprep.subr.mxu0 0.0
    %1687 = vmatpush2.msra.mxu0 0.0
    %1688 = vmatprep.subr.mxu0 0.0
    %1689 = vmatpush2.msra.mxu0 0.0
    %1690 = vmatprep.subr.mxu0 0.0
    %1691 = vmatpush2.msra.mxu0 0.0
    %1692 = vmatprep.subr.mxu0 0.0
    %1693 = vmatpush2.msra.mxu0 0.0
    %1694 = vmatprep.subr.mxu0 0.0
    %1695 = vmatpush2.msra.mxu0 0.0
    %1696 = vmatprep.subr.mxu0 0.0
    %1697 = vmatpush2.msra.mxu0 0.0
    %1698 = vmatprep.subr.mxu0 0.0
    %1699 = vmatpush2.msra.mxu0 0.0
    %1700 = vmatprep.subr.mxu0 0.0
    %1701 = vmatpush2.msra.mxu0 0.0
    %1702 = vmatprep.mubr.f32.mxu0 0.0
    %1703 = vmatmul.mubr.f32.gmra.mxu0 %v1633
    %v1704 = vpop.f32.mrf.mxu0
    %v1705 = vadd.f32 %v1631, %v1704
    %v1706 = vpop.f32.mrf.mxu0
    %1707 = vmatprep.mubr.f32.mxu0 0.0
    %1708 = vmatmul.mubr.f32.gmra.mxu0 %v1636
    %v1709 = vpop.f32.mrf.mxu0
    %v1710 = vadd.f32 %v1631, %v1709
    %v1711 = vpop.f32.mrf.mxu0
    %1712 = vdwg.mxu0
    %1715 = vrot.lane.b32.xlu0 %v1705, 96
    %v1716 = vpop.permute.xlu0 %1715
    %1717 = vrot.lane.b32.xlu0 %v1710, 96
    %v1718 = vpop.permute.xlu0 %1717
    %v1719 = vsel %vm182, %v1705, 0
    %v1721 = vsel %vm182, %v1710, 0
    %v1723 = vsel %vm182, %v1716, 0
    %v1725 = vsel %vm182, %v1718, 0
    %1727 = vmatprep.subr.mxu0 0.0
    %1728 = vmatpush1.xpose.msra.mxu0 0.0
    %1729 = vmatprep.subr.mxu0 0.0
    %1730 = vmatpush1.xpose.msra.mxu0 0.0
    %1731 = vmatprep.subr.mxu0 0.0
    %1732 = vmatpush1.xpose.msra.mxu0 0.0
    %1733 = vmatprep.subr.mxu0 0.0
    %1734 = vmatpush1.xpose.msra.mxu0 0.0
    %1735 = vmatprep.subr.mxu0 0.0
    %1736 = vmatpush1.xpose.msra.mxu0 0.0
    %1737 = vmatprep.subr.mxu0 0.0
    %1738 = vmatpush1.xpose.msra.mxu0 0.0
    %1739 = vmatprep.subr.mxu0 0.0
    %1740 = vmatpush1.xpose.msra.mxu0 0.0
    %1741 = vmatprep.subr.mxu0 0.0
    %1742 = vmatpush1.xpose.msra.mxu0 0.0
    %1743 = vmatprep.subr.mxu0 0.0
    %1744 = vmatpush1.xpose.msra.mxu0 0.0
    %1745 = vmatprep.subr.mxu0 0.0
    %1746 = vmatpush1.xpose.msra.mxu0 0.0
    %1747 = vmatprep.subr.mxu0 0.0
    %1748 = vmatpush1.xpose.msra.mxu0 0.0
    %1749 = vmatprep.subr.mxu0 0.0
    %1750 = vmatpush1.xpose.msra.mxu0 0.0
    %1751 = vmatprep.subr.mxu0 0.0
    %1752 = vmatpush1.xpose.msra.mxu0 0.0
    %1753 = vmatprep.subr.mxu0 0.0
    %1754 = vmatpush1.xpose.msra.mxu0 0.0
    %1755 = vmatprep.subr.mxu0 0.0
    %1756 = vmatpush1.xpose.msra.mxu0 %v1725
    %1757 = vmatprep.subr.mxu0 0.0
    %1758 = vmatpush1.xpose.msra.mxu0 %v1723
    %1759 = vmatprep.subr.mxu0 0.0
    %1760 = vmatpush2.xpose.msra.mxu0 0.0
    %1761 = vmatprep.subr.mxu0 0.0
    %1762 = vmatpush2.xpose.msra.mxu0 0.0
    %1763 = vmatprep.subr.mxu0 0.0
    %1764 = vmatpush2.xpose.msra.mxu0 0.0
    %1765 = vmatprep.subr.mxu0 0.0
    %1766 = vmatpush2.xpose.msra.mxu0 0.0
    %1767 = vmatprep.subr.mxu0 0.0
    %1768 = vmatpush2.xpose.msra.mxu0 0.0
    %1769 = vmatprep.subr.mxu0 0.0
    %1770 = vmatpush2.xpose.msra.mxu0 0.0
    %1771 = vmatprep.subr.mxu0 0.0
    %1772 = vmatpush2.xpose.msra.mxu0 0.0
    %1773 = vmatprep.subr.mxu0 0.0
    %1774 = vmatpush2.xpose.msra.mxu0 0.0
    %1775 = vmatprep.subr.mxu0 0.0
    %1776 = vmatpush2.xpose.msra.mxu0 0.0
    %1777 = vmatprep.subr.mxu0 0.0
    %1778 = vmatpush2.xpose.msra.mxu0 0.0
    %1779 = vmatprep.subr.mxu0 0.0
    %1780 = vmatpush2.xpose.msra.mxu0 0.0
    %1781 = vmatprep.subr.mxu0 0.0
    %1782 = vmatpush2.xpose.msra.mxu0 0.0
    %1783 = vmatprep.subr.mxu0 0.0
    %1784 = vmatpush2.xpose.msra.mxu0 0.0
    %1785 = vmatprep.subr.mxu0 0.0
    %1786 = vmatpush2.xpose.msra.mxu0 0.0
    %1787 = vmatprep.subr.mxu0 0.0
    %1788 = vmatpush2.xpose.msra.mxu0 0.0
    %1789 = vmatprep.subr.mxu0 0.0
    %1790 = vmatpush2.xpose.msra.mxu0 0.0
    %1791 = vmatprep.mubr.f32.mxu0 0.0
    %1792 = vmatmul.mubr.f32.gmra.mxu0 %v1719
    %v1793 = vpop.f32.mrf.mxu0
    %v1794 = vadd.f32 %v26, %v1793
    %v1795 = vpop.f32.mrf.mxu0
    %1796 = vmatprep.mubr.f32.mxu0 0.0
    %1797 = vmatmul.mubr.f32.gmra.mxu0 %v1721
    %v1798 = vpop.f32.mrf.mxu0
    %v1799 = vadd.f32 %v27, %v1798
    %v1800 = vpop.f32.mrf.mxu0
    %1801 = vdwg.mxu0
    %v1802 = vsel %vm266, %v1794, -inf
    %1803 = vmax.xlane.f32.xlu0 %v1802
    %v1804 = vpop.xlane.xlu0 %1803
    %v1805 = vsel %vm266, %v1799, -inf
    %1806 = vmax.xlane.f32.xlu0 %v1805
    %v1807 = vpop.xlane.xlu0 %1806
    %v1808 = vsub.f32 %v1794, %v1804
    %v1809 = vsub.f32 %v1799, %v1807
    %v1810 = vmul.f32 %v1808, 1.442695
    %v1811 = vpow.pop %v1810
    %v1812 = vmul.f32 %v1809, 1.442695
    %v1813 = vpow.pop %v1812
    %v1814 = vsel %vm266, %v1811, 0.0
    %1815 = vadd.xlane.f32.xlu0 %v1814
    %v1816 = vpop.xlane.xlu0 %1815
    %v1817 = vsel %vm266, %v1813, 0.0
    %1818 = vadd.xlane.f32.xlu0 %v1817
    %v1819 = vpop.xlane.xlu0 %1818
    %v1820 = vrcp.pop %v1816
    %v1821 = vrcp.pop %v1819
    %v1822 = vmul.f32 %v1811, %v1820
    %v1823 = vmul.f32 %v1813, %v1821
    %1824 = vrot.lane.b32.xlu0 %v1705, 64
    %v1825 = vpop.permute.xlu0 %1824
    %1826 = vrot.lane.b32.xlu0 %v1710, 64
    %v1827 = vpop.permute.xlu0 %1826
    %v1831 = vsel %vm266, %v1822, 0
    %v1834 = vsel %vm266, %v1823, 0
    %1836 = vmatprep.subr.mxu0 0.0
    %1837 = vmatpush1.msra.mxu0 0.0
    %1838 = vmatprep.subr.mxu0 0.0
    %1839 = vmatpush1.msra.mxu0 0.0
    %1840 = vmatprep.subr.mxu0 0.0
    %1841 = vmatpush1.msra.mxu0 0.0
    %1842 = vmatprep.subr.mxu0 0.0
    %1843 = vmatpush1.msra.mxu0 0.0
    %1844 = vmatprep.subr.mxu0 0.0
    %1845 = vmatpush1.msra.mxu0 0.0
    %1846 = vmatprep.subr.mxu0 0.0
    %1847 = vmatpush1.msra.mxu0 0.0
    %1848 = vmatprep.subr.mxu0 0.0
    %1849 = vmatpush1.msra.mxu0 0.0
    %1850 = vmatprep.subr.mxu0 0.0
    %1851 = vmatpush1.msra.mxu0 0.0
    %1852 = vmatprep.subr.mxu0 0.0
    %1853 = vmatpush1.msra.mxu0 0.0
    %1854 = vmatprep.subr.mxu0 0.0
    %1855 = vmatpush1.msra.mxu0 0.0
    %1856 = vmatprep.subr.mxu0 0.0
    %1857 = vmatpush1.msra.mxu0 0.0
    %1858 = vmatprep.subr.mxu0 0.0
    %1859 = vmatpush1.msra.mxu0 0.0
    %1860 = vmatprep.subr.mxu0 0.0
    %1861 = vmatpush1.msra.mxu0 0.0
    %1862 = vmatprep.subr.mxu0 0.0
    %1863 = vmatpush1.msra.mxu0 0.0
    %1864 = vmatprep.subr.mxu0 0.0
    %1865 = vmatpush1.msra.mxu0 %v1827
    %1866 = vmatprep.subr.mxu0 0.0
    %1867 = vmatpush1.msra.mxu0 %v1825
    %1868 = vmatprep.subr.mxu0 0.0
    %1869 = vmatpush2.msra.mxu0 0.0
    %1870 = vmatprep.subr.mxu0 0.0
    %1871 = vmatpush2.msra.mxu0 0.0
    %1872 = vmatprep.subr.mxu0 0.0
    %1873 = vmatpush2.msra.mxu0 0.0
    %1874 = vmatprep.subr.mxu0 0.0
    %1875 = vmatpush2.msra.mxu0 0.0
    %1876 = vmatprep.subr.mxu0 0.0
    %1877 = vmatpush2.msra.mxu0 0.0
    %1878 = vmatprep.subr.mxu0 0.0
    %1879 = vmatpush2.msra.mxu0 0.0
    %1880 = vmatprep.subr.mxu0 0.0
    %1881 = vmatpush2.msra.mxu0 0.0
    %1882 = vmatprep.subr.mxu0 0.0
    %1883 = vmatpush2.msra.mxu0 0.0
    %1884 = vmatprep.subr.mxu0 0.0
    %1885 = vmatpush2.msra.mxu0 0.0
    %1886 = vmatprep.subr.mxu0 0.0
    %1887 = vmatpush2.msra.mxu0 0.0
    %1888 = vmatprep.subr.mxu0 0.0
    %1889 = vmatpush2.msra.mxu0 0.0
    %1890 = vmatprep.subr.mxu0 0.0
    %1891 = vmatpush2.msra.mxu0 0.0
    %1892 = vmatprep.subr.mxu0 0.0
    %1893 = vmatpush2.msra.mxu0 0.0
    %1894 = vmatprep.subr.mxu0 0.0
    %1895 = vmatpush2.msra.mxu0 0.0
    %1896 = vmatprep.subr.mxu0 0.0
    %1897 = vmatpush2.msra.mxu0 0.0
    %1898 = vmatprep.subr.mxu0 0.0
    %1899 = vmatpush2.msra.mxu0 0.0
    %1900 = vmatprep.mubr.f32.mxu0 0.0
    %1901 = vmatmul.mubr.f32.gmra.mxu0 %v1831
    %v1902 = vpop.f32.mrf.mxu0
    %v1903 = vadd.f32 0.0, %v1902
    %v1904 = vpop.f32.mrf.mxu0
    %1905 = vmatprep.mubr.f32.mxu0 0.0
    %1906 = vmatmul.mubr.f32.gmra.mxu0 %v1834
    %v1907 = vpop.f32.mrf.mxu0
    %v1908 = vadd.f32 0.0, %v1907
    %v1909 = vpop.f32.mrf.mxu0
    %1910 = vdwg.mxu0
    %1911 = vrot.lane.b32.xlu0 %v1705, 120
    %v1912 = vpop.permute.xlu0 %1911
    %1913 = vrot.lane.b32.xlu0 %v1710, 120
    %v1914 = vpop.permute.xlu0 %1913
    %1915 = vrot.lane.b32.xlu0 %v1705, 88
    %v1916 = vpop.permute.xlu0 %1915
    %1917 = vrot.lane.b32.xlu0 %v1710, 88
    %v1918 = vpop.permute.xlu0 %1917
    %v1919 = vsel %vm182, %v1912, 0
    %v1921 = vsel %vm182, %v1914, 0
    %v1923 = vsel %vm182, %v1916, 0
    %v1925 = vsel %vm182, %v1918, 0
    %1927 = vmatprep.subr.mxu0 0.0
    %1928 = vmatpush1.xpose.msra.mxu0 0.0
    %1929 = vmatprep.subr.mxu0 0.0
    %1930 = vmatpush1.xpose.msra.mxu0 0.0
    %1931 = vmatprep.subr.mxu0 0.0
    %1932 = vmatpush1.xpose.msra.mxu0 0.0
    %1933 = vmatprep.subr.mxu0 0.0
    %1934 = vmatpush1.xpose.msra.mxu0 0.0
    %1935 = vmatprep.subr.mxu0 0.0
    %1936 = vmatpush1.xpose.msra.mxu0 0.0
    %1937 = vmatprep.subr.mxu0 0.0
    %1938 = vmatpush1.xpose.msra.mxu0 0.0
    %1939 = vmatprep.subr.mxu0 0.0
    %1940 = vmatpush1.xpose.msra.mxu0 0.0
    %1941 = vmatprep.subr.mxu0 0.0
    %1942 = vmatpush1.xpose.msra.mxu0 0.0
    %1943 = vmatprep.subr.mxu0 0.0
    %1944 = vmatpush1.xpose.msra.mxu0 0.0
    %1945 = vmatprep.subr.mxu0 0.0
    %1946 = vmatpush1.xpose.msra.mxu0 0.0
    %1947 = vmatprep.subr.mxu0 0.0
    %1948 = vmatpush1.xpose.msra.mxu0 0.0
    %1949 = vmatprep.subr.mxu0 0.0
    %1950 = vmatpush1.xpose.msra.mxu0 0.0
    %1951 = vmatprep.subr.mxu0 0.0
    %1952 = vmatpush1.xpose.msra.mxu0 0.0
    %1953 = vmatprep.subr.mxu0 0.0
    %1954 = vmatpush1.xpose.msra.mxu0 0.0
    %1955 = vmatprep.subr.mxu0 0.0
    %1956 = vmatpush1.xpose.msra.mxu0 %v1925
    %1957 = vmatprep.subr.mxu0 0.0
    %1958 = vmatpush1.xpose.msra.mxu0 %v1923
    %1959 = vmatprep.subr.mxu0 0.0
    %1960 = vmatpush2.xpose.msra.mxu0 0.0
    %1961 = vmatprep.subr.mxu0 0.0
    %1962 = vmatpush2.xpose.msra.mxu0 0.0
    %1963 = vmatprep.subr.mxu0 0.0
    %1964 = vmatpush2.xpose.msra.mxu0 0.0
    %1965 = vmatprep.subr.mxu0 0.0
    %1966 = vmatpush2.xpose.msra.mxu0 0.0
    %1967 = vmatprep.subr.mxu0 0.0
    %1968 = vmatpush2.xpose.msra.mxu0 0.0
    %1969 = vmatprep.subr.mxu0 0.0
    %1970 = vmatpush2.xpose.msra.mxu0 0.0
    %1971 = vmatprep.subr.mxu0 0.0
    %1972 = vmatpush2.xpose.msra.mxu0 0.0
    %1973 = vmatprep.subr.mxu0 0.0
    %1974 = vmatpush2.xpose.msra.mxu0 0.0
    %1975 = vmatprep.subr.mxu0 0.0
    %1976 = vmatpush2.xpose.msra.mxu0 0.0
    %1977 = vmatprep.subr.mxu0 0.0
    %1978 = vmatpush2.xpose.msra.mxu0 0.0
    %1979 = vmatprep.subr.mxu0 0.0
    %1980 = vmatpush2.xpose.msra.mxu0 0.0
    %1981 = vmatprep.subr.mxu0 0.0
    %1982 = vmatpush2.xpose.msra.mxu0 0.0
    %1983 = vmatprep.subr.mxu0 0.0
    %1984 = vmatpush2.xpose.msra.mxu0 0.0
    %1985 = vmatprep.subr.mxu0 0.0
    %1986 = vmatpush2.xpose.msra.mxu0 0.0
    %1987 = vmatprep.subr.mxu0 0.0
    %1988 = vmatpush2.xpose.msra.mxu0 0.0
    %1989 = vmatprep.subr.mxu0 0.0
    %1990 = vmatpush2.xpose.msra.mxu0 0.0
    %1991 = vmatprep.mubr.f32.mxu0 0.0
    %1992 = vmatmul.mubr.f32.gmra.mxu0 %v1919
    %v1993 = vpop.f32.mrf.mxu0
    %v1994 = vadd.f32 %v26, %v1993
    %v1995 = vpop.f32.mrf.mxu0
    %1996 = vmatprep.mubr.f32.mxu0 0.0
    %1997 = vmatmul.mubr.f32.gmra.mxu0 %v1921
    %v1998 = vpop.f32.mrf.mxu0
    %v1999 = vadd.f32 %v27, %v1998
    %v2000 = vpop.f32.mrf.mxu0
    %2001 = vdwg.mxu0
    %v2002 = vsel %vm266, %v1994, -inf
    %2003 = vmax.xlane.f32.xlu0 %v2002
    %v2004 = vpop.xlane.xlu0 %2003
    %v2005 = vsel %vm266, %v1999, -inf
    %2006 = vmax.xlane.f32.xlu0 %v2005
    %v2007 = vpop.xlane.xlu0 %2006
    %v2008 = vsub.f32 %v1994, %v2004
    %v2009 = vsub.f32 %v1999, %v2007
    %v2010 = vmul.f32 %v2008, 1.442695
    %v2011 = vpow.pop %v2010
    %v2012 = vmul.f32 %v2009, 1.442695
    %v2013 = vpow.pop %v2012
    %v2014 = vsel %vm266, %v2011, 0.0
    %2015 = vadd.xlane.f32.xlu0 %v2014
    %v2016 = vpop.xlane.xlu0 %2015
    %v2017 = vsel %vm266, %v2013, 0.0
    %2018 = vadd.xlane.f32.xlu0 %v2017
    %v2019 = vpop.xlane.xlu0 %2018
    %v2020 = vrcp.pop %v2016
    %v2021 = vrcp.pop %v2019
    %v2022 = vmul.f32 %v2011, %v2020
    %v2023 = vmul.f32 %v2013, %v2021
    %2024 = vrot.lane.b32.xlu0 %v1705, 56
    %v2025 = vpop.permute.xlu0 %2024
    %2026 = vrot.lane.b32.xlu0 %v1710, 56
    %v2027 = vpop.permute.xlu0 %2026
    %v2031 = vsel %vm266, %v2022, 0
    %v2034 = vsel %vm266, %v2023, 0
    %2036 = vmatprep.subr.mxu0 0.0
    %2037 = vmatpush1.msra.mxu0 0.0
    %2038 = vmatprep.subr.mxu0 0.0
    %2039 = vmatpush1.msra.mxu0 0.0
    %2040 = vmatprep.subr.mxu0 0.0
    %2041 = vmatpush1.msra.mxu0 0.0
    %2042 = vmatprep.subr.mxu0 0.0
    %2043 = vmatpush1.msra.mxu0 0.0
    %2044 = vmatprep.subr.mxu0 0.0
    %2045 = vmatpush1.msra.mxu0 0.0
    %2046 = vmatprep.subr.mxu0 0.0
    %2047 = vmatpush1.msra.mxu0 0.0
    %2048 = vmatprep.subr.mxu0 0.0
    %2049 = vmatpush1.msra.mxu0 0.0
    %2050 = vmatprep.subr.mxu0 0.0
    %2051 = vmatpush1.msra.mxu0 0.0
    %2052 = vmatprep.subr.mxu0 0.0
    %2053 = vmatpush1.msra.mxu0 0.0
    %2054 = vmatprep.subr.mxu0 0.0
    %2055 = vmatpush1.msra.mxu0 0.0
    %2056 = vmatprep.subr.mxu0 0.0
    %2057 = vmatpush1.msra.mxu0 0.0
    %2058 = vmatprep.subr.mxu0 0.0
    %2059 = vmatpush1.msra.mxu0 0.0
    %2060 = vmatprep.subr.mxu0 0.0
    %2061 = vmatpush1.msra.mxu0 0.0
    %2062 = vmatprep.subr.mxu0 0.0
    %2063 = vmatpush1.msra.mxu0 0.0
    %2064 = vmatprep.subr.mxu0 0.0
    %2065 = vmatpush1.msra.mxu0 %v2027
    %2066 = vmatprep.subr.mxu0 0.0
    %2067 = vmatpush1.msra.mxu0 %v2025
    %2068 = vmatprep.subr.mxu0 0.0
    %2069 = vmatpush2.msra.mxu0 0.0
    %2070 = vmatprep.subr.mxu0 0.0
    %2071 = vmatpush2.msra.mxu0 0.0
    %2072 = vmatprep.subr.mxu0 0.0
    %2073 = vmatpush2.msra.mxu0 0.0
    %2074 = vmatprep.subr.mxu0 0.0
    %2075 = vmatpush2.msra.mxu0 0.0
    %2076 = vmatprep.subr.mxu0 0.0
    %2077 = vmatpush2.msra.mxu0 0.0
    %2078 = vmatprep.subr.mxu0 0.0
    %2079 = vmatpush2.msra.mxu0 0.0
    %2080 = vmatprep.subr.mxu0 0.0
    %2081 = vmatpush2.msra.mxu0 0.0
    %2082 = vmatprep.subr.mxu0 0.0
    %2083 = vmatpush2.msra.mxu0 0.0
    %2084 = vmatprep.subr.mxu0 0.0
    %2085 = vmatpush2.msra.mxu0 0.0
    %2086 = vmatprep.subr.mxu0 0.0
    %2087 = vmatpush2.msra.mxu0 0.0
    %2088 = vmatprep.subr.mxu0 0.0
    %2089 = vmatpush2.msra.mxu0 0.0
    %2090 = vmatprep.subr.mxu0 0.0
    %2091 = vmatpush2.msra.mxu0 0.0
    %2092 = vmatprep.subr.mxu0 0.0
    %2093 = vmatpush2.msra.mxu0 0.0
    %2094 = vmatprep.subr.mxu0 0.0
    %2095 = vmatpush2.msra.mxu0 0.0
    %2096 = vmatprep.subr.mxu0 0.0
    %2097 = vmatpush2.msra.mxu0 0.0
    %2098 = vmatprep.subr.mxu0 0.0
    %2099 = vmatpush2.msra.mxu0 0.0
    %2100 = vmatprep.mubr.f32.mxu0 0.0
    %2101 = vmatmul.mubr.f32.gmra.mxu0 %v2031
    %v2102 = vpop.f32.mrf.mxu0
    %v2103 = vadd.f32 0.0, %v2102
    %v2104 = vpop.f32.mrf.mxu0
    %2105 = vmatprep.mubr.f32.mxu0 0.0
    %2106 = vmatmul.mubr.f32.gmra.mxu0 %v2034
    %v2107 = vpop.f32.mrf.mxu0
    %v2108 = vadd.f32 0.0, %v2107
    %v2109 = vpop.f32.mrf.mxu0
    %2110 = vdwg.mxu0
    %2112 = vrot.lane.b32.xlu0 %v1568, 32
    %v2113 = vpop.permute.xlu0 %2112
    %v2116 = vsel %vm182, %v2103, 0
    %v2119 = vsel %vm182, %v2108, 0
    %2121 = vmatprep.subr.mxu0 0.0
    %2122 = vmatpush1.msra.mxu0 0.0
    %2123 = vmatprep.subr.mxu0 0.0
    %2124 = vmatpush1.msra.mxu0 0.0
    %2125 = vmatprep.subr.mxu0 0.0
    %2126 = vmatpush1.msra.mxu0 0.0
    %2127 = vmatprep.subr.mxu0 0.0
    %2128 = vmatpush1.msra.mxu0 0.0
    %2129 = vmatprep.subr.mxu0 0.0
    %2130 = vmatpush1.msra.mxu0 0.0
    %2131 = vmatprep.subr.mxu0 0.0
    %2132 = vmatpush1.msra.mxu0 0.0
    %2133 = vmatprep.subr.mxu0 0.0
    %2134 = vmatpush1.msra.mxu0 0.0
    %2135 = vmatprep.subr.mxu0 0.0
    %2136 = vmatpush1.msra.mxu0 0.0
    %2137 = vmatprep.subr.mxu0 0.0
    %2138 = vmatpush1.msra.mxu0 0.0
    %2139 = vmatprep.subr.mxu0 0.0
    %2140 = vmatpush1.msra.mxu0 0.0
    %2141 = vmatprep.subr.mxu0 0.0
    %2142 = vmatpush1.msra.mxu0 0.0
    %2143 = vmatprep.subr.mxu0 0.0
    %2144 = vmatpush1.msra.mxu0 0.0
    %2145 = vmatprep.subr.mxu0 0.0
    %2146 = vmatpush1.msra.mxu0 0.0
    %2147 = vmatprep.subr.mxu0 0.0
    %2148 = vmatpush1.msra.mxu0 0.0
    %2149 = vmatprep.subr.mxu0 0.0
    %2150 = vmatpush1.msra.mxu0 0.0
    %2151 = vmatprep.subr.mxu0 0.0
    %2152 = vmatpush1.msra.mxu0 %v2113
    %2153 = vmatprep.subr.mxu0 0.0
    %2154 = vmatpush2.msra.mxu0 0.0
    %2155 = vmatprep.subr.mxu0 0.0
    %2156 = vmatpush2.msra.mxu0 0.0
    %2157 = vmatprep.subr.mxu0 0.0
    %2158 = vmatpush2.msra.mxu0 0.0
    %2159 = vmatprep.subr.mxu0 0.0
    %2160 = vmatpush2.msra.mxu0 0.0
    %2161 = vmatprep.subr.mxu0 0.0
    %2162 = vmatpush2.msra.mxu0 0.0
    %2163 = vmatprep.subr.mxu0 0.0
    %2164 = vmatpush2.msra.mxu0 0.0
    %2165 = vmatprep.subr.mxu0 0.0
    %2166 = vmatpush2.msra.mxu0 0.0
    %2167 = vmatprep.subr.mxu0 0.0
    %2168 = vmatpush2.msra.mxu0 0.0
    %2169 = vmatprep.subr.mxu0 0.0
    %2170 = vmatpush2.msra.mxu0 0.0
    %2171 = vmatprep.subr.mxu0 0.0
    %2172 = vmatpush2.msra.mxu0 0.0
    %2173 = vmatprep.subr.mxu0 0.0
    %2174 = vmatpush2.msra.mxu0 0.0
    %2175 = vmatprep.subr.mxu0 0.0
    %2176 = vmatpush2.msra.mxu0 0.0
    %2177 = vmatprep.subr.mxu0 0.0
    %2178 = vmatpush2.msra.mxu0 0.0
    %2179 = vmatprep.subr.mxu0 0.0
    %2180 = vmatpush2.msra.mxu0 0.0
    %2181 = vmatprep.subr.mxu0 0.0
    %2182 = vmatpush2.msra.mxu0 0.0
    %2183 = vmatprep.subr.mxu0 0.0
    %2184 = vmatpush2.msra.mxu0 0.0
    %2185 = vmatprep.mubr.f32.mxu0 0.0
    %2186 = vmatmul.mubr.f32.gmra.mxu0 %v2116
    %v2187 = vpop.f32.mrf.mxu0
    %v2188 = vadd.f32 0.0, %v2187
    %v2189 = vpop.f32.mrf.mxu0
    %2190 = vmatprep.mubr.f32.mxu0 0.0
    %2191 = vmatmul.mubr.f32.gmra.mxu0 %v2119
    %v2192 = vpop.f32.mrf.mxu0
    %v2193 = vadd.f32 0.0, %v2192
    %v2194 = vpop.f32.mrf.mxu0
    %2195 = vdwg.mxu0
    %2197 = vrot.lane.b32.xlu0 %v1566, 32
    %v2198 = vpop.permute.xlu0 %2197
    %v2201 = vsel %vm182, %v1903, 0
    %v2204 = vsel %vm182, %v1908, 0
    %2206 = vmatprep.subr.mxu0 0.0
    %2207 = vmatpush1.msra.mxu0 0.0
    %2208 = vmatprep.subr.mxu0 0.0
    %2209 = vmatpush1.msra.mxu0 0.0
    %2210 = vmatprep.subr.mxu0 0.0
    %2211 = vmatpush1.msra.mxu0 0.0
    %2212 = vmatprep.subr.mxu0 0.0
    %2213 = vmatpush1.msra.mxu0 0.0
    %2214 = vmatprep.subr.mxu0 0.0
    %2215 = vmatpush1.msra.mxu0 0.0
    %2216 = vmatprep.subr.mxu0 0.0
    %2217 = vmatpush1.msra.mxu0 0.0
    %2218 = vmatprep.subr.mxu0 0.0
    %2219 = vmatpush1.msra.mxu0 0.0
    %2220 = vmatprep.subr.mxu0 0.0
    %2221 = vmatpush1.msra.mxu0 0.0
    %2222 = vmatprep.subr.mxu0 0.0
    %2223 = vmatpush1.msra.mxu0 0.0
    %2224 = vmatprep.subr.mxu0 0.0
    %2225 = vmatpush1.msra.mxu0 0.0
    %2226 = vmatprep.subr.mxu0 0.0
    %2227 = vmatpush1.msra.mxu0 0.0
    %2228 = vmatprep.subr.mxu0 0.0
    %2229 = vmatpush1.msra.mxu0 0.0
    %2230 = vmatprep.subr.mxu0 0.0
    %2231 = vmatpush1.msra.mxu0 0.0
    %2232 = vmatprep.subr.mxu0 0.0
    %2233 = vmatpush1.msra.mxu0 0.0
    %2234 = vmatprep.subr.mxu0 0.0
    %2235 = vmatpush1.msra.mxu0 0.0
    %2236 = vmatprep.subr.mxu0 0.0
    %2237 = vmatpush1.msra.mxu0 %v2198
    %2238 = vmatprep.subr.mxu0 0.0
    %2239 = vmatpush2.msra.mxu0 0.0
    %2240 = vmatprep.subr.mxu0 0.0
    %2241 = vmatpush2.msra.mxu0 0.0
    %2242 = vmatprep.subr.mxu0 0.0
    %2243 = vmatpush2.msra.mxu0 0.0
    %2244 = vmatprep.subr.mxu0 0.0
    %2245 = vmatpush2.msra.mxu0 0.0
    %2246 = vmatprep.subr.mxu0 0.0
    %2247 = vmatpush2.msra.mxu0 0.0
    %2248 = vmatprep.subr.mxu0 0.0
    %2249 = vmatpush2.msra.mxu0 0.0
    %2250 = vmatprep.subr.mxu0 0.0
    %2251 = vmatpush2.msra.mxu0 0.0
    %2252 = vmatprep.subr.mxu0 0.0
    %2253 = vmatpush2.msra.mxu0 0.0
    %2254 = vmatprep.subr.mxu0 0.0
    %2255 = vmatpush2.msra.mxu0 0.0
    %2256 = vmatprep.subr.mxu0 0.0
    %2257 = vmatpush2.msra.mxu0 0.0
    %2258 = vmatprep.subr.mxu0 0.0
    %2259 = vmatpush2.msra.mxu0 0.0
    %2260 = vmatprep.subr.mxu0 0.0
    %2261 = vmatpush2.msra.mxu0 0.0
    %2262 = vmatprep.subr.mxu0 0.0
    %2263 = vmatpush2.msra.mxu0 0.0
    %2264 = vmatprep.subr.mxu0 0.0
    %2265 = vmatpush2.msra.mxu0 0.0
    %2266 = vmatprep.subr.mxu0 0.0
    %2267 = vmatpush2.msra.mxu0 0.0
    %2268 = vmatprep.subr.mxu0 0.0
    %2269 = vmatpush2.msra.mxu0 0.0
    %2270 = vmatprep.mubr.f32.mxu0 0.0
    %2271 = vmatmul.mubr.f32.gmra.mxu0 %v2201
    %v2272 = vpop.f32.mrf.mxu0
    %v2273 = vadd.f32 %v2188, %v2272
    %v2274 = vpop.f32.mrf.mxu0
    %2275 = vmatprep.mubr.f32.mxu0 0.0
    %2276 = vmatmul.mubr.f32.gmra.mxu0 %v2204
    %v2277 = vpop.f32.mrf.mxu0
    %v2278 = vadd.f32 %v2193, %v2277
    %v2279 = vpop.f32.mrf.mxu0
    %2280 = vdwg.mxu0
    %2281 = vrot.lane.b32.xlu0 %v1705, 112
    %v2282 = vpop.permute.xlu0 %2281
    %2283 = vrot.lane.b32.xlu0 %v1710, 112
    %v2284 = vpop.permute.xlu0 %2283
    %2285 = vrot.lane.b32.xlu0 %v1705, 80
    %v2286 = vpop.permute.xlu0 %2285
    %2287 = vrot.lane.b32.xlu0 %v1710, 80
    %v2288 = vpop.permute.xlu0 %2287
    %v2289 = vsel %vm182, %v2282, 0
    %v2291 = vsel %vm182, %v2284, 0
    %v2293 = vsel %vm182, %v2286, 0
    %v2295 = vsel %vm182, %v2288, 0
    %2297 = vmatprep.subr.mxu0 0.0
    %2298 = vmatpush1.xpose.msra.mxu0 0.0
    %2299 = vmatprep.subr.mxu0 0.0
    %2300 = vmatpush1.xpose.msra.mxu0 0.0
    %2301 = vmatprep.subr.mxu0 0.0
    %2302 = vmatpush1.xpose.msra.mxu0 0.0
    %2303 = vmatprep.subr.mxu0 0.0
    %2304 = vmatpush1.xpose.msra.mxu0 0.0
    %2305 = vmatprep.subr.mxu0 0.0
    %2306 = vmatpush1.xpose.msra.mxu0 0.0
    %2307 = vmatprep.subr.mxu0 0.0
    %2308 = vmatpush1.xpose.msra.mxu0 0.0
    %2309 = vmatprep.subr.mxu0 0.0
    %2310 = vmatpush1.xpose.msra.mxu0 0.0
    %2311 = vmatprep.subr.mxu0 0.0
    %2312 = vmatpush1.xpose.msra.mxu0 0.0
    %2313 = vmatprep.subr.mxu0 0.0
    %2314 = vmatpush1.xpose.msra.mxu0 0.0
    %2315 = vmatprep.subr.mxu0 0.0
    %2316 = vmatpush1.xpose.msra.mxu0 0.0
    %2317 = vmatprep.subr.mxu0 0.0
    %2318 = vmatpush1.xpose.msra.mxu0 0.0
    %2319 = vmatprep.subr.mxu0 0.0
    %2320 = vmatpush1.xpose.msra.mxu0 0.0
    %2321 = vmatprep.subr.mxu0 0.0
    %2322 = vmatpush1.xpose.msra.mxu0 0.0
    %2323 = vmatprep.subr.mxu0 0.0
    %2324 = vmatpush1.xpose.msra.mxu0 0.0
    %2325 = vmatprep.subr.mxu0 0.0
    %2326 = vmatpush1.xpose.msra.mxu0 %v2295
    %2327 = vmatprep.subr.mxu0 0.0
    %2328 = vmatpush1.xpose.msra.mxu0 %v2293
    %2329 = vmatprep.subr.mxu0 0.0
    %2330 = vmatpush2.xpose.msra.mxu0 0.0
    %2331 = vmatprep.subr.mxu0 0.0
    %2332 = vmatpush2.xpose.msra.mxu0 0.0
    %2333 = vmatprep.subr.mxu0 0.0
    %2334 = vmatpush2.xpose.msra.mxu0 0.0
    %2335 = vmatprep.subr.mxu0 0.0
    %2336 = vmatpush2.xpose.msra.mxu0 0.0
    %2337 = vmatprep.subr.mxu0 0.0
    %2338 = vmatpush2.xpose.msra.mxu0 0.0
    %2339 = vmatprep.subr.mxu0 0.0
    %2340 = vmatpush2.xpose.msra.mxu0 0.0
    %2341 = vmatprep.subr.mxu0 0.0
    %2342 = vmatpush2.xpose.msra.mxu0 0.0
    %2343 = vmatprep.subr.mxu0 0.0
    %2344 = vmatpush2.xpose.msra.mxu0 0.0
    %2345 = vmatprep.subr.mxu0 0.0
    %2346 = vmatpush2.xpose.msra.mxu0 0.0
    %2347 = vmatprep.subr.mxu0 0.0
    %2348 = vmatpush2.xpose.msra.mxu0 0.0
    %2349 = vmatprep.subr.mxu0 0.0
    %2350 = vmatpush2.xpose.msra.mxu0 0.0
    %2351 = vmatprep.subr.mxu0 0.0
    %2352 = vmatpush2.xpose.msra.mxu0 0.0
    %2353 = vmatprep.subr.mxu0 0.0
    %2354 = vmatpush2.xpose.msra.mxu0 0.0
    %2355 = vmatprep.subr.mxu0 0.0
    %2356 = vmatpush2.xpose.msra.mxu0 0.0
    %2357 = vmatprep.subr.mxu0 0.0
    %2358 = vmatpush2.xpose.msra.mxu0 0.0
    %2359 = vmatprep.subr.mxu0 0.0
    %2360 = vmatpush2.xpose.msra.mxu0 0.0
    %2361 = vmatprep.mubr.f32.mxu0 0.0
    %2362 = vmatmul.mubr.f32.gmra.mxu0 %v2289
    %v2363 = vpop.f32.mrf.mxu0
    %v2364 = vadd.f32 %v26, %v2363
    %v2365 = vpop.f32.mrf.mxu0
    %2366 = vmatprep.mubr.f32.mxu0 0.0
    %2367 = vmatmul.mubr.f32.gmra.mxu0 %v2291
    %v2368 = vpop.f32.mrf.mxu0
    %v2369 = vadd.f32 %v27, %v2368
    %v2370 = vpop.f32.mrf.mxu0
    %2371 = vdwg.mxu0
    %v2372 = vsel %vm266, %v2364, -inf
    %2373 = vmax.xlane.f32.xlu0 %v2372
    %v2374 = vpop.xlane.xlu0 %2373
    %v2375 = vsel %vm266, %v2369, -inf
    %2376 = vmax.xlane.f32.xlu0 %v2375
    %v2377 = vpop.xlane.xlu0 %2376
    %v2378 = vsub.f32 %v2364, %v2374
    %v2379 = vsub.f32 %v2369, %v2377
    %v2380 = vmul.f32 %v2378, 1.442695
    %v2381 = vpow.pop %v2380
    %v2382 = vmul.f32 %v2379, 1.442695
    %v2383 = vpow.pop %v2382
    %v2384 = vsel %vm266, %v2381, 0.0
    %2385 = vadd.xlane.f32.xlu0 %v2384
    %v2386 = vpop.xlane.xlu0 %2385
    %v2387 = vsel %vm266, %v2383, 0.0
    %2388 = vadd.xlane.f32.xlu0 %v2387
    %v2389 = vpop.xlane.xlu0 %2388
    %v2390 = vrcp.pop %v2386
    %v2391 = vrcp.pop %v2389
    %v2392 = vmul.f32 %v2381, %v2390
    %v2393 = vmul.f32 %v2383, %v2391
    %2394 = vrot.lane.b32.xlu0 %v1705, 48
    %v2395 = vpop.permute.xlu0 %2394
    %2396 = vrot.lane.b32.xlu0 %v1710, 48
    %v2397 = vpop.permute.xlu0 %2396
    %v2401 = vsel %vm266, %v2392, 0
    %v2404 = vsel %vm266, %v2393, 0
    %2406 = vmatprep.subr.mxu0 0.0
    %2407 = vmatpush1.msra.mxu0 0.0
    %2408 = vmatprep.subr.mxu0 0.0
    %2409 = vmatpush1.msra.mxu0 0.0
    %2410 = vmatprep.subr.mxu0 0.0
    %2411 = vmatpush1.msra.mxu0 0.0
    %2412 = vmatprep.subr.mxu0 0.0
    %2413 = vmatpush1.msra.mxu0 0.0
    %2414 = vmatprep.subr.mxu0 0.0
    %2415 = vmatpush1.msra.mxu0 0.0
    %2416 = vmatprep.subr.mxu0 0.0
    %2417 = vmatpush1.msra.mxu0 0.0
    %2418 = vmatprep.subr.mxu0 0.0
    %2419 = vmatpush1.msra.mxu0 0.0
    %2420 = vmatprep.subr.mxu0 0.0
    %2421 = vmatpush1.msra.mxu0 0.0
    %2422 = vmatprep.subr.mxu0 0.0
    %2423 = vmatpush1.msra.mxu0 0.0
    %2424 = vmatprep.subr.mxu0 0.0
    %2425 = vmatpush1.msra.mxu0 0.0
    %2426 = vmatprep.subr.mxu0 0.0
    %2427 = vmatpush1.msra.mxu0 0.0
    %2428 = vmatprep.subr.mxu0 0.0
    %2429 = vmatpush1.msra.mxu0 0.0
    %2430 = vmatprep.subr.mxu0 0.0
    %2431 = vmatpush1.msra.mxu0 0.0
    %2432 = vmatprep.subr.mxu0 0.0
    %2433 = vmatpush1.msra.mxu0 0.0
    %2434 = vmatprep.subr.mxu0 0.0
    %2435 = vmatpush1.msra.mxu0 %v2397
    %2436 = vmatprep.subr.mxu0 0.0
    %2437 = vmatpush1.msra.mxu0 %v2395
    %2438 = vmatprep.subr.mxu0 0.0
    %2439 = vmatpush2.msra.mxu0 0.0
    %2440 = vmatprep.subr.mxu0 0.0
    %2441 = vmatpush2.msra.mxu0 0.0
    %2442 = vmatprep.subr.mxu0 0.0
    %2443 = vmatpush2.msra.mxu0 0.0
    %2444 = vmatprep.subr.mxu0 0.0
    %2445 = vmatpush2.msra.mxu0 0.0
    %2446 = vmatprep.subr.mxu0 0.0
    %2447 = vmatpush2.msra.mxu0 0.0
    %2448 = vmatprep.subr.mxu0 0.0
    %2449 = vmatpush2.msra.mxu0 0.0
    %2450 = vmatprep.subr.mxu0 0.0
    %2451 = vmatpush2.msra.mxu0 0.0
    %2452 = vmatprep.subr.mxu0 0.0
    %2453 = vmatpush2.msra.mxu0 0.0
    %2454 = vmatprep.subr.mxu0 0.0
    %2455 = vmatpush2.msra.mxu0 0.0
    %2456 = vmatprep.subr.mxu0 0.0
    %2457 = vmatpush2.msra.mxu0 0.0
    %2458 = vmatprep.subr.mxu0 0.0
    %2459 = vmatpush2.msra.mxu0 0.0
    %2460 = vmatprep.subr.mxu0 0.0
    %2461 = vmatpush2.msra.mxu0 0.0
    %2462 = vmatprep.subr.mxu0 0.0
    %2463 = vmatpush2.msra.mxu0 0.0
    %2464 = vmatprep.subr.mxu0 0.0
    %2465 = vmatpush2.msra.mxu0 0.0
    %2466 = vmatprep.subr.mxu0 0.0
    %2467 = vmatpush2.msra.mxu0 0.0
    %2468 = vmatprep.subr.mxu0 0.0
    %2469 = vmatpush2.msra.mxu0 0.0
    %2470 = vmatprep.mubr.f32.mxu0 0.0
    %2471 = vmatmul.mubr.f32.gmra.mxu0 %v2401
    %v2472 = vpop.f32.mrf.mxu0
    %v2473 = vadd.f32 0.0, %v2472
    %v2474 = vpop.f32.mrf.mxu0
    %2475 = vmatprep.mubr.f32.mxu0 0.0
    %2476 = vmatmul.mubr.f32.gmra.mxu0 %v2404
    %v2477 = vpop.f32.mrf.mxu0
    %v2478 = vadd.f32 0.0, %v2477
    %v2479 = vpop.f32.mrf.mxu0
    %2480 = vdwg.mxu0
    %2482 = vrot.lane.b32.xlu0 %v1570, 32
    %v2483 = vpop.permute.xlu0 %2482
    %v2486 = vsel %vm182, %v2473, 0
    %v2489 = vsel %vm182, %v2478, 0
    %2491 = vmatprep.subr.mxu0 0.0
    %2492 = vmatpush1.msra.mxu0 0.0
    %2493 = vmatprep.subr.mxu0 0.0
    %2494 = vmatpush1.msra.mxu0 0.0
    %2495 = vmatprep.subr.mxu0 0.0
    %2496 = vmatpush1.msra.mxu0 0.0
    %2497 = vmatprep.subr.mxu0 0.0
    %2498 = vmatpush1.msra.mxu0 0.0
    %2499 = vmatprep.subr.mxu0 0.0
    %2500 = vmatpush1.msra.mxu0 0.0
    %2501 = vmatprep.subr.mxu0 0.0
    %2502 = vmatpush1.msra.mxu0 0.0
    %2503 = vmatprep.subr.mxu0 0.0
    %2504 = vmatpush1.msra.mxu0 0.0
    %2505 = vmatprep.subr.mxu0 0.0
    %2506 = vmatpush1.msra.mxu0 0.0
    %2507 = vmatprep.subr.mxu0 0.0
    %2508 = vmatpush1.msra.mxu0 0.0
    %2509 = vmatprep.subr.mxu0 0.0
    %2510 = vmatpush1.msra.mxu0 0.0
    %2511 = vmatprep.subr.mxu0 0.0
    %2512 = vmatpush1.msra.mxu0 0.0
    %2513 = vmatprep.subr.mxu0 0.0
    %2514 = vmatpush1.msra.mxu0 0.0
    %2515 = vmatprep.subr.mxu0 0.0
    %2516 = vmatpush1.msra.mxu0 0.0
    %2517 = vmatprep.subr.mxu0 0.0
    %2518 = vmatpush1.msra.mxu0 0.0
    %2519 = vmatprep.subr.mxu0 0.0
    %2520 = vmatpush1.msra.mxu0 0.0
    %2521 = vmatprep.subr.mxu0 0.0
    %2522 = vmatpush1.msra.mxu0 %v2483
    %2523 = vmatprep.subr.mxu0 0.0
    %2524 = vmatpush2.msra.mxu0 0.0
    %2525 = vmatprep.subr.mxu0 0.0
    %2526 = vmatpush2.msra.mxu0 0.0
    %2527 = vmatprep.subr.mxu0 0.0
    %2528 = vmatpush2.msra.mxu0 0.0
    %2529 = vmatprep.subr.mxu0 0.0
    %2530 = vmatpush2.msra.mxu0 0.0
    %2531 = vmatprep.subr.mxu0 0.0
    %2532 = vmatpush2.msra.mxu0 0.0
    %2533 = vmatprep.subr.mxu0 0.0
    %2534 = vmatpush2.msra.mxu0 0.0
    %2535 = vmatprep.subr.mxu0 0.0
    %2536 = vmatpush2.msra.mxu0 0.0
    %2537 = vmatprep.subr.mxu0 0.0
    %2538 = vmatpush2.msra.mxu0 0.0
    %2539 = vmatprep.subr.mxu0 0.0
    %2540 = vmatpush2.msra.mxu0 0.0
    %2541 = vmatprep.subr.mxu0 0.0
    %2542 = vmatpush2.msra.mxu0 0.0
    %2543 = vmatprep.subr.mxu0 0.0
    %2544 = vmatpush2.msra.mxu0 0.0
    %2545 = vmatprep.subr.mxu0 0.0
    %2546 = vmatpush2.msra.mxu0 0.0
    %2547 = vmatprep.subr.mxu0 0.0
    %2548 = vmatpush2.msra.mxu0 0.0
    %2549 = vmatprep.subr.mxu0 0.0
    %2550 = vmatpush2.msra.mxu0 0.0
    %2551 = vmatprep.subr.mxu0 0.0
    %2552 = vmatpush2.msra.mxu0 0.0
    %2553 = vmatprep.subr.mxu0 0.0
    %2554 = vmatpush2.msra.mxu0 0.0
    %2555 = vmatprep.mubr.f32.mxu0 0.0
    %2556 = vmatmul.mubr.f32.gmra.mxu0 %v2486
    %v2557 = vpop.f32.mrf.mxu0
    %v2558 = vadd.f32 0.0, %v2557
    %v2559 = vpop.f32.mrf.mxu0
    %2560 = vmatprep.mubr.f32.mxu0 0.0
    %2561 = vmatmul.mubr.f32.gmra.mxu0 %v2489
    %v2562 = vpop.f32.mrf.mxu0
    %v2563 = vadd.f32 0.0, %v2562
    %v2564 = vpop.f32.mrf.mxu0
    %2565 = vdwg.mxu0
    %v2566 = vadd.f32 %v2273, %v2558
    %v2567 = vadd.f32 %v2278, %v2563
    %2568 = vrot.lane.b32.xlu0 %v1705, 104
    %v2569 = vpop.permute.xlu0 %2568
    %2570 = vrot.lane.b32.xlu0 %v1710, 104
    %v2571 = vpop.permute.xlu0 %2570
    %2572 = vrot.lane.b32.xlu0 %v1705, 72
    %v2573 = vpop.permute.xlu0 %2572
    %2574 = vrot.lane.b32.xlu0 %v1710, 72
    %v2575 = vpop.permute.xlu0 %2574
    %v2576 = vsel %vm182, %v2569, 0
    %v2578 = vsel %vm182, %v2571, 0
    %v2580 = vsel %vm182, %v2573, 0
    %v2582 = vsel %vm182, %v2575, 0
    %2584 = vmatprep.subr.mxu0 0.0
    %2585 = vmatpush1.xpose.msra.mxu0 0.0
    %2586 = vmatprep.subr.mxu0 0.0
    %2587 = vmatpush1.xpose.msra.mxu0 0.0
    %2588 = vmatprep.subr.mxu0 0.0
    %2589 = vmatpush1.xpose.msra.mxu0 0.0
    %2590 = vmatprep.subr.mxu0 0.0
    %2591 = vmatpush1.xpose.msra.mxu0 0.0
    %2592 = vmatprep.subr.mxu0 0.0
    %2593 = vmatpush1.xpose.msra.mxu0 0.0
    %2594 = vmatprep.subr.mxu0 0.0
    %2595 = vmatpush1.xpose.msra.mxu0 0.0
    %2596 = vmatprep.subr.mxu0 0.0
    %2597 = vmatpush1.xpose.msra.mxu0 0.0
    %2598 = vmatprep.subr.mxu0 0.0
    %2599 = vmatpush1.xpose.msra.mxu0 0.0
    %2600 = vmatprep.subr.mxu0 0.0
    %2601 = vmatpush1.xpose.msra.mxu0 0.0
    %2602 = vmatprep.subr.mxu0 0.0
    %2603 = vmatpush1.xpose.msra.mxu0 0.0
    %2604 = vmatprep.subr.mxu0 0.0
    %2605 = vmatpush1.xpose.msra.mxu0 0.0
    %2606 = vmatprep.subr.mxu0 0.0
    %2607 = vmatpush1.xpose.msra.mxu0 0.0
    %2608 = vmatprep.subr.mxu0 0.0
    %2609 = vmatpush1.xpose.msra.mxu0 0.0
    %2610 = vmatprep.subr.mxu0 0.0
    %2611 = vmatpush1.xpose.msra.mxu0 0.0
    %2612 = vmatprep.subr.mxu0 0.0
    %2613 = vmatpush1.xpose.msra.mxu0 %v2582
    %2614 = vmatprep.subr.mxu0 0.0
    %2615 = vmatpush1.xpose.msra.mxu0 %v2580
    %2616 = vmatprep.subr.mxu0 0.0
    %2617 = vmatpush2.xpose.msra.mxu0 0.0
    %2618 = vmatprep.subr.mxu0 0.0
    %2619 = vmatpush2.xpose.msra.mxu0 0.0
    %2620 = vmatprep.subr.mxu0 0.0
    %2621 = vmatpush2.xpose.msra.mxu0 0.0
    %2622 = vmatprep.subr.mxu0 0.0
    %2623 = vmatpush2.xpose.msra.mxu0 0.0
    %2624 = vmatprep.subr.mxu0 0.0
    %2625 = vmatpush2.xpose.msra.mxu0 0.0
    %2626 = vmatprep.subr.mxu0 0.0
    %2627 = vmatpush2.xpose.msra.mxu0 0.0
    %2628 = vmatprep.subr.mxu0 0.0
    %2629 = vmatpush2.xpose.msra.mxu0 0.0
    %2630 = vmatprep.subr.mxu0 0.0
    %2631 = vmatpush2.xpose.msra.mxu0 0.0
    %2632 = vmatprep.subr.mxu0 0.0
    %2633 = vmatpush2.xpose.msra.mxu0 0.0
    %2634 = vmatprep.subr.mxu0 0.0
    %2635 = vmatpush2.xpose.msra.mxu0 0.0
    %2636 = vmatprep.subr.mxu0 0.0
    %2637 = vmatpush2.xpose.msra.mxu0 0.0
    %2638 = vmatprep.subr.mxu0 0.0
    %2639 = vmatpush2.xpose.msra.mxu0 0.0
    %2640 = vmatprep.subr.mxu0 0.0
    %2641 = vmatpush2.xpose.msra.mxu0 0.0
    %2642 = vmatprep.subr.mxu0 0.0
    %2643 = vmatpush2.xpose.msra.mxu0 0.0
    %2644 = vmatprep.subr.mxu0 0.0
    %2645 = vmatpush2.xpose.msra.mxu0 0.0
    %2646 = vmatprep.subr.mxu0 0.0
    %2647 = vmatpush2.xpose.msra.mxu0 0.0
    %2648 = vmatprep.mubr.f32.mxu0 0.0
    %2649 = vmatmul.mubr.f32.gmra.mxu0 %v2576
    %v2650 = vpop.f32.mrf.mxu0
    %v2651 = vadd.f32 %v26, %v2650
    %v2652 = vpop.f32.mrf.mxu0
    %2653 = vmatprep.mubr.f32.mxu0 0.0
    %2654 = vmatmul.mubr.f32.gmra.mxu0 %v2578
    %v2655 = vpop.f32.mrf.mxu0
    %v2656 = vadd.f32 %v27, %v2655
    %v2657 = vpop.f32.mrf.mxu0
    %2658 = vdwg.mxu0
    %v2659 = vsel %vm266, %v2651, -inf
    %2660 = vmax.xlane.f32.xlu0 %v2659
    %v2661 = vpop.xlane.xlu0 %2660
    %v2662 = vsel %vm266, %v2656, -inf
    %2663 = vmax.xlane.f32.xlu0 %v2662
    %v2664 = vpop.xlane.xlu0 %2663
    %v2665 = vsub.f32 %v2651, %v2661
    %v2666 = vsub.f32 %v2656, %v2664
    %v2667 = vmul.f32 %v2665, 1.442695
    %v2668 = vpow.pop %v2667
    %v2669 = vmul.f32 %v2666, 1.442695
    %v2670 = vpow.pop %v2669
    %v2671 = vsel %vm266, %v2668, 0.0
    %2672 = vadd.xlane.f32.xlu0 %v2671
    %v2673 = vpop.xlane.xlu0 %2672
    %v2674 = vsel %vm266, %v2670, 0.0
    %2675 = vadd.xlane.f32.xlu0 %v2674
    %v2676 = vpop.xlane.xlu0 %2675
    %v2677 = vrcp.pop %v2673
    %v2678 = vrcp.pop %v2676
    %v2679 = vmul.f32 %v2668, %v2677
    %v2680 = vmul.f32 %v2670, %v2678
    %2681 = vrot.lane.b32.xlu0 %v1705, 40
    %v2682 = vpop.permute.xlu0 %2681
    %2683 = vrot.lane.b32.xlu0 %v1710, 40
    %v2684 = vpop.permute.xlu0 %2683
    %v2688 = vsel %vm266, %v2679, 0
    %v2691 = vsel %vm266, %v2680, 0
    %2693 = vmatprep.subr.mxu0 0.0
    %2694 = vmatpush1.msra.mxu0 0.0
    %2695 = vmatprep.subr.mxu0 0.0
    %2696 = vmatpush1.msra.mxu0 0.0
    %2697 = vmatprep.subr.mxu0 0.0
    %2698 = vmatpush1.msra.mxu0 0.0
    %2699 = vmatprep.subr.mxu0 0.0
    %2700 = vmatpush1.msra.mxu0 0.0
    %2701 = vmatprep.subr.mxu0 0.0
    %2702 = vmatpush1.msra.mxu0 0.0
    %2703 = vmatprep.subr.mxu0 0.0
    %2704 = vmatpush1.msra.mxu0 0.0
    %2705 = vmatprep.subr.mxu0 0.0
    %2706 = vmatpush1.msra.mxu0 0.0
    %2707 = vmatprep.subr.mxu0 0.0
    %2708 = vmatpush1.msra.mxu0 0.0
    %2709 = vmatprep.subr.mxu0 0.0
    %2710 = vmatpush1.msra.mxu0 0.0
    %2711 = vmatprep.subr.mxu0 0.0
    %2712 = vmatpush1.msra.mxu0 0.0
    %2713 = vmatprep.subr.mxu0 0.0
    %2714 = vmatpush1.msra.mxu0 0.0
    %2715 = vmatprep.subr.mxu0 0.0
    %2716 = vmatpush1.msra.mxu0 0.0
    %2717 = vmatprep.subr.mxu0 0.0
    %2718 = vmatpush1.msra.mxu0 0.0
    %2719 = vmatprep.subr.mxu0 0.0
    %2720 = vmatpush1.msra.mxu0 0.0
    %2721 = vmatprep.subr.mxu0 0.0
    %2722 = vmatpush1.msra.mxu0 %v2684
    %2723 = vmatprep.subr.mxu0 0.0
    %2724 = vmatpush1.msra.mxu0 %v2682
    %2725 = vmatprep.subr.mxu0 0.0
    %2726 = vmatpush2.msra.mxu0 0.0
    %2727 = vmatprep.subr.mxu0 0.0
    %2728 = vmatpush2.msra.mxu0 0.0
    %2729 = vmatprep.subr.mxu0 0.0
    %2730 = vmatpush2.msra.mxu0 0.0
    %2731 = vmatprep.subr.mxu0 0.0
    %2732 = vmatpush2.msra.mxu0 0.0
    %2733 = vmatprep.subr.mxu0 0.0
    %2734 = vmatpush2.msra.mxu0 0.0
    %2735 = vmatprep.subr.mxu0 0.0
    %2736 = vmatpush2.msra.mxu0 0.0
    %2737 = vmatprep.subr.mxu0 0.0
    %2738 = vmatpush2.msra.mxu0 0.0
    %2739 = vmatprep.subr.mxu0 0.0
    %2740 = vmatpush2.msra.mxu0 0.0
    %2741 = vmatprep.subr.mxu0 0.0
    %2742 = vmatpush2.msra.mxu0 0.0
    %2743 = vmatprep.subr.mxu0 0.0
    %2744 = vmatpush2.msra.mxu0 0.0
    %2745 = vmatprep.subr.mxu0 0.0
    %2746 = vmatpush2.msra.mxu0 0.0
    %2747 = vmatprep.subr.mxu0 0.0
    %2748 = vmatpush2.msra.mxu0 0.0
    %2749 = vmatprep.subr.mxu0 0.0
    %2750 = vmatpush2.msra.mxu0 0.0
    %2751 = vmatprep.subr.mxu0 0.0
    %2752 = vmatpush2.msra.mxu0 0.0
    %2753 = vmatprep.subr.mxu0 0.0
    %2754 = vmatpush2.msra.mxu0 0.0
    %2755 = vmatprep.subr.mxu0 0.0
    %2756 = vmatpush2.msra.mxu0 0.0
    %2757 = vmatprep.mubr.f32.mxu0 0.0
    %2758 = vmatmul.mubr.f32.gmra.mxu0 %v2688
    %v2759 = vpop.f32.mrf.mxu0
    %v2760 = vadd.f32 0.0, %v2759
    %v2761 = vpop.f32.mrf.mxu0
    %2762 = vmatprep.mubr.f32.mxu0 0.0
    %2763 = vmatmul.mubr.f32.gmra.mxu0 %v2691
    %v2764 = vpop.f32.mrf.mxu0
    %v2765 = vadd.f32 0.0, %v2764
    %v2766 = vpop.f32.mrf.mxu0
    %2767 = vdwg.mxu0
    %2769 = vrot.lane.b32.xlu0 %v1572, 32
    %v2770 = vpop.permute.xlu0 %2769
    %v2773 = vsel %vm182, %v2760, 0
    %v2776 = vsel %vm182, %v2765, 0
    %2778 = vmatprep.subr.mxu0 0.0
    %2779 = vmatpush1.msra.mxu0 0.0
    %2780 = vmatprep.subr.mxu0 0.0
    %2781 = vmatpush1.msra.mxu0 0.0
    %2782 = vmatprep.subr.mxu0 0.0
    %2783 = vmatpush1.msra.mxu0 0.0
    %2784 = vmatprep.subr.mxu0 0.0
    %2785 = vmatpush1.msra.mxu0 0.0
    %2786 = vmatprep.subr.mxu0 0.0
    %2787 = vmatpush1.msra.mxu0 0.0
    %2788 = vmatprep.subr.mxu0 0.0
    %2789 = vmatpush1.msra.mxu0 0.0
    %2790 = vmatprep.subr.mxu0 0.0
    %2791 = vmatpush1.msra.mxu0 0.0
    %2792 = vmatprep.subr.mxu0 0.0
    %2793 = vmatpush1.msra.mxu0 0.0
    %2794 = vmatprep.subr.mxu0 0.0
    %2795 = vmatpush1.msra.mxu0 0.0
    %2796 = vmatprep.subr.mxu0 0.0
    %2797 = vmatpush1.msra.mxu0 0.0
    %2798 = vmatprep.subr.mxu0 0.0
    %2799 = vmatpush1.msra.mxu0 0.0
    %2800 = vmatprep.subr.mxu0 0.0
    %2801 = vmatpush1.msra.mxu0 0.0
    %2802 = vmatprep.subr.mxu0 0.0
    %2803 = vmatpush1.msra.mxu0 0.0
    %2804 = vmatprep.subr.mxu0 0.0
    %2805 = vmatpush1.msra.mxu0 0.0
    %2806 = vmatprep.subr.mxu0 0.0
    %2807 = vmatpush1.msra.mxu0 0.0
    %2808 = vmatprep.subr.mxu0 0.0
    %2809 = vmatpush1.msra.mxu0 %v2770
    %2810 = vmatprep.subr.mxu0 0.0
    %2811 = vmatpush2.msra.mxu0 0.0
    %2812 = vmatprep.subr.mxu0 0.0
    %2813 = vmatpush2.msra.mxu0 0.0
    %2814 = vmatprep.subr.mxu0 0.0
    %2815 = vmatpush2.msra.mxu0 0.0
    %2816 = vmatprep.subr.mxu0 0.0
    %2817 = vmatpush2.msra.mxu0 0.0
    %2818 = vmatprep.subr.mxu0 0.0
    %2819 = vmatpush2.msra.mxu0 0.0
    %2820 = vmatprep.subr.mxu0 0.0
    %2821 = vmatpush2.msra.mxu0 0.0
    %2822 = vmatprep.subr.mxu0 0.0
    %2823 = vmatpush2.msra.mxu0 0.0
    %2824 = vmatprep.subr.mxu0 0.0
    %2825 = vmatpush2.msra.mxu0 0.0
    %2826 = vmatprep.subr.mxu0 0.0
    %2827 = vmatpush2.msra.mxu0 0.0
    %2828 = vmatprep.subr.mxu0 0.0
    %2829 = vmatpush2.msra.mxu0 0.0
    %2830 = vmatprep.subr.mxu0 0.0
    %2831 = vmatpush2.msra.mxu0 0.0
    %2832 = vmatprep.subr.mxu0 0.0
    %2833 = vmatpush2.msra.mxu0 0.0
    %2834 = vmatprep.subr.mxu0 0.0
    %2835 = vmatpush2.msra.mxu0 0.0
    %2836 = vmatprep.subr.mxu0 0.0
    %2837 = vmatpush2.msra.mxu0 0.0
    %2838 = vmatprep.subr.mxu0 0.0
    %2839 = vmatpush2.msra.mxu0 0.0
    %2840 = vmatprep.subr.mxu0 0.0
    %2841 = vmatpush2.msra.mxu0 0.0
    %2842 = vmatprep.mubr.f32.mxu0 0.0
    %2843 = vmatmul.mubr.f32.gmra.mxu0 %v2773
    %v2844 = vpop.f32.mrf.mxu0
    %v2845 = vadd.f32 0.0, %v2844
    %v2846 = vpop.f32.mrf.mxu0
    %2847 = vmatprep.mubr.f32.mxu0 0.0
    %2848 = vmatmul.mubr.f32.gmra.mxu0 %v2776
    %v2849 = vpop.f32.mrf.mxu0
    %v2850 = vadd.f32 0.0, %v2849
    %v2851 = vpop.f32.mrf.mxu0
    %2852 = vdwg.mxu0
    %v2853 = vadd.f32 %v2566, %v2845
    %v2854 = vadd.f32 %v2567, %v2850
    %v2855 = vadd.f32 %v1563, %v2853
    %v2856 = vadd.f32 %v1564, %v2854
    %v2857 = vlaneseq
    %v2858 = vshrl.u32 %v2857, 7
    %v2859 = vsub.s32 1, %v2858
    %v2860 = vrot.slane %v1575, %v2859
    %v2861 = vadd.f32 %v2855, %v2860
    %v2862 = vadd.f32 %v2856, %v2860
    %v2863 = vsel %vm37, %v2861, 0.0
    %2864 = vadd.xlane.f32.xlu0 %v2863
    %v2865 = vpop.xlane.xlu0 %2864
    %v2866 = vsel %vm37, %v2862, 0.0
    %2867 = vadd.xlane.f32.xlu0 %v2866
    %v2868 = vpop.xlane.xlu0 %2867
    %v2869 = vmul.f32 %v2865, %v44
    %v2870 = vmul.f32 %v2868, %v44
    %v2871 = vsub.f32 %v2861, %v2869
    %v2872 = vsub.f32 %v2862, %v2870
    %v2873 = vmul.f32 %v2871, %v2871
    %v2874 = vmul.f32 %v2872, %v2872
    %v2875 = vsel %vm37, %v2873, 0.0
    %2876 = vadd.xlane.f32.xlu0 %v2875
    %v2877 = vpop.xlane.xlu0 %2876
    %v2878 = vsel %vm37, %v2874, 0.0
    %2879 = vadd.xlane.f32.xlu0 %v2878
    %v2880 = vpop.xlane.xlu0 %2879
    %v2881 = vmul.f32 %v2877, 0.032258064
    %v2882 = vmul.f32 %v2880, 0.032258064
    %v2883 = vrsqrt.pop %v2881
    %v2884 = vmul.f32 %v2881, %v2883
    %vm2885 = vcmp.eq.f32.partialorder %v2881, inf
    %v2886 = vsel %vm2885, %v2881, %v2884
    %vm2887 = vcmp.eq.f32.partialorder %v2881, 0.0
    %v2888 = vand.u32 %v2881, 2147483648
    %v2889 = vsel %vm2887, %v2888, %v2886
    %v2890 = vrsqrt.pop %v2882
    %v2891 = vmul.f32 %v2882, %v2890
    %vm2892 = vcmp.eq.f32.partialorder %v2882, inf
    %v2893 = vsel %vm2892, %v2882, %v2891
    %vm2894 = vcmp.eq.f32.partialorder %v2882, 0.0
    %v2895 = vand.u32 %v2882, 2147483648
    %v2896 = vsel %vm2894, %v2895, %v2893
    %v2897 = vadd.f32 %v2889, 1e-06
    %v2898 = vadd.f32 %v2896, 1e-06
    %v2899 = vrcp.pop %v2897
    %v2900 = vrcp.pop %v2898
    %v2901 = vlaneseq
    %v2902 = vshrl.u32 %v2901, 7
    %v2903 = vsub.s32 6, %v2902
    %v2904 = vrot.slane %v1575, %v2903
    %v2905 = vmul.f32 %v2904, %v2871
    %v2906 = vmul.f32 %v2904, %v2872
    %v2907 = vmul.f32 %v2905, %v2899
    %v2908 = vmul.f32 %v2906, %v2900
    %v2909 = vlaneseq
    %v2910 = vshrl.u32 %v2909, 7
    %v2911 = vsub.s32 7, %v2910
    %v2912 = vrot.slane %v1575, %v2911
    %v2913 = vadd.f32 %v2907, %v2912
    %v2914 = vadd.f32 %v2908, %v2912
    %v2915 = vlaneseq
    %v2916 = vshrl.u32 %v2915, 7
    %v2917 = vsub.s32 2, %v2916
    %v2918 = vrot.slane %v1575, %v2917
    %v2920 = vsel %vm37, %v2913, 0
    %v2923 = vsel %vm37, %v2914, 0
    %2925 = vmatprep.subr.mxu0 0.0
    %2926 = vmatpush1.msra.mxu0 0.0
    %2927 = vmatprep.subr.mxu0 0.0
    %2928 = vmatpush1.msra.mxu0 0.0
    %2929 = vmatprep.subr.mxu0 0.0
    %2930 = vmatpush1.msra.mxu0 0.0
    %2931 = vmatprep.subr.mxu0 0.0
    %2932 = vmatpush1.msra.mxu0 0.0
    %2933 = vmatprep.subr.mxu0 0.0
    %2934 = vmatpush1.msra.mxu0 0.0
    %2935 = vmatprep.subr.mxu0 0.0
    %2936 = vmatpush1.msra.mxu0 0.0
    %2937 = vmatprep.subr.mxu0 0.0
    %2938 = vmatpush1.msra.mxu0 0.0
    %2939 = vmatprep.subr.mxu0 0.0
    %2940 = vmatpush1.msra.mxu0 0.0
    %2941 = vmatprep.subr.mxu0 0.0
    %2942 = vmatpush1.msra.mxu0 0.0
    %2943 = vmatprep.subr.mxu0 0.0
    %2944 = vmatpush1.msra.mxu0 0.0
    %2945 = vmatprep.subr.mxu0 0.0
    %2946 = vmatpush1.msra.mxu0 0.0
    %2947 = vmatprep.subr.mxu0 0.0
    %2948 = vmatpush1.msra.mxu0 0.0
    %2949 = vmatprep.subr.mxu0 0.0
    %2950 = vmatpush1.msra.mxu0 %v1573
    %2951 = vmatprep.subr.mxu0 0.0
    %2952 = vmatpush1.msra.mxu0 %v1571
    %2953 = vmatprep.subr.mxu0 0.0
    %2954 = vmatpush1.msra.mxu0 %v1569
    %2955 = vmatprep.subr.mxu0 0.0
    %2956 = vmatpush1.msra.mxu0 %v1567
    %2957 = vmatprep.subr.mxu0 0.0
    %2958 = vmatpush2.msra.mxu0 0.0
    %2959 = vmatprep.subr.mxu0 0.0
    %2960 = vmatpush2.msra.mxu0 0.0
    %2961 = vmatprep.subr.mxu0 0.0
    %2962 = vmatpush2.msra.mxu0 0.0
    %2963 = vmatprep.subr.mxu0 0.0
    %2964 = vmatpush2.msra.mxu0 0.0
    %2965 = vmatprep.subr.mxu0 0.0
    %2966 = vmatpush2.msra.mxu0 0.0
    %2967 = vmatprep.subr.mxu0 0.0
    %2968 = vmatpush2.msra.mxu0 0.0
    %2969 = vmatprep.subr.mxu0 0.0
    %2970 = vmatpush2.msra.mxu0 0.0
    %2971 = vmatprep.subr.mxu0 0.0
    %2972 = vmatpush2.msra.mxu0 0.0
    %2973 = vmatprep.subr.mxu0 0.0
    %2974 = vmatpush2.msra.mxu0 0.0
    %2975 = vmatprep.subr.mxu0 0.0
    %2976 = vmatpush2.msra.mxu0 0.0
    %2977 = vmatprep.subr.mxu0 0.0
    %2978 = vmatpush2.msra.mxu0 0.0
    %2979 = vmatprep.subr.mxu0 0.0
    %2980 = vmatpush2.msra.mxu0 0.0
    %2981 = vmatprep.subr.mxu0 0.0
    %2982 = vmatpush2.msra.mxu0 0.0
    %2983 = vmatprep.subr.mxu0 0.0
    %2984 = vmatpush2.msra.mxu0 0.0
    %2985 = vmatprep.subr.mxu0 0.0
    %2986 = vmatpush2.msra.mxu0 0.0
    %2987 = vmatprep.subr.mxu0 0.0
    %2988 = vmatpush2.msra.mxu0 0.0
    %2989 = vmatprep.mubr.f32.mxu0 0.0
    %2990 = vmatmul.mubr.f32.gmra.mxu0 %v2920
    %v2991 = vpop.f32.mrf.mxu0
    %v2992 = vadd.f32 %v2918, %v2991
    %v2993 = vpop.f32.mrf.mxu0
    %2994 = vmatprep.mubr.f32.mxu0 0.0
    %2995 = vmatmul.mubr.f32.gmra.mxu0 %v2923
    %v2996 = vpop.f32.mrf.mxu0
    %v2997 = vadd.f32 %v2918, %v2996
    %v2998 = vpop.f32.mrf.mxu0
    %2999 = vdwg.mxu0
    %v3000 = vmax.f32 %v2992, 0.0
    %v3001 = vmax.f32 %v2997, 0.0
    %s3002 = scalar_lea.vmem %s3, 64
    %v3003 = vld [vmem:[%s3002] sm:$0xff]
    %v3004 = vld [vmem:[%s3002 + $0x8] sm:$0xff]
    %v3005 = vld [vmem:[%s3002 + $0x10] sm:$0xff]
    %v3006 = vld [vmem:[%s3002 + $0x18] sm:$0xff]
    %v3007 = vld [vmem:[%s3002 + $0x20] sm:$0xff]
    %v3008 = vld [vmem:[%s3002 + $0x28] sm:$0xff]
    %v3009 = vld [vmem:[%s3002 + $0x30] sm:$0xff]
    %v3010 = vld [vmem:[%s3002 + $0x38] sm:$0xff]
    %v3012 = vsel %vm1475, %v3000, 0
    %v3015 = vsel %vm1475, %v3001, 0
    %3017 = vmatprep.subr.mxu0 0.0
    %3018 = vmatpush1.msra.mxu0 0.0
    %3019 = vmatprep.subr.mxu0 0.0
    %3020 = vmatpush1.msra.mxu0 0.0
    %3021 = vmatprep.subr.mxu0 0.0
    %3022 = vmatpush1.msra.mxu0 0.0
    %3023 = vmatprep.subr.mxu0 0.0
    %3024 = vmatpush1.msra.mxu0 0.0
    %3025 = vmatprep.subr.mxu0 0.0
    %3026 = vmatpush1.msra.mxu0 0.0
    %3027 = vmatprep.subr.mxu0 0.0
    %3028 = vmatpush1.msra.mxu0 0.0
    %3029 = vmatprep.subr.mxu0 0.0
    %3030 = vmatpush1.msra.mxu0 0.0
    %3031 = vmatprep.subr.mxu0 0.0
    %3032 = vmatpush1.msra.mxu0 0.0
    %3033 = vmatprep.subr.mxu0 0.0
    %3034 = vmatpush1.msra.mxu0 %v3010
    %3035 = vmatprep.subr.mxu0 0.0
    %3036 = vmatpush1.msra.mxu0 %v3009
    %3037 = vmatprep.subr.mxu0 0.0
    %3038 = vmatpush1.msra.mxu0 %v3008
    %3039 = vmatprep.subr.mxu0 0.0
    %3040 = vmatpush1.msra.mxu0 %v3007
    %3041 = vmatprep.subr.mxu0 0.0
    %3042 = vmatpush1.msra.mxu0 %v3006
    %3043 = vmatprep.subr.mxu0 0.0
    %3044 = vmatpush1.msra.mxu0 %v3005
    %3045 = vmatprep.subr.mxu0 0.0
    %3046 = vmatpush1.msra.mxu0 %v3004
    %3047 = vmatprep.subr.mxu0 0.0
    %3048 = vmatpush1.msra.mxu0 %v3003
    %3049 = vmatprep.subr.mxu0 0.0
    %3050 = vmatpush2.msra.mxu0 0.0
    %3051 = vmatprep.subr.mxu0 0.0
    %3052 = vmatpush2.msra.mxu0 0.0
    %3053 = vmatprep.subr.mxu0 0.0
    %3054 = vmatpush2.msra.mxu0 0.0
    %3055 = vmatprep.subr.mxu0 0.0
    %3056 = vmatpush2.msra.mxu0 0.0
    %3057 = vmatprep.subr.mxu0 0.0
    %3058 = vmatpush2.msra.mxu0 0.0
    %3059 = vmatprep.subr.mxu0 0.0
    %3060 = vmatpush2.msra.mxu0 0.0
    %3061 = vmatprep.subr.mxu0 0.0
    %3062 = vmatpush2.msra.mxu0 0.0
    %3063 = vmatprep.subr.mxu0 0.0
    %3064 = vmatpush2.msra.mxu0 0.0
    %3065 = vmatprep.subr.mxu0 0.0
    %3066 = vmatpush2.msra.mxu0 0.0
    %3067 = vmatprep.subr.mxu0 0.0
    %3068 = vmatpush2.msra.mxu0 0.0
    %3069 = vmatprep.subr.mxu0 0.0
    %3070 = vmatpush2.msra.mxu0 0.0
    %3071 = vmatprep.subr.mxu0 0.0
    %3072 = vmatpush2.msra.mxu0 0.0
    %3073 = vmatprep.subr.mxu0 0.0
    %3074 = vmatpush2.msra.mxu0 0.0
    %3075 = vmatprep.subr.mxu0 0.0
    %3076 = vmatpush2.msra.mxu0 0.0
    %3077 = vmatprep.subr.mxu0 0.0
    %3078 = vmatpush2.msra.mxu0 0.0
    %3079 = vmatprep.subr.mxu0 0.0
    %3080 = vmatpush2.msra.mxu0 0.0
    %3081 = vmatprep.mubr.f32.mxu0 0.0
    %3082 = vmatmul.mubr.f32.gmra.mxu0 %v3012
    %v3083 = vpop.f32.mrf.mxu0
    %v3084 = vadd.f32 0.0, %v3083
    %v3085 = vpop.f32.mrf.mxu0
    %3086 = vmatprep.mubr.f32.mxu0 0.0
    %3087 = vmatmul.mubr.f32.gmra.mxu0 %v3015
    %v3088 = vpop.f32.mrf.mxu0
    %v3089 = vadd.f32 0.0, %v3088
    %v3090 = vpop.f32.mrf.mxu0
    %3091 = vdwg.mxu0
    %v3092 = vadd.f32 %v2861, %v3084
    %v3093 = vadd.f32 %v2862, %v3089
    %v3094 = vlaneseq
    %v3095 = vshrl.u32 %v3094, 7
    %v3096 = vsub.s32 3, %v3095
    %v3097 = vrot.slane %v1575, %v3096
    %v3098 = vadd.f32 %v3092, %v3097
    %v3099 = vadd.f32 %v3093, %v3097
    %v3100 = vld [vmem:[%s5] sm:$0x1]
    %v3101 = vld [vmem:[%s5 + $0x1] sm:$0x1]
    %v3102 = vsel %vm37, %v3098, 0.0
    %3103 = vadd.xlane.f32.xlu0 %v3102
    %v3104 = vpop.xlane.xlu0 %3103
    %v3105 = vsel %vm37, %v3099, 0.0
    %3106 = vadd.xlane.f32.xlu0 %v3105
    %v3107 = vpop.xlane.xlu0 %3106
    %v3108 = vmul.f32 %v3104, %v44
    %v3109 = vmul.f32 %v3107, %v44
    %v3110 = vsub.f32 %v3098, %v3108
    %v3111 = vsub.f32 %v3099, %v3109
    %v3112 = vmul.f32 %v3110, %v3110
    %v3113 = vmul.f32 %v3111, %v3111
    %v3114 = vsel %vm37, %v3112, 0.0
    %3115 = vadd.xlane.f32.xlu0 %v3114
    %v3116 = vpop.xlane.xlu0 %3115
    %v3117 = vsel %vm37, %v3113, 0.0
    %3118 = vadd.xlane.f32.xlu0 %v3117
    %v3119 = vpop.xlane.xlu0 %3118
    %v3120 = vmul.f32 %v3116, 0.032258064
    %v3121 = vmul.f32 %v3119, 0.032258064
    %v3122 = vrsqrt.pop %v3120
    %v3123 = vmul.f32 %v3120, %v3122
    %vm3124 = vcmp.eq.f32.partialorder %v3120, inf
    %v3125 = vsel %vm3124, %v3120, %v3123
    %vm3126 = vcmp.eq.f32.partialorder %v3120, 0.0
    %v3127 = vand.u32 %v3120, 2147483648
    %v3128 = vsel %vm3126, %v3127, %v3125
    %v3129 = vrsqrt.pop %v3121
    %v3130 = vmul.f32 %v3121, %v3129
    %vm3131 = vcmp.eq.f32.partialorder %v3121, inf
    %v3132 = vsel %vm3131, %v3121, %v3130
    %vm3133 = vcmp.eq.f32.partialorder %v3121, 0.0
    %v3134 = vand.u32 %v3121, 2147483648
    %v3135 = vsel %vm3133, %v3134, %v3132
    %v3136 = vadd.f32 %v3128, 1e-06
    %v3137 = vadd.f32 %v3135, 1e-06
    %v3138 = vrcp.pop %v3136
    %v3139 = vrcp.pop %v3137
    %v3140 = vlaneseq
    %v3141 = vshrl.u32 %v3140, 7
    %v3142 = vsub.s32 0, %v3141
    %v3143 = vrot.slane %v3100, %v3142
    %v3144 = vmul.f32 %v3143, %v3110
    %v3145 = vmul.f32 %v3143, %v3111
    %v3146 = vmul.f32 %v3144, %v3138
    %v3147 = vmul.f32 %v3145, %v3139
    %v3148 = vlaneseq
    %v3149 = vshrl.u32 %v3148, 7
    %v3150 = vsub.s32 0, %v3149
    %v3151 = vrot.slane %v3101, %v3150
    %v3152 = vadd.f32 %v3146, %v3151
    %v3153 = vadd.f32 %v3147, %v3151
    %3154 = vst.msk [vmem:[#allocation2] sm:$0xff] %vm37, %v3152
    %3155 = vst.msk [vmem:[#allocation2 + $0x8] sm:$0xff] %vm37, %v3153
    // Predicated region
    $region26: #{tpu_custom_call.1} parent=1 // pred_check
      _
    $region27: #{tpu_custom_call.1} parent=1 // pred_check_branch
      %3157 = sbr.rel (0) target = $region29
    $region28: #{tpu_custom_call.1} parent=1 // pred_region
      %s3159 = ssub.s32 256, 256
      %3160 = vsyncadd [#allocation3], %s3159
      %s3161 = sshll.u32 [#allocation2], 4
      %s3162 = int_to_ptr.vmem [resolvable:$true] %s3161
      %3167 = dma.vmem_to_hbm [thread:$0]  %s3162, 256, %s6, [#allocation3], 128, 128, 8
    $region29: #{tpu_custom_call.1} parent=1 // pred_fallthru
      _
    // Predicated region
    $region30: #{tpu_custom_call.1} parent=1 // pred_check
      _
    $region31: #{tpu_custom_call.1} parent=1 // pred_check_branch
      %3169 = sbr.rel (0) target = $region33
    $region32: #{tpu_custom_call.1} parent=1 // pred_region
      %3170 = dma.done [#allocation3], 256
    $region33: #{tpu_custom_call.1} parent=1 // pred_fallthru
      _
    %3171 = vsyncpa [#allocation3], 1

</llo_original>
